<compile_context>
chip_gen: v7x
topology: tpu7x:2x2x1
jax: 0.10.0
libtpu: 0.0.40
codegen_flags: <defaults>
</compile_context>

<pallas_src>
import jax
import jax.numpy as jnp
from jax import lax
from jax.experimental import pallas as pl
from jax.experimental.pallas import tpu as pltpu

LANE = 128


def _pad_to_lane(c):
    return ((c + LANE - 1) // LANE) * LANE


def bottleneck_kernel(x_ref, w1_ref, b1_ref, w2_ref, b2_ref, w3_ref, b3_ref,
                      o_ref, h1_ref):
    # x_ref:  (1, H, W, Cin_p) f32 — full image, revisited across the H grid axis
    # w1_ref: (Cin_p, P_p)  bf16    b1_ref: (1, P_p)    f32
    # w2_ref: (9*P_p, P_p)  bf16    b2_ref: (1, P_p)    f32
    # w3_ref: (P_p, Cout_p) bf16    b3_ref: (1, Cout_p) f32
    # o_ref:  (1, TH, W, Cout_p) f32
    # h1_ref: ((TH+2)*W, P_p) bf16 scratch — conv1 output rows r0-1 .. r0+TH
    _, H, W, Cin_p = x_ref.shape
    _, TH, _, Cout_p = o_ref.shape
    P_p = w1_ref.shape[1]
    BW = TH * W

    h = pl.program_id(1)
    r0 = h * TH                       # first output row of this block

    w1 = w1_ref[...]
    b1 = b1_ref[...]

    def conv1_rows(start, nrows):
        # 1x1 conv + folded bn1 + relu over `nrows` image rows, returned bf16.
        xm = x_ref[:, pl.ds(start, nrows), :, :].reshape(nrows * W, Cin_p)
        y = jnp.dot(xm.astype(jnp.bfloat16), w1,
                    preferred_element_type=jnp.float32)
        return jnp.maximum(y + b1, 0.0).astype(jnp.bfloat16)

    # ---- conv1 (1x1) + bn1 + relu for this block + 1-row halo, into bf16 scratch ----
    h1_ref[pl.ds(W, BW), :] = conv1_rows(r0, TH)              # rows r0 .. r0+TH-1

    @pl.when(r0 > 0)
    def _():
        h1_ref[pl.ds(0, W), :] = conv1_rows(r0 - 1, 1)        # top halo row

    @pl.when(r0 == 0)
    def _():
        h1_ref[pl.ds(0, W), :] = jnp.zeros((W, P_p), jnp.bfloat16)

    @pl.when(r0 + TH < H)
    def _():
        h1_ref[pl.ds((TH + 1) * W, W), :] = conv1_rows(r0 + TH, 1)  # bottom halo

    @pl.when(r0 + TH >= H)
    def _():
        h1_ref[pl.ds((TH + 1) * W, W), :] = jnp.zeros((W, P_p), jnp.bfloat16)

    # ---- conv2 (3x3, stride 1, pad 1) + bn2 + relu: 9 accumulating dots ----
    # W-border validity masks, shape (BW, 1); lane-broadcast inside the select.
    xcol = lax.broadcasted_iota(jnp.int32, (TH, W, 1), 1).reshape(BW, 1)
    ok_l = xcol >= 1            # valid output columns for dx = -1
    ok_r = xcol < (W - 1)       # valid output columns for dx = +1

    acc = None
    k = 0
    for ky in range(3):
        # rows y+ky-1 for y in [r0, r0+TH) live at scratch rows [ky*W, ky*W+BW)
        slab = h1_ref[pl.ds(ky * W, BW), :]                   # (BW, P_p) bf16, aligned
        for kx in range(3):
            dx = kx - 1
            # Matmul first, then shift/mask the f32 RESULT — identical to
            # shifting the input tap, but keeps pltpu.roll on f32 and lets the
            # XLU rotate interleave with the next MXU push.
            contrib = jnp.dot(slab, w2_ref[pl.ds(k * P_p, P_p), :],
                              preferred_element_type=jnp.float32)
            if dx != 0:
                contrib = pltpu.roll(contrib, shift=(-dx) % BW, axis=0)
                contrib = jnp.where(ok_l if dx == -1 else ok_r, contrib, 0.0)
            acc = contrib if acc is None else acc + contrib
            k += 1
    h2 = jnp.maximum(acc + b2_ref[...], 0.0)

    # ---- conv3 (1x1) + bn3 ----
    h3 = jnp.dot(h2.astype(jnp.bfloat16), w3_ref[...],
                 preferred_element_type=jnp.float32) + b3_ref[...]

    # ---- residual add + relu (re-read x rows right before use) ----
    xr = x_ref[:, pl.ds(r0, TH), :, :].reshape(BW, Cout_p)    # f32
    out = jnp.maximum(h3 + xr, 0.0)
    o_ref[...] = out.reshape(1, TH, W, Cout_p).astype(o_ref.dtype)   # lane-dense store


def bottleneck_pallas(x, w1, s1, b1, w2, s2, b2, w3, s3, b3, *, block_h=8):
    # x: (N, H, W, Cin) float32, NHWC.  Weights in (in, out) / (kh, kw, in, out).
    N, H, W, Cin = x.shape
    P = w1.shape[1]
    Cout = w3.shape[1]
    assert Cin == Cout, "downsample=None requires inplanes == planes*expansion"
    assert H % block_h == 0 and W % 8 == 0

    Cin_p, P_p, Cout_p = _pad_to_lane(Cin), _pad_to_lane(P), _pad_to_lane(Cout)
    TH = block_h
    BW = TH * W

    # Fold BN (inference / running stats) into the bias-free conv weights.
    w1f = w1 * s1.reshape(1, -1)
    w2f = w2 * s2.reshape(1, 1, 1, -1)
    w3f = w3 * s3.reshape(1, -1)

    def pad2(w, r, c):
        if w.shape == (r, c):
            return w
        return jnp.zeros((r, c), w.dtype).at[:w.shape[0], :w.shape[1]].set(w)

    w1p = pad2(w1f, Cin_p, P_p).astype(jnp.bfloat16)
    if w2f.shape[2:] == (P_p, P_p):
        w2p = w2f
    else:
        w2p = jnp.zeros((3, 3, P_p, P_p), w2f.dtype).at[:, :, :P, :P].set(w2f)
    w2r = w2p.reshape(9 * P_p, P_p).astype(jnp.bfloat16)     # per-tap weight layout
    w3p = pad2(w3f, P_p, Cout_p).astype(jnp.bfloat16)

    def padb(b, c):
        b = b.reshape(1, -1).astype(jnp.float32)
        if b.shape[1] == c:
            return b
        return jnp.zeros((1, c), jnp.float32).at[:, :b.shape[1]].set(b)

    b1p, b2p, b3p = padb(b1, P_p), padb(b2, P_p), padb(b3, Cout_p)

    # Skip the host-side channel pad when Cin is already lane-aligned
    # (always true for standard ResNet bottleneck stages).
    if Cin_p == Cin:
        xp = x
    else:
        xp = jnp.zeros((N, H, W, Cin_p), x.dtype).at[..., :Cin].set(x)

    grid = (N, H // TH)
    const = lambda shape: pl.BlockSpec(shape, lambda n, h: (0,) * len(shape))

    # Explicit scoped-VMEM budget: resident x block (x2 buffers), weights (x2),
    # output block (x2), bf16 halo scratch, plus in-kernel temporaries.
    x_bytes = H * W * Cin_p * 4
    w_bytes = (Cin_p * P_p + 9 * P_p * P_p + P_p * Cout_p) * 2 + (2 * P_p + Cout_p) * 4
    out_bytes = TH * W * Cout_p * 4
    scr_bytes = (TH + 2) * W * P_p * 2
    tmp_bytes = 10 * BW * max(Cin_p, P_p, Cout_p) * 4
    vmem_limit = 2 * x_bytes + 2 * w_bytes + 2 * out_bytes + scr_bytes + tmp_bytes
    vmem_limit = int(min(max(vmem_limit + (4 << 20), 32 << 20), 64 << 20))

    out = pl.pallas_call(
        bottleneck_kernel,
        out_shape=jax.ShapeDtypeStruct((N, H, W, Cout_p), jnp.float32),
        grid_spec=pltpu.PrefetchScalarGridSpec(
            num_scalar_prefetch=0,
            grid=grid,
            in_specs=[
                # full image is VMEM-resident (revisited) across the H grid
                # axis; halo rows for conv2 are read from it directly.
                pl.BlockSpec((1, H, W, Cin_p), lambda n, h: (n, 0, 0, 0)),
                const((Cin_p, P_p)), const((1, P_p)),
                const((9 * P_p, P_p)), const((1, P_p)),
                const((P_p, Cout_p)), const((1, Cout_p)),
            ],
            out_specs=pl.BlockSpec((1, TH, W, Cout_p),
                                   lambda n, h: (n, h, 0, 0)),
            scratch_shapes=[pltpu.VMEM(((TH + 2) * W, P_p), jnp.bfloat16)],
        ),
        compiler_params=pltpu.CompilerParams(
            # Per-block conv1 with halo -> no cross-step state, so both grid
            # axes are parallel (dual TensorCore on v7x even for small N).
            dimension_semantics=("parallel", "parallel"),
            vmem_limit_bytes=vmem_limit,
        ),
    )(xp, w1p, b1p, w2r, b2p, w3p, b3p)
    return out if Cout_p == Cout else out[..., :Cout]


def fold_bn(gamma, beta, mean, var, eps=1e-5):
    scale = gamma / jnp.sqrt(var + eps)
    bias = beta - mean * scale
    return scale, bias


def reference_jax(x, w1, s1, b1, w2, s2, b2, w3, s3, b3):
    # pure-JAX NHWC reference (f32) for validation
    dn = lax.conv_dimension_numbers(x.shape, (1, 1, 1, 1), ("NHWC", "HWIO", "NHWC"))
    h = lax.conv_general_dilated(x, w1.reshape(1, 1, *w1.shape), (1, 1), "VALID",
                                 dimension_numbers=dn)
    h = jnp.maximum(h * s1.reshape(1, 1, 1, -1) + b1.reshape(1, 1, 1, -1), 0.0)
    h = lax.conv_general_dilated(h, w2, (1, 1), ((1, 1), (1, 1)),
                                 dimension_numbers=dn)
    h = jnp.maximum(h * s2.reshape(1, 1, 1, -1) + b2.reshape(1, 1, 1, -1), 0.0)
    h = lax.conv_general_dilated(h, w3.reshape(1, 1, *w3.shape), (1, 1), "VALID",
                                 dimension_numbers=dn)
    h = h * s3.reshape(1, 1, 1, -1) + b3.reshape(1, 1, 1, -1)
    return jnp.maximum(h + x, 0.0)


if __name__ == "__main__":
    key = jax.random.PRNGKey(0)
    # inplanes = planes * expansion (required since downsample=None)
    planes, expansion = 4, 4
    inplanes = planes * expansion            # 16
    N, H, W = 2, 16, 16

    ks = jax.random.split(key, 16)
    x = jax.random.normal(ks[0], (N, H, W, inplanes), jnp.float32)

    # conv weights in kernel layout: (in, out) / (kh, kw, in, out)
    w1 = 0.1 * jax.random.normal(ks[1], (inplanes, planes), jnp.float32)
    w2 = 0.1 * jax.random.normal(ks[2], (3, 3, planes, planes), jnp.float32)
    w3 = 0.1 * jax.random.normal(ks[3], (planes, planes * expansion), jnp.float32)

    # BatchNorm parameters (inference / running stats), folded to scale+bias
    def bn_params(k, c):
        k1, k2, k3, k4 = jax.random.split(k, 4)
        gamma = 1.0 + 0.1 * jax.random.normal(k1, (c,), jnp.float32)
        beta = 0.1 * jax.random.normal(k2, (c,), jnp.float32)
        mean = 0.1 * jax.random.normal(k3, (c,), jnp.float32)
        var = jnp.abs(1.0 + 0.1 * jax.random.normal(k4, (c,), jnp.float32))
        return fold_bn(gamma, beta, mean, var)

    s1, b1 = bn_params(ks[4], planes)
    s2, b2 = bn_params(ks[5], planes)
    s3, b3 = bn_params(ks[6], planes * expansion)

    out = bottleneck_pallas(x, w1, s1, b1, w2, s2, b2, w3, s3, b3, block_h=8)
    out = jax.block_until_ready(out)

    ref = reference_jax(x, w1, s1, b1, w2, s2, b2, w3, s3, b3)
    assert out.shape == (N, H, W, inplanes)
    # bf16 matmul operands with f32 accumulation -> loose but tight-enough tolerance
    assert jnp.allclose(out, ref, atol=2e-2, rtol=2e-2), "mismatch vs JAX reference"

    print("KERNEL_OK")
</pallas_src>

<mosaic_0001>
module attributes {stable_mosaic.version = 11 : i64} {
  func.func @bottleneck_kernel(%arg0: i32, %arg1: i32, %arg2: memref<1x16x16x128xf32, #tpu.memory_space<vmem>>, %arg3: memref<128x128xbf16, #tpu.memory_space<vmem>>, %arg4: memref<1x128xf32, #tpu.memory_space<vmem>>, %arg5: memref<1152x128xbf16, #tpu.memory_space<vmem>>, %arg6: memref<1x128xf32, #tpu.memory_space<vmem>>, %arg7: memref<128x128xbf16, #tpu.memory_space<vmem>>, %arg8: memref<1x128xf32, #tpu.memory_space<vmem>>, %arg9: memref<1x8x16x128xf32, #tpu.memory_space<vmem>>, %arg10: memref<160x128xbf16, #tpu.memory_space<vmem>>) attributes {dimension_semantics = [#tpu.dimension_semantics<parallel>, #tpu.dimension_semantics<parallel>], iteration_bounds = array<i64: 2, 2>, scalar_prefetch = 0 : i64, scratch_operands = 1 : i64, tpu.core_type = #tpu.core_type<tc>, window_params = [{transform_indices = @transform_0, window_bounds = array<i64: 1, 16, 16, 128>}, {pipeline_mode = #tpu.pipeline_mode<synchronous>, transform_indices = @transform_1, window_bounds = array<i64: 128, 128>}, {pipeline_mode = #tpu.pipeline_mode<synchronous>, transform_indices = @transform_2, window_bounds = array<i64: 1, 128>}, {pipeline_mode = #tpu.pipeline_mode<synchronous>, transform_indices = @transform_3, window_bounds = array<i64: 1152, 128>}, {pipeline_mode = #tpu.pipeline_mode<synchronous>, transform_indices = @transform_4, window_bounds = array<i64: 1, 128>}, {pipeline_mode = #tpu.pipeline_mode<synchronous>, transform_indices = @transform_5, window_bounds = array<i64: 128, 128>}, {pipeline_mode = #tpu.pipeline_mode<synchronous>, transform_indices = @transform_6, window_bounds = array<i64: 1, 128>}, {transform_indices = @transform_7, window_bounds = array<i64: 1, 8, 16, 128>}]} {
    %c8_i32 = arith.constant 8 : i32
    %0 = arith.muli %arg1, %c8_i32 : i32
    %c0 = arith.constant 0 : index
    %c0_0 = arith.constant 0 : index
    %1 = vector.load %arg3[%c0, %c0_0] : memref<128x128xbf16, #tpu.memory_space<vmem>>, vector<128x128xbf16>
    %c0_1 = arith.constant 0 : index
    %c0_2 = arith.constant 0 : index
    %2 = vector.load %arg4[%c0_1, %c0_2] : memref<1x128xf32, #tpu.memory_space<vmem>>, vector<1x128xf32>
    %c0_3 = arith.constant 0 : index
    %3 = arith.index_cast %0 : i32 to index
    %c0_4 = arith.constant 0 : index
    %c0_5 = arith.constant 0 : index
    %4 = vector.load %arg2[%c0_3, %3, %c0_4, %c0_5] : memref<1x16x16x128xf32, #tpu.memory_space<vmem>>, vector<1x8x16x128xf32>
    %5 = vector.shape_cast %4 : vector<1x8x16x128xf32> to vector<128x128xf32>
    %6 = arith.truncf %5 : vector<128x128xf32> to vector<128x128xbf16>
    %cst = arith.constant dense<0.000000e+00> : vector<128x128xf32>
    %7 = tpu.matmul %6, %1, %cst {dimension_numbers = #tpu.dot_dimension_numbers<[1], [0], [0], [1], [0, 0, 1, 1], [], []>} : vector<128x128xbf16>, vector<128x128xbf16>, vector<128x128xf32> -> vector<128x128xf32>
    %8 = vector.broadcast %2 : vector<1x128xf32> to vector<128x128xf32>
    %9 = arith.addf %7, %8 : vector<128x128xf32>
    %cst_6 = arith.constant 0.000000e+00 : f32
    %10 = vector.broadcast %cst_6 : f32 to vector<128x128xf32>
    %11 = arith.maximumf %9, %10 : vector<128x128xf32>
    %12 = arith.truncf %11 : vector<128x128xf32> to vector<128x128xbf16>
    %c16 = arith.constant 16 : index
    %c0_7 = arith.constant 0 : index
    %13 = vector.load %arg10[%c16, %c0_7] : memref<160x128xbf16, #tpu.memory_space<vmem>>, vector<128x128xbf16>
    tpu.vector_store %arg10[%c16, %c0_7], %12 {strides = array<i32>} : memref<160x128xbf16, #tpu.memory_space<vmem>>, vector<128x128xbf16>,
    %c0_i32 = arith.constant 0 : i32
    %14 = arith.cmpi sgt, %0, %c0_i32 : i32
    %15 = arith.extui %14 : i1 to i32
    %c0_i32_8 = arith.constant 0 : i32
    %16 = arith.cmpi ne, %15, %c0_i32_8 : i32
    scf.if %16 {
      %c1_i32_67 = arith.constant 1 : i32
      %112 = arith.subi %0, %c1_i32_67 : i32
      %c0_68 = arith.constant 0 : index
      %113 = arith.index_cast %112 : i32 to index
      %c0_69 = arith.constant 0 : index
      %c0_70 = arith.constant 0 : index
      %114 = vector.load %arg2[%c0_68, %113, %c0_69, %c0_70] : memref<1x16x16x128xf32, #tpu.memory_space<vmem>>, vector<1x1x16x128xf32>
      %115 = vector.shape_cast %114 : vector<1x1x16x128xf32> to vector<16x128xf32>
      %116 = arith.truncf %115 : vector<16x128xf32> to vector<16x128xbf16>
      %cst_71 = arith.constant dense<0.000000e+00> : vector<16x128xf32>
      %117 = tpu.matmul %116, %1, %cst_71 {dimension_numbers = #tpu.dot_dimension_numbers<[1], [0], [0], [1], [0, 0, 1, 1], [], []>} : vector<16x128xbf16>, vector<128x128xbf16>, vector<16x128xf32> -> vector<16x128xf32>
      %118 = vector.broadcast %2 : vector<1x128xf32> to vector<16x128xf32>
      %119 = arith.addf %117, %118 : vector<16x128xf32>
      %cst_72 = arith.constant 0.000000e+00 : f32
      %120 = vector.broadcast %cst_72 : f32 to vector<16x128xf32>
      %121 = arith.maximumf %119, %120 : vector<16x128xf32>
      %122 = arith.truncf %121 : vector<16x128xf32> to vector<16x128xbf16>
      %c0_73 = arith.constant 0 : index
      %c0_74 = arith.constant 0 : index
      %123 = vector.load %arg10[%c0_73, %c0_74] : memref<160x128xbf16, #tpu.memory_space<vmem>>, vector<16x128xbf16>
      tpu.vector_store %arg10[%c0_73, %c0_74], %122 {strides = array<i32>} : memref<160x128xbf16, #tpu.memory_space<vmem>>, vector<16x128xbf16>,
    } else {
    }
    %c0_i32_9 = arith.constant 0 : i32
    %17 = arith.cmpi eq, %0, %c0_i32_9 : i32
    %18 = arith.extui %17 : i1 to i32
    %c0_i32_10 = arith.constant 0 : i32
    %19 = arith.cmpi ne, %18, %c0_i32_10 : i32
    scf.if %19 {
      %cst_67 = arith.constant 0.000000e+00 : bf16
      %112 = vector.broadcast %cst_67 : bf16 to vector<16x128xbf16>
      %c0_68 = arith.constant 0 : index
      %c0_69 = arith.constant 0 : index
      %113 = vector.load %arg10[%c0_68, %c0_69] : memref<160x128xbf16, #tpu.memory_space<vmem>>, vector<16x128xbf16>
      tpu.vector_store %arg10[%c0_68, %c0_69], %112 {strides = array<i32>} : memref<160x128xbf16, #tpu.memory_space<vmem>>, vector<16x128xbf16>,
    } else {
    }
    %c8_i32_11 = arith.constant 8 : i32
    %20 = arith.addi %0, %c8_i32_11 : i32
    %c16_i32 = arith.constant 16 : i32
    %21 = arith.cmpi slt, %20, %c16_i32 : i32
    %22 = arith.extui %21 : i1 to i32
    %c0_i32_12 = arith.constant 0 : i32
    %23 = arith.cmpi ne, %22, %c0_i32_12 : i32
    scf.if %23 {
      %c8_i32_67 = arith.constant 8 : i32
      %112 = arith.addi %0, %c8_i32_67 : i32
      %c0_68 = arith.constant 0 : index
      %113 = arith.index_cast %112 : i32 to index
      %c0_69 = arith.constant 0 : index
      %c0_70 = arith.constant 0 : index
      %114 = vector.load %arg2[%c0_68, %113, %c0_69, %c0_70] : memref<1x16x16x128xf32, #tpu.memory_space<vmem>>, vector<1x1x16x128xf32>
      %115 = vector.shape_cast %114 : vector<1x1x16x128xf32> to vector<16x128xf32>
      %116 = arith.truncf %115 : vector<16x128xf32> to vector<16x128xbf16>
      %cst_71 = arith.constant dense<0.000000e+00> : vector<16x128xf32>
      %117 = tpu.matmul %116, %1, %cst_71 {dimension_numbers = #tpu.dot_dimension_numbers<[1], [0], [0], [1], [0, 0, 1, 1], [], []>} : vector<16x128xbf16>, vector<128x128xbf16>, vector<16x128xf32> -> vector<16x128xf32>
      %118 = vector.broadcast %2 : vector<1x128xf32> to vector<16x128xf32>
      %119 = arith.addf %117, %118 : vector<16x128xf32>
      %cst_72 = arith.constant 0.000000e+00 : f32
      %120 = vector.broadcast %cst_72 : f32 to vector<16x128xf32>
      %121 = arith.maximumf %119, %120 : vector<16x128xf32>
      %122 = arith.truncf %121 : vector<16x128xf32> to vector<16x128xbf16>
      %c144 = arith.constant 144 : index
      %c0_73 = arith.constant 0 : index
      %123 = vector.load %arg10[%c144, %c0_73] : memref<160x128xbf16, #tpu.memory_space<vmem>>, vector<16x128xbf16>
      tpu.vector_store %arg10[%c144, %c0_73], %122 {strides = array<i32>} : memref<160x128xbf16, #tpu.memory_space<vmem>>, vector<16x128xbf16>,
    } else {
    }
    %c8_i32_13 = arith.constant 8 : i32
    %24 = arith.addi %0, %c8_i32_13 : i32
    %c16_i32_14 = arith.constant 16 : i32
    %25 = arith.cmpi sge, %24, %c16_i32_14 : i32
    %26 = arith.extui %25 : i1 to i32
    %c0_i32_15 = arith.constant 0 : i32
    %27 = arith.cmpi ne, %26, %c0_i32_15 : i32
    scf.if %27 {
      %cst_67 = arith.constant 0.000000e+00 : bf16
      %112 = vector.broadcast %cst_67 : bf16 to vector<16x128xbf16>
      %c144 = arith.constant 144 : index
      %c0_68 = arith.constant 0 : index
      %113 = vector.load %arg10[%c144, %c0_68] : memref<160x128xbf16, #tpu.memory_space<vmem>>, vector<16x128xbf16>
      tpu.vector_store %arg10[%c144, %c0_68], %112 {strides = array<i32>} : memref<160x128xbf16, #tpu.memory_space<vmem>>, vector<16x128xbf16>,
    } else {
    }
    %28 = tpu.iota {dimensions = array<i32: 1>} : vector<8x16x1xi32>
    %29 = vector.shape_cast %28 : vector<8x16x1xi32> to vector<128x1xi32>
    %c1_i32 = arith.constant 1 : i32
    %30 = vector.broadcast %c1_i32 : i32 to vector<128x1xi32>
    %31 = arith.cmpi sge, %29, %30 : vector<128x1xi32>
    %c15_i32 = arith.constant 15 : i32
    %32 = vector.broadcast %c15_i32 : i32 to vector<128x1xi32>
    %33 = arith.cmpi slt, %29, %32 : vector<128x1xi32>
    %c0_16 = arith.constant 0 : index
    %c0_17 = arith.constant 0 : index
    %34 = vector.load %arg10[%c0_16, %c0_17] : memref<160x128xbf16, #tpu.memory_space<vmem>>, vector<128x128xbf16>
    %c0_18 = arith.constant 0 : index
    %c0_19 = arith.constant 0 : index
    %35 = vector.load %arg5[%c0_18, %c0_19] : memref<1152x128xbf16, #tpu.memory_space<vmem>>, vector<128x128xbf16>
    %cst_20 = arith.constant dense<0.000000e+00> : vector<128x128xf32>
    %36 = tpu.matmul %34, %35, %cst_20 {dimension_numbers = #tpu.dot_dimension_numbers<[1], [0], [0], [1], [0, 0, 1, 1], [], []>} : vector<128x128xbf16>, vector<128x128xbf16>, vector<128x128xf32> -> vector<128x128xf32>
    %c1_i32_21 = arith.constant 1 : i32
    %37 = tpu.dynamic_rotate %36 by %c1_i32_21 dim 0 : vector<128x128xf32>, i32 -> vector<128x128xf32>
    %cst_22 = arith.constant 0.000000e+00 : f32
    %38 = vector.shape_cast %31 : vector<128x1xi1> to vector<128x1xi1>
    %39 = vector.broadcast %38 : vector<128x1xi1> to vector<128x128xi1>
    %40 = vector.broadcast %cst_22 : f32 to vector<128x128xf32>
    %41 = arith.select %39, %37, %40 : vector<128x128xi1>, vector<128x128xf32>
    %c128 = arith.constant 128 : index
    %c0_23 = arith.constant 0 : index
    %42 = vector.load %arg5[%c128, %c0_23] : memref<1152x128xbf16, #tpu.memory_space<vmem>>, vector<128x128xbf16>
    %cst_24 = arith.constant dense<0.000000e+00> : vector<128x128xf32>
    %43 = tpu.matmul %34, %42, %cst_24 {dimension_numbers = #tpu.dot_dimension_numbers<[1], [0], [0], [1], [0, 0, 1, 1], [], []>} : vector<128x128xbf16>, vector<128x128xbf16>, vector<128x128xf32> -> vector<128x128xf32>
    %44 = arith.addf %41, %43 : vector<128x128xf32>
    %c256 = arith.constant 256 : index
    %c0_25 = arith.constant 0 : index
    %45 = vector.load %arg5[%c256, %c0_25] : memref<1152x128xbf16, #tpu.memory_space<vmem>>, vector<128x128xbf16>
    %cst_26 = arith.constant dense<0.000000e+00> : vector<128x128xf32>
    %46 = tpu.matmul %34, %45, %cst_26 {dimension_numbers = #tpu.dot_dimension_numbers<[1], [0], [0], [1], [0, 0, 1, 1], [], []>} : vector<128x128xbf16>, vector<128x128xbf16>, vector<128x128xf32> -> vector<128x128xf32>
    %c127_i32 = arith.constant 127 : i32
    %47 = tpu.dynamic_rotate %46 by %c127_i32 dim 0 : vector<128x128xf32>, i32 -> vector<128x128xf32>
    %cst_27 = arith.constant 0.000000e+00 : f32
    %48 = vector.shape_cast %33 : vector<128x1xi1> to vector<128x1xi1>
    %49 = vector.broadcast %48 : vector<128x1xi1> to vector<128x128xi1>
    %50 = vector.broadcast %cst_27 : f32 to vector<128x128xf32>
    %51 = arith.select %49, %47, %50 : vector<128x128xi1>, vector<128x128xf32>
    %52 = arith.addf %44, %51 : vector<128x128xf32>
    %c16_28 = arith.constant 16 : index
    %c0_29 = arith.constant 0 : index
    %53 = vector.load %arg10[%c16_28, %c0_29] : memref<160x128xbf16, #tpu.memory_space<vmem>>, vector<128x128xbf16>
    %c384 = arith.constant 384 : index
    %c0_30 = arith.constant 0 : index
    %54 = vector.load %arg5[%c384, %c0_30] : memref<1152x128xbf16, #tpu.memory_space<vmem>>, vector<128x128xbf16>
    %cst_31 = arith.constant dense<0.000000e+00> : vector<128x128xf32>
    %55 = tpu.matmul %53, %54, %cst_31 {dimension_numbers = #tpu.dot_dimension_numbers<[1], [0], [0], [1], [0, 0, 1, 1], [], []>} : vector<128x128xbf16>, vector<128x128xbf16>, vector<128x128xf32> -> vector<128x128xf32>
    %c1_i32_32 = arith.constant 1 : i32
    %56 = tpu.dynamic_rotate %55 by %c1_i32_32 dim 0 : vector<128x128xf32>, i32 -> vector<128x128xf32>
    %cst_33 = arith.constant 0.000000e+00 : f32
    %57 = vector.shape_cast %31 : vector<128x1xi1> to vector<128x1xi1>
    %58 = vector.broadcast %57 : vector<128x1xi1> to vector<128x128xi1>
    %59 = vector.broadcast %cst_33 : f32 to vector<128x128xf32>
    %60 = arith.select %58, %56, %59 : vector<128x128xi1>, vector<128x128xf32>
    %61 = arith.addf %52, %60 : vector<128x128xf32>
    %c512 = arith.constant 512 : index
    %c0_34 = arith.constant 0 : index
    %62 = vector.load %arg5[%c512, %c0_34] : memref<1152x128xbf16, #tpu.memory_space<vmem>>, vector<128x128xbf16>
    %cst_35 = arith.constant dense<0.000000e+00> : vector<128x128xf32>
    %63 = tpu.matmul %53, %62, %cst_35 {dimension_numbers = #tpu.dot_dimension_numbers<[1], [0], [0], [1], [0, 0, 1, 1], [], []>} : vector<128x128xbf16>, vector<128x128xbf16>, vector<128x128xf32> -> vector<128x128xf32>
    %64 = arith.addf %61, %63 : vector<128x128xf32>
    %c640 = arith.constant 640 : index
    %c0_36 = arith.constant 0 : index
    %65 = vector.load %arg5[%c640, %c0_36] : memref<1152x128xbf16, #tpu.memory_space<vmem>>, vector<128x128xbf16>
    %cst_37 = arith.constant dense<0.000000e+00> : vector<128x128xf32>
    %66 = tpu.matmul %53, %65, %cst_37 {dimension_numbers = #tpu.dot_dimension_numbers<[1], [0], [0], [1], [0, 0, 1, 1], [], []>} : vector<128x128xbf16>, vector<128x128xbf16>, vector<128x128xf32> -> vector<128x128xf32>
    %c127_i32_38 = arith.constant 127 : i32
    %67 = tpu.dynamic_rotate %66 by %c127_i32_38 dim 0 : vector<128x128xf32>, i32 -> vector<128x128xf32>
    %cst_39 = arith.constant 0.000000e+00 : f32
    %68 = vector.shape_cast %33 : vector<128x1xi1> to vector<128x1xi1>
    %69 = vector.broadcast %68 : vector<128x1xi1> to vector<128x128xi1>
    %70 = vector.broadcast %cst_39 : f32 to vector<128x128xf32>
    %71 = arith.select %69, %67, %70 : vector<128x128xi1>, vector<128x128xf32>
    %72 = arith.addf %64, %71 : vector<128x128xf32>
    %c32 = arith.constant 32 : index
    %c0_40 = arith.constant 0 : index
    %73 = vector.load %arg10[%c32, %c0_40] : memref<160x128xbf16, #tpu.memory_space<vmem>>, vector<128x128xbf16>
    %c768 = arith.constant 768 : index
    %c0_41 = arith.constant 0 : index
    %74 = vector.load %arg5[%c768, %c0_41] : memref<1152x128xbf16, #tpu.memory_space<vmem>>, vector<128x128xbf16>
    %cst_42 = arith.constant dense<0.000000e+00> : vector<128x128xf32>
    %75 = tpu.matmul %73, %74, %cst_42 {dimension_numbers = #tpu.dot_dimension_numbers<[1], [0], [0], [1], [0, 0, 1, 1], [], []>} : vector<128x128xbf16>, vector<128x128xbf16>, vector<128x128xf32> -> vector<128x128xf32>
    %c1_i32_43 = arith.constant 1 : i32
    %76 = tpu.dynamic_rotate %75 by %c1_i32_43 dim 0 : vector<128x128xf32>, i32 -> vector<128x128xf32>
    %cst_44 = arith.constant 0.000000e+00 : f32
    %77 = vector.shape_cast %31 : vector<128x1xi1> to vector<128x1xi1>
    %78 = vector.broadcast %77 : vector<128x1xi1> to vector<128x128xi1>
    %79 = vector.broadcast %cst_44 : f32 to vector<128x128xf32>
    %80 = arith.select %78, %76, %79 : vector<128x128xi1>, vector<128x128xf32>
    %81 = arith.addf %72, %80 : vector<128x128xf32>
    %c896 = arith.constant 896 : index
    %c0_45 = arith.constant 0 : index
    %82 = vector.load %arg5[%c896, %c0_45] : memref<1152x128xbf16, #tpu.memory_space<vmem>>, vector<128x128xbf16>
    %cst_46 = arith.constant dense<0.000000e+00> : vector<128x128xf32>
    %83 = tpu.matmul %73, %82, %cst_46 {dimension_numbers = #tpu.dot_dimension_numbers<[1], [0], [0], [1], [0, 0, 1, 1], [], []>} : vector<128x128xbf16>, vector<128x128xbf16>, vector<128x128xf32> -> vector<128x128xf32>
    %84 = arith.addf %81, %83 : vector<128x128xf32>
    %c1024 = arith.constant 1024 : index
    %c0_47 = arith.constant 0 : index
    %85 = vector.load %arg5[%c1024, %c0_47] : memref<1152x128xbf16, #tpu.memory_space<vmem>>, vector<128x128xbf16>
    %cst_48 = arith.constant dense<0.000000e+00> : vector<128x128xf32>
    %86 = tpu.matmul %73, %85, %cst_48 {dimension_numbers = #tpu.dot_dimension_numbers<[1], [0], [0], [1], [0, 0, 1, 1], [], []>} : vector<128x128xbf16>, vector<128x128xbf16>, vector<128x128xf32> -> vector<128x128xf32>
    %c127_i32_49 = arith.constant 127 : i32
    %87 = tpu.dynamic_rotate %86 by %c127_i32_49 dim 0 : vector<128x128xf32>, i32 -> vector<128x128xf32>
    %cst_50 = arith.constant 0.000000e+00 : f32
    %88 = vector.shape_cast %33 : vector<128x1xi1> to vector<128x1xi1>
    %89 = vector.broadcast %88 : vector<128x1xi1> to vector<128x128xi1>
    %90 = vector.broadcast %cst_50 : f32 to vector<128x128xf32>
    %91 = arith.select %89, %87, %90 : vector<128x128xi1>, vector<128x128xf32>
    %92 = arith.addf %84, %91 : vector<128x128xf32>
    %c0_51 = arith.constant 0 : index
    %c0_52 = arith.constant 0 : index
    %93 = vector.load %arg6[%c0_51, %c0_52] : memref<1x128xf32, #tpu.memory_space<vmem>>, vector<1x128xf32>
    %94 = vector.broadcast %93 : vector<1x128xf32> to vector<128x128xf32>
    %95 = arith.addf %92, %94 : vector<128x128xf32>
    %cst_53 = arith.constant 0.000000e+00 : f32
    %96 = vector.broadcast %cst_53 : f32 to vector<128x128xf32>
    %97 = arith.maximumf %95, %96 : vector<128x128xf32>
    %98 = arith.truncf %97 : vector<128x128xf32> to vector<128x128xbf16>
    %c0_54 = arith.constant 0 : index
    %c0_55 = arith.constant 0 : index
    %99 = vector.load %arg7[%c0_54, %c0_55] : memref<128x128xbf16, #tpu.memory_space<vmem>>, vector<128x128xbf16>
    %cst_56 = arith.constant dense<0.000000e+00> : vector<128x128xf32>
    %100 = tpu.matmul %98, %99, %cst_56 {dimension_numbers = #tpu.dot_dimension_numbers<[1], [0], [0], [1], [0, 0, 1, 1], [], []>} : vector<128x128xbf16>, vector<128x128xbf16>, vector<128x128xf32> -> vector<128x128xf32>
    %c0_57 = arith.constant 0 : index
    %c0_58 = arith.constant 0 : index
    %101 = vector.load %arg8[%c0_57, %c0_58] : memref<1x128xf32, #tpu.memory_space<vmem>>, vector<1x128xf32>
    %102 = vector.broadcast %101 : vector<1x128xf32> to vector<128x128xf32>
    %103 = arith.addf %100, %102 : vector<128x128xf32>
    %c0_59 = arith.constant 0 : index
    %104 = arith.index_cast %0 : i32 to index
    %c0_60 = arith.constant 0 : index
    %c0_61 = arith.constant 0 : index
    %105 = vector.load %arg2[%c0_59, %104, %c0_60, %c0_61] : memref<1x16x16x128xf32, #tpu.memory_space<vmem>>, vector<1x8x16x128xf32>
    %106 = vector.shape_cast %105 : vector<1x8x16x128xf32> to vector<128x128xf32>
    %107 = arith.addf %103, %106 : vector<128x128xf32>
    %cst_62 = arith.constant 0.000000e+00 : f32
    %108 = vector.broadcast %cst_62 : f32 to vector<128x128xf32>
    %109 = arith.maximumf %107, %108 : vector<128x128xf32>
    %110 = vector.shape_cast %109 : vector<128x128xf32> to vector<1x8x16x128xf32>
    %c0_63 = arith.constant 0 : index
    %c0_64 = arith.constant 0 : index
    %c0_65 = arith.constant 0 : index
    %c0_66 = arith.constant 0 : index
    %111 = vector.load %arg9[%c0_63, %c0_64, %c0_65, %c0_66] : memref<1x8x16x128xf32, #tpu.memory_space<vmem>>, vector<1x8x16x128xf32>
    tpu.vector_store %arg9[%c0_63, %c0_64, %c0_65, %c0_66], %110 {strides = array<i32>} : memref<1x8x16x128xf32, #tpu.memory_space<vmem>>, vector<1x8x16x128xf32>,
    return
  }
  func.func @transform_0(%arg0: i32, %arg1: i32) -> (i32, i32, i32, i32) {
    %c0_i32 = arith.constant 0 : i32
    %c0_i32_0 = arith.constant 0 : i32
    %c0_i32_1 = arith.constant 0 : i32
    %c0_i32_2 = arith.constant 0 : i32
    return %arg0, %c0_i32, %c0_i32_0, %c0_i32_1 : i32, i32, i32, i32
  }
  func.func @transform_1(%arg0: i32, %arg1: i32) -> (i32, i32) {
    %c0_i32 = arith.constant 0 : i32
    %c0_i32_0 = arith.constant 0 : i32
    %c0_i32_1 = arith.constant 0 : i32
    return %c0_i32, %c0_i32_0 : i32, i32
  }
  func.func @transform_2(%arg0: i32, %arg1: i32) -> (i32, i32) {
    %c0_i32 = arith.constant 0 : i32
    %c0_i32_0 = arith.constant 0 : i32
    %c0_i32_1 = arith.constant 0 : i32
    return %c0_i32, %c0_i32_0 : i32, i32
  }
  func.func @transform_3(%arg0: i32, %arg1: i32) -> (i32, i32) {
    %c0_i32 = arith.constant 0 : i32
    %c0_i32_0 = arith.constant 0 : i32
    %c0_i32_1 = arith.constant 0 : i32
    return %c0_i32, %c0_i32_0 : i32, i32
  }
  func.func @transform_4(%arg0: i32, %arg1: i32) -> (i32, i32) {
    %c0_i32 = arith.constant 0 : i32
    %c0_i32_0 = arith.constant 0 : i32
    %c0_i32_1 = arith.constant 0 : i32
    return %c0_i32, %c0_i32_0 : i32, i32
  }
  func.func @transform_5(%arg0: i32, %arg1: i32) -> (i32, i32) {
    %c0_i32 = arith.constant 0 : i32
    %c0_i32_0 = arith.constant 0 : i32
    %c0_i32_1 = arith.constant 0 : i32
    return %c0_i32, %c0_i32_0 : i32, i32
  }
  func.func @transform_6(%arg0: i32, %arg1: i32) -> (i32, i32) {
    %c0_i32 = arith.constant 0 : i32
    %c0_i32_0 = arith.constant 0 : i32
    %c0_i32_1 = arith.constant 0 : i32
    return %c0_i32, %c0_i32_0 : i32, i32
  }
  func.func @transform_7(%arg0: i32, %arg1: i32) -> (i32, i32, i32, i32) {
    %c0_i32 = arith.constant 0 : i32
    %c0_i32_0 = arith.constant 0 : i32
    %c0_i32_1 = arith.constant 0 : i32
    return %arg0, %arg1, %c0_i32, %c0_i32_0 : i32, i32, i32, i32
  }
}

</mosaic_0001>

<llo_original>
// kernel: tpu_custom_call.1
$region0: #{tpu_custom_call.1}
  #allocation0 [shape = 'u32[]', space=smem, size = 0x4, offset = 0x4, fixed_abs, tag = 'smem constant byte address 0x4 - core index']
  #allocation1 [shape = 'u32[144,128]{1,0:T(1,128)}', space=vmem, size = 0x12000, scoped, tag = 'internal scratch']
  #allocation2 [shape = 'bf16[160,128]{1,0:T(16,128)(2,1)}', space=vmem, size = 0xa000, scoped, tag = 'scratch operand']
  %s0 = inlined_call_operand.hbm [shape: f32[2,16,16,128], index: 0, kind: input, shape index: {}]
  %s1 = inlined_call_operand.hbm [shape: bf16[128,128], index: 1, kind: input, shape index: {}]
  %s2 = inlined_call_operand.vmem [shape: f32[1,128], index: 2, kind: input, shape index: {}]
  %s3 = inlined_call_operand.hbm [shape: bf16[1152,128], index: 3, kind: input, shape index: {}]
  %s4 = inlined_call_operand.vmem [shape: f32[1,128], index: 4, kind: input, shape index: {}]
  %s5 = inlined_call_operand.hbm [shape: bf16[128,128], index: 5, kind: input, shape index: {}]
  %s6 = inlined_call_operand.vmem [shape: f32[1,128], index: 6, kind: input, shape index: {}]
  %s7 = inlined_call_operand.hbm [shape: f32[2,16,16,128], index: 7, kind: output, shape index: {}]
  %s8 = sld [smem:[#allocation0]]
  $region93: #{tpu_custom_call.1} parent=0
    _
  %s10 = ssub.s32 1, %s8
  %s11 = scalar_select 0, %s10, %s8
  $region1: #{tpu_custom_call.1} parent=0
    #allocation3 [shape = 'u8[262144]{0}', space=vmem, size = 0x40000, scoped, tag = 'input window, operand 0']
    #allocation4 [shape = 's32[2]{0}', space=sflag, size = 0x8, scoped, tag = 'scoped memory for tpu_custom_call.1']
    #allocation5 [shape = 's32[2]{0}', space=sflag, size = 0x8, scoped, tag = 'scoped memory for tpu_custom_call.1']
    #allocation6 [shape = 'u8[32768]{0}', space=vmem, size = 0x8000, scoped, tag = 'input window, operand 1, single buffered']
    #allocation7 [shape = 's32[1]{0}', space=sflag, size = 0x4, scoped, tag = 'scoped memory for tpu_custom_call.1']
    #allocation8 [shape = 'u8[294912]{0}', space=vmem, size = 0x48000, scoped, tag = 'input window, operand 3, single buffered']
    #allocation9 [shape = 'u8[32768]{0}', space=vmem, size = 0x8000, scoped, tag = 'input window, operand 5, single buffered']
    #allocation10 [shape = 's32[1]{0}', space=sflag, size = 0x4, scoped, tag = 'scoped memory for tpu_custom_call.1']
    #allocation11 [shape = 'u8[131072]{0}', space=vmem, size = 0x20000, scoped, tag = 'output window, operand 0']
    %12 = vsyncpa [#allocation4], 0
    %s13 = scalar_lea.sflag [#allocation4], 1
    %14 = vsyncpa %s13, 0
    %15 = vsyncpa [#allocation7], 0
    %16 = vsyncpa [#allocation10], 0
    %17 = vsyncpa [#allocation5], 0
    %s18 = scalar_lea.sflag [#allocation5], 1
    %19 = vsyncpa %s18, 0
    loop: start=0, step=1, limit=6
    $region2: #{tpu_custom_call.1} parent=1 // loop_pre_header
      _
    $region3: #{tpu_custom_call.1} parent=1 // loop_header
      %s21 = sphi 0, %s25
      %p22 = scmp.ge.s32.totalorder %s21, 6
      %s28 = sphi 0, %s40
      %s29 = sphi 0, %s36
      %s30 = sphi 0, %s28
      %s31 = sphi 0, %s29
      %s32 = sphi 0, %s30
      %s33 = sphi 0, %s31
      %s43 = sphi 0, %s45
      %s46 = sphi 0, %s43
      %s47 = sphi 0, %s46
      %s63 = sphi 0, %s47
      %s67 = sphi 0, %s67
      %s69 = sphi 0, %s67
      %s70 = sphi 0, %s69
      %s84 = sphi 0, %s70
      %s88 = sphi 0, %s88
      %s90 = sphi 0, %s88
      %s91 = sphi 0, %s90
      %s105 = sphi 0, %s91
      %s109 = sphi 0, %s109
      %s111 = sphi 0, %s109
      %s112 = sphi 0, %s111
      %s126 = sphi 0, %s112
      %s130 = sphi 0, %s130
      %s132 = sphi 0, %s130
      %s133 = sphi 0, %s132
      %s147 = sphi 0, %s133
      %s151 = sphi 0, %s151
      %s153 = sphi 0, %s151
      %s154 = sphi 0, %s153
      %s168 = sphi 0, %s154
      %s172 = sphi 0, %s172
      %s174 = sphi 0, %s172
      %s175 = sphi 0, %s174
      %s189 = sphi 0, %s175
      %s197 = sphi 0, %s199
      %s200 = sphi 0, %s197
      %s201 = sphi 0, %s200
      %s217 = sphi 0, %s201
    $region4: #{tpu_custom_call.1} parent=1 // loop_header_branch
      %24 = sbr.rel (%p22) target = $region8
    $region5: #{tpu_custom_call.1} parent=1 // loop_body
      %s26 = ssub.s32 %s21, 1
      %s27 = ssub.s32 %s21, 2
      %s34 = sadd.s32 1, %s29
      %p35 = scmp.ge.s32.totalorder %s34, 2
      %s36 = scalar_select %p35, 0, %s34
      %s37 = sadd.s32 1, %s28
      %s38 = scalar_select %p35, %s37, %s28
      %p39 = scmp.ge.s32.totalorder %s38, 2
      %s40 = scalar_select %p39, 0, %s38
      %s41 = ssub.s32 %s28, %s40
      %p42 = scmp.eq.s32.totalorder %s41, 0
      %s44 = sadd.s32 %s43, 1
      %s45 = scalar_select %p42, %s43, %s44
      %p48 = pneg %p42
      %p49 = scmp.eq.s32.totalorder %s21, 3
      %p50 = por %p48, %p49
      %p51 = scmp.ne.s32.totalorder %s43, %s46
      %p52 = scmp.eq.s32.totalorder %s21, 0
      %p53 = por %p51, %p52
      %p54 = scmp.ne.s32.totalorder %s43, %s46
      %p55 = scmp.eq.s32.totalorder %s26, 3
      %p56 = por %p54, %p55
      %p57 = scmp.ne.s32.totalorder %s46, %s47
      %p58 = scmp.eq.s32.totalorder %s26, 0
      %p59 = por %p57, %p58
      %p60 = scmp.ne.s32.totalorder %s46, %s47
      %p61 = scmp.eq.s32.totalorder %s27, 3
      %p62 = por %p60, %p61
      %p64 = scmp.ne.s32.totalorder %s47, %s63
      %p65 = scmp.eq.s32.totalorder %s27, 0
      %p66 = por %p64, %p65
      %s68 = sadd.s32 %s67, 1
      %p71 = scmp.eq.s32.totalorder %s21, 3
      %p72 = scmp.ne.s32.totalorder %s67, %s69
      %p73 = scmp.eq.s32.totalorder %s21, 0
      %p74 = por %p72, %p73
      %p75 = scmp.ne.s32.totalorder %s67, %s69
      %p76 = scmp.eq.s32.totalorder %s26, 3
      %p77 = por %p75, %p76
      %p78 = scmp.ne.s32.totalorder %s69, %s70
      %p79 = scmp.eq.s32.totalorder %s26, 0
      %p80 = por %p78, %p79
      %p81 = scmp.ne.s32.totalorder %s69, %s70
      %p82 = scmp.eq.s32.totalorder %s27, 3
      %p83 = por %p81, %p82
      %p85 = scmp.ne.s32.totalorder %s70, %s84
      %p86 = scmp.eq.s32.totalorder %s27, 0
      %p87 = por %p85, %p86
      %s89 = sadd.s32 %s88, 1
      %p92 = scmp.eq.s32.totalorder %s21, 3
      %p93 = scmp.ne.s32.totalorder %s88, %s90
      %p94 = scmp.eq.s32.totalorder %s21, 0
      %p95 = por %p93, %p94
      %p96 = scmp.ne.s32.totalorder %s88, %s90
      %p97 = scmp.eq.s32.totalorder %s26, 3
      %p98 = por %p96, %p97
      %p99 = scmp.ne.s32.totalorder %s90, %s91
      %p100 = scmp.eq.s32.totalorder %s26, 0
      %p101 = por %p99, %p100
      %p102 = scmp.ne.s32.totalorder %s90, %s91
      %p103 = scmp.eq.s32.totalorder %s27, 3
      %p104 = por %p102, %p103
      %p106 = scmp.ne.s32.totalorder %s91, %s105
      %p107 = scmp.eq.s32.totalorder %s27, 0
      %p108 = por %p106, %p107
      %s110 = sadd.s32 %s109, 1
      %p113 = scmp.eq.s32.totalorder %s21, 3
      %p114 = scmp.ne.s32.totalorder %s109, %s111
      %p115 = scmp.eq.s32.totalorder %s21, 0
      %p116 = por %p114, %p115
      %p117 = scmp.ne.s32.totalorder %s109, %s111
      %p118 = scmp.eq.s32.totalorder %s26, 3
      %p119 = por %p117, %p118
      %p120 = scmp.ne.s32.totalorder %s111, %s112
      %p121 = scmp.eq.s32.totalorder %s26, 0
      %p122 = por %p120, %p121
      %p123 = scmp.ne.s32.totalorder %s111, %s112
      %p124 = scmp.eq.s32.totalorder %s27, 3
      %p125 = por %p123, %p124
      %p127 = scmp.ne.s32.totalorder %s112, %s126
      %p128 = scmp.eq.s32.totalorder %s27, 0
      %p129 = por %p127, %p128
      %s131 = sadd.s32 %s130, 1
      %p134 = scmp.eq.s32.totalorder %s21, 3
      %p135 = scmp.ne.s32.totalorder %s130, %s132
      %p136 = scmp.eq.s32.totalorder %s21, 0
      %p137 = por %p135, %p136
      %p138 = scmp.ne.s32.totalorder %s130, %s132
      %p139 = scmp.eq.s32.totalorder %s26, 3
      %p140 = por %p138, %p139
      %p141 = scmp.ne.s32.totalorder %s132, %s133
      %p142 = scmp.eq.s32.totalorder %s26, 0
      %p143 = por %p141, %p142
      %p144 = scmp.ne.s32.totalorder %s132, %s133
      %p145 = scmp.eq.s32.totalorder %s27, 3
      %p146 = por %p144, %p145
      %p148 = scmp.ne.s32.totalorder %s133, %s147
      %p149 = scmp.eq.s32.totalorder %s27, 0
      %p150 = por %p148, %p149
      %s152 = sadd.s32 %s151, 1
      %p155 = scmp.eq.s32.totalorder %s21, 3
      %p156 = scmp.ne.s32.totalorder %s151, %s153
      %p157 = scmp.eq.s32.totalorder %s21, 0
      %p158 = por %p156, %p157
      %p159 = scmp.ne.s32.totalorder %s151, %s153
      %p160 = scmp.eq.s32.totalorder %s26, 3
      %p161 = por %p159, %p160
      %p162 = scmp.ne.s32.totalorder %s153, %s154
      %p163 = scmp.eq.s32.totalorder %s26, 0
      %p164 = por %p162, %p163
      %p165 = scmp.ne.s32.totalorder %s153, %s154
      %p166 = scmp.eq.s32.totalorder %s27, 3
      %p167 = por %p165, %p166
      %p169 = scmp.ne.s32.totalorder %s154, %s168
      %p170 = scmp.eq.s32.totalorder %s27, 0
      %p171 = por %p169, %p170
      %s173 = sadd.s32 %s172, 1
      %p176 = scmp.eq.s32.totalorder %s21, 3
      %p177 = scmp.ne.s32.totalorder %s172, %s174
      %p178 = scmp.eq.s32.totalorder %s21, 0
      %p179 = por %p177, %p178
      %p180 = scmp.ne.s32.totalorder %s172, %s174
      %p181 = scmp.eq.s32.totalorder %s26, 3
      %p182 = por %p180, %p181
      %p183 = scmp.ne.s32.totalorder %s174, %s175
      %p184 = scmp.eq.s32.totalorder %s26, 0
      %p185 = por %p183, %p184
      %p186 = scmp.ne.s32.totalorder %s174, %s175
      %p187 = scmp.eq.s32.totalorder %s27, 3
      %p188 = por %p186, %p187
      %p190 = scmp.ne.s32.totalorder %s175, %s189
      %p191 = scmp.eq.s32.totalorder %s27, 0
      %p192 = por %p190, %p191
      %s193 = ssub.s32 %s28, %s40
      %s194 = ssub.s32 %s29, %s36
      %s195 = sor.u32 %s193, %s194
      %p196 = scmp.eq.s32.totalorder %s195, 0
      %s198 = sadd.s32 %s197, 1
      %s199 = scalar_select %p196, %s197, %s198
      %p202 = pneg %p196
      %p203 = scmp.eq.s32.totalorder %s21, 3
      %p204 = por %p202, %p203
      %p205 = scmp.ne.s32.totalorder %s197, %s200
      %p206 = scmp.eq.s32.totalorder %s21, 0
      %p207 = por %p205, %p206
      %p208 = scmp.ne.s32.totalorder %s197, %s200
      %p209 = scmp.eq.s32.totalorder %s26, 3
      %p210 = por %p208, %p209
      %p211 = scmp.ne.s32.totalorder %s200, %s201
      %p212 = scmp.eq.s32.totalorder %s26, 0
      %p213 = por %p211, %p212
      %p214 = scmp.ne.s32.totalorder %s200, %s201
      %p215 = scmp.eq.s32.totalorder %s27, 3
      %p216 = por %p214, %p215
      %p218 = scmp.ne.s32.totalorder %s201, %s217
      %p219 = scmp.eq.s32.totalorder %s27, 0
      %p220 = por %p218, %p219
      %p221 = scmp.le.s32.totalorder 1, %s21
      %p222 = scmp.lt.s32.totalorder %s21, 5
      %p223 = pnand %p221, %p222
      %p224 = pneg %p223
      // Predicated region
      $region9: #{tpu_custom_call.1} parent=5 // pred_check
        _
      $region10: #{tpu_custom_call.1} parent=5 // pred_check_branch
        %226 = sbr.rel (%p223) target = $region12
      $region11: #{tpu_custom_call.1} parent=5 // pred_region
        %s227 = ssub.s32 %s21, 1
        // Predicated region
        $region13: #{tpu_custom_call.1} parent=11 // pred_check
          %p228 = pneg %p80
        $region14: #{tpu_custom_call.1} parent=11 // pred_check_branch
          %230 = sbr.rel (%p228) target = $region16
        $region15: #{tpu_custom_call.1} parent=11 // pred_region
          %s232 = ssub.s32 1024, 1024
          %233 = vsyncadd [#allocation7], %s232
          %s234 = sshll.u32 [#allocation6], 4
          %s235 = int_to_ptr.vmem [resolvable:$true] %s234
          %240 = dma.hbm_to_vmem [thread:$0]  %s1, 1024, %s235, [#allocation7], 64, 64, 4
        $region16: #{tpu_custom_call.1} parent=11 // pred_fallthru
          _
        // Predicated region
        $region17: #{tpu_custom_call.1} parent=11 // pred_check
          %p241 = pneg %p101
        $region18: #{tpu_custom_call.1} parent=11 // pred_check_branch
          %243 = sbr.rel (%p241) target = $region20
        $region19: #{tpu_custom_call.1} parent=11 // pred_region
          _
        $region20: #{tpu_custom_call.1} parent=11 // pred_fallthru
          _
        // Predicated region
        $region21: #{tpu_custom_call.1} parent=11 // pred_check
          %p244 = pneg %p122
        $region22: #{tpu_custom_call.1} parent=11 // pred_check_branch
          %246 = sbr.rel (%p244) target = $region24
        $region23: #{tpu_custom_call.1} parent=11 // pred_region
          %s248 = ssub.s32 9216, 9216
          %249 = vsyncadd [#allocation7], %s248
          %s250 = sshll.u32 [#allocation8], 4
          %s251 = int_to_ptr.vmem [resolvable:$true] %s250
          %256 = dma.hbm_to_vmem [thread:$0]  %s3, 9216, %s251, [#allocation7], 64, 64, 4
        $region24: #{tpu_custom_call.1} parent=11 // pred_fallthru
          _
        // Predicated region
        $region25: #{tpu_custom_call.1} parent=11 // pred_check
          %p257 = pneg %p143
        $region26: #{tpu_custom_call.1} parent=11 // pred_check_branch
          %259 = sbr.rel (%p257) target = $region28
        $region27: #{tpu_custom_call.1} parent=11 // pred_region
          _
        $region28: #{tpu_custom_call.1} parent=11 // pred_fallthru
          _
        // Predicated region
        $region29: #{tpu_custom_call.1} parent=11 // pred_check
          %p260 = pneg %p164
        $region30: #{tpu_custom_call.1} parent=11 // pred_check_branch
          %262 = sbr.rel (%p260) target = $region32
        $region31: #{tpu_custom_call.1} parent=11 // pred_region
          %s264 = ssub.s32 1024, 1024
          %265 = vsyncadd [#allocation10], %s264
          %s266 = sshll.u32 [#allocation9], 4
          %s267 = int_to_ptr.vmem [resolvable:$true] %s266
          %272 = dma.hbm_to_vmem [thread:$0]  %s5, 1024, %s267, [#allocation10], 64, 64, 4
        $region32: #{tpu_custom_call.1} parent=11 // pred_fallthru
          _
        // Predicated region
        $region33: #{tpu_custom_call.1} parent=11 // pred_check
          %p273 = pneg %p185
        $region34: #{tpu_custom_call.1} parent=11 // pred_check_branch
          %275 = sbr.rel (%p273) target = $region36
        $region35: #{tpu_custom_call.1} parent=11 // pred_region
          _
        $region36: #{tpu_custom_call.1} parent=11 // pred_fallthru
          _
      $region12: #{tpu_custom_call.1} parent=5 // pred_fallthru
        _
      %p276 = scmp.lt.s32.totalorder %s21, 4
      // Predicated region
      $region37: #{tpu_custom_call.1} parent=5 // pred_check
        %p277 = pneg %p276
      $region38: #{tpu_custom_call.1} parent=5 // pred_check_branch
        %279 = sbr.rel (%p277) target = $region40
      $region39: #{tpu_custom_call.1} parent=5 // pred_region
        // Predicated region
        $region41: #{tpu_custom_call.1} parent=39 // pred_check
          %p280 = pneg %p53
        $region42: #{tpu_custom_call.1} parent=39 // pred_check_branch
          %282 = sbr.rel (%p280) target = $region44
        $region43: #{tpu_custom_call.1} parent=39 // pred_region
          %s283 = sand.u32 %s43, 1
          %s284 = scalar_lea.sflag [#allocation4], %s283
          %s285 = sand.u32 %s43, 1
          %s286 = smul.addr %s285, 256
          %s287 = scalar_lea.vmem [#allocation3], %s286
          %s289 = ssub.s32 4096, 4096
          %290 = vsyncadd %s284, %s289
          %s291 = smul.addr %s28, 32
          %s292 = smul.addr %s291, 128
          %s293 = scalar_lea.hbm %s0, %s292
          %s294 = sshll.u32 %s287, 4
          %s295 = int_to_ptr.vmem [resolvable:$true] %s294
          %300 = dma.hbm_to_vmem [thread:$0]  %s293, 4096, %s295, %s284, 128, 128, 8
        $region44: #{tpu_custom_call.1} parent=39 // pred_fallthru
          _
      $region40: #{tpu_custom_call.1} parent=5 // pred_fallthru
        _
      %p301 = scmp.le.s32.totalorder 1, %s21
      %p302 = scmp.lt.s32.totalorder %s21, 5
      %p303 = pnand %p301, %p302
      %p304 = pneg %p303
      // Predicated region
      $region45: #{tpu_custom_call.1} parent=5 // pred_check
        _
      $region46: #{tpu_custom_call.1} parent=5 // pred_check_branch
        %306 = sbr.rel (%p303) target = $region48
      $region47: #{tpu_custom_call.1} parent=5 // pred_region
        %s307 = ssub.s32 %s21, 1
        %s308 = sand.u32 %s46, 1
        %s309 = scalar_lea.sflag [#allocation4], %s308
        %s310 = sand.u32 %s46, 1
        %s311 = smul.addr %s310, 256
        %s312 = scalar_lea.vmem [#allocation3], %s311
        // Predicated region
        $region49: #{tpu_custom_call.1} parent=47 // pred_check
          %p313 = pneg %p59
        $region50: #{tpu_custom_call.1} parent=47 // pred_check_branch
          %315 = sbr.rel (%p313) target = $region52
        $region51: #{tpu_custom_call.1} parent=47 // pred_region
          %316 = dma.done %s309, 4096
        $region52: #{tpu_custom_call.1} parent=47 // pred_fallthru
          _
        // Predicated region
        $region53: #{tpu_custom_call.1} parent=47 // pred_check
          %p317 = pneg %p80
        $region54: #{tpu_custom_call.1} parent=47 // pred_check_branch
          %319 = sbr.rel (%p317) target = $region56
        $region55: #{tpu_custom_call.1} parent=47 // pred_region
          %320 = dma.done [#allocation7], 1024
        $region56: #{tpu_custom_call.1} parent=47 // pred_fallthru
          _
        // Predicated region
        $region57: #{tpu_custom_call.1} parent=47 // pred_check
          %p321 = pneg %p122
        $region58: #{tpu_custom_call.1} parent=47 // pred_check_branch
          %323 = sbr.rel (%p321) target = $region60
        $region59: #{tpu_custom_call.1} parent=47 // pred_region
          %324 = dma.done [#allocation7], 9216
        $region60: #{tpu_custom_call.1} parent=47 // pred_fallthru
          _
        // Predicated region
        $region61: #{tpu_custom_call.1} parent=47 // pred_check
          %p325 = pneg %p164
        $region62: #{tpu_custom_call.1} parent=47 // pred_check_branch
          %327 = sbr.rel (%p325) target = $region64
        $region63: #{tpu_custom_call.1} parent=47 // pred_region
          %328 = dma.done [#allocation10], 1024
        $region64: #{tpu_custom_call.1} parent=47 // pred_fallthru
          _
        %s329 = sand.u32 %s46, 1
        %s330 = scalar_lea.sflag [#allocation4], %s329
        %s331 = sand.u32 %s46, 1
        %s332 = smul.addr %s331, 256
        %s333 = scalar_lea.vmem [#allocation3], %s332
        %p334 = pneg %p59
        %p335 = pneg %p56
        %p336 = pneg %p80
        %p337 = pneg %p77
        %p338 = pneg %p101
        %p339 = pneg %p98
        %p340 = pneg %p122
        %p341 = pneg %p119
        %p342 = pneg %p143
        %p343 = pneg %p140
        %p344 = pneg %p164
        %p345 = pneg %p161
        %p346 = pneg %p185
        %p347 = pneg %p182
        %p348 = pneg %p213
        %p349 = pneg %p210
        %s350 = sand.u32 %s200, 1
        %s351 = scalar_lea.sflag [#allocation5], %s350
        %s352 = sand.u32 %s200, 1
        %s353 = smul.addr %s352, 128
        %s354 = scalar_lea.vmem [#allocation11], %s353
        %s355 = smul.u32 8, %s31
        %s357 = smul.u32 %s31, 8
        %v358 = vld [vmem:[#allocation6] sm:$0xf]
        %v359 = vld [vmem:[#allocation6 + $0x4] sm:$0xf]
        %v360 = vld [vmem:[#allocation6 + $0x8] sm:$0xf]
        %v361 = vld [vmem:[#allocation6 + $0xc] sm:$0xf]
        %v362 = vld [vmem:[#allocation6 + $0x10] sm:$0xf]
        %v363 = vld [vmem:[#allocation6 + $0x14] sm:$0xf]
        %v364 = vld [vmem:[#allocation6 + $0x18] sm:$0xf]
        %v365 = vld [vmem:[#allocation6 + $0x1c] sm:$0xf]
        %v366 = vld [vmem:[#allocation6 + $0x20] sm:$0xf]
        %v367 = vld [vmem:[#allocation6 + $0x24] sm:$0xf]
        %v368 = vld [vmem:[#allocation6 + $0x28] sm:$0xf]
        %v369 = vld [vmem:[#allocation6 + $0x2c] sm:$0xf]
        %v370 = vld [vmem:[#allocation6 + $0x30] sm:$0xf]
        %v371 = vld [vmem:[#allocation6 + $0x34] sm:$0xf]
        %v372 = vld [vmem:[#allocation6 + $0x38] sm:$0xf]
        %v373 = vld [vmem:[#allocation6 + $0x3c] sm:$0xf]
        %v374 = vld [vmem:[%s2] sm:$0x1]
        %s375 = smul.u32 %s357, 16
        %s376 = scalar_lea.vmem %s312, %s375 [#allocation3]
        %v377 = vld [vmem:[%s376] sm:$0xff]
        %v378 = vld [vmem:[%s376 + $0x8] sm:$0xff]
        %v379 = vld [vmem:[%s376 + $0x10] sm:$0xff]
        %v380 = vld [vmem:[%s376 + $0x18] sm:$0xff]
        %v381 = vld [vmem:[%s376 + $0x20] sm:$0xff]
        %v382 = vld [vmem:[%s376 + $0x28] sm:$0xff]
        %v383 = vld [vmem:[%s376 + $0x30] sm:$0xff]
        %v384 = vld [vmem:[%s376 + $0x38] sm:$0xff]
        %v385 = vld [vmem:[%s376 + $0x40] sm:$0xff]
        %v386 = vld [vmem:[%s376 + $0x48] sm:$0xff]
        %v387 = vld [vmem:[%s376 + $0x50] sm:$0xff]
        %v388 = vld [vmem:[%s376 + $0x58] sm:$0xff]
        %v389 = vld [vmem:[%s376 + $0x60] sm:$0xff]
        %v390 = vld [vmem:[%s376 + $0x68] sm:$0xff]
        %v391 = vld [vmem:[%s376 + $0x70] sm:$0xff]
        %v392 = vld [vmem:[%s376 + $0x78] sm:$0xff]
        %v393 = vpack.c.bf16 %v378, %v377
        %v394 = vpack.c.bf16 %v380, %v379
        %v395 = vpack.c.bf16 %v382, %v381
        %v396 = vpack.c.bf16 %v384, %v383
        %v397 = vpack.c.bf16 %v386, %v385
        %v398 = vpack.c.bf16 %v388, %v387
        %v399 = vpack.c.bf16 %v390, %v389
        %v400 = vpack.c.bf16 %v392, %v391
        %v402 = vlaneseq
        %v403 = vshrl.u32 %v402, 7
        %v404 = vsub.s32 0, %v403
        %v405 = vrot.slane %v374, %v404
        %v423 = vunpack.c.l.b16 %v358
        %v424 = vunpack.c.l.b16 %v359
        %v425 = vunpack.c.l.b16 %v360
        %v426 = vunpack.c.l.b16 %v361
        %v427 = vunpack.c.l.b16 %v362
        %v428 = vunpack.c.l.b16 %v363
        %v429 = vunpack.c.l.b16 %v364
        %v430 = vunpack.c.l.b16 %v365
        %v431 = vunpack.c.l.b16 %v366
        %v432 = vunpack.c.l.b16 %v367
        %v433 = vunpack.c.l.b16 %v368
        %v434 = vunpack.c.l.b16 %v369
        %v435 = vunpack.c.l.b16 %v370
        %v436 = vunpack.c.l.b16 %v371
        %v437 = vunpack.c.l.b16 %v372
        %v438 = vunpack.c.l.b16 %v373
        %v439 = vpack.c.b16 %v424, %v423
        %v440 = vpack.c.b16 %v426, %v425
        %v441 = vpack.c.b16 %v428, %v427
        %v442 = vpack.c.b16 %v430, %v429
        %v443 = vpack.c.b16 %v432, %v431
        %v444 = vpack.c.b16 %v434, %v433
        %v445 = vpack.c.b16 %v436, %v435
        %v446 = vpack.c.b16 %v438, %v437
        %455 = vmatprep.subr.bf16.mxu0 0
        %456 = vmatpush1.bf16.msra.mxu0 %v439
        %457 = vmatprep.subr.bf16.mxu0 0
        %458 = vmatpush1.bf16.msra.mxu0 %v440
        %459 = vmatprep.subr.bf16.mxu0 0
        %460 = vmatpush1.bf16.msra.mxu0 %v441
        %461 = vmatprep.subr.bf16.mxu0 0
        %462 = vmatpush1.bf16.msra.mxu0 %v442
        %463 = vmatprep.subr.bf16.mxu0 0
        %464 = vmatpush1.bf16.msra.mxu0 %v443
        %465 = vmatprep.subr.bf16.mxu0 0
        %466 = vmatpush1.bf16.msra.mxu0 %v444
        %467 = vmatprep.subr.bf16.mxu0 0
        %468 = vmatpush1.bf16.msra.mxu0 %v445
        %469 = vmatprep.subr.bf16.mxu0 0
        %470 = vmatpush1.bf16.msra.mxu0 %v446
        %471 = vmatprep.subr.bf16.mxu0 0
        %472 = vmatpush1.bf16.msra.mxu0 0
        %473 = vmatprep.subr.bf16.mxu0 0
        %474 = vmatpush1.bf16.msra.mxu0 0
        %475 = vmatprep.subr.bf16.mxu0 0
        %476 = vmatpush1.bf16.msra.mxu0 0
        %477 = vmatprep.subr.bf16.mxu0 0
        %478 = vmatpush1.bf16.msra.mxu0 0
        %479 = vmatprep.subr.bf16.mxu0 0
        %480 = vmatpush1.bf16.msra.mxu0 0
        %481 = vmatprep.subr.bf16.mxu0 0
        %482 = vmatpush1.bf16.msra.mxu0 0
        %483 = vmatprep.subr.bf16.mxu0 0
        %484 = vmatpush1.bf16.msra.mxu0 0
        %485 = vmatprep.subr.bf16.mxu0 0
        %486 = vmatpush1.bf16.msra.mxu0 0
        %487 = vmatprep.mubr.bf16.mxu0 0
        %488 = vmatmul.mubr.bf16.gmra.mrb[0].mxu0 %v393
        %v489 = vpop.f32.mrb[0].mxu0
        %v490 = vadd.f32 %v405, %v489
        %v491 = vpop.f32.mrb[0].mxu0
        %v492 = vpop.f32.mrb[0].mxu0
        %v493 = vadd.f32 %v405, %v492
        %v494 = vpop.f32.mrb[0].mxu0
        %495 = vmatprep.mubr.bf16.mxu0 0
        %496 = vmatmul.mubr.bf16.gmra.mrb[0].mxu0 %v394
        %v497 = vpop.f32.mrb[0].mxu0
        %v498 = vadd.f32 %v405, %v497
        %v499 = vpop.f32.mrb[0].mxu0
        %v500 = vpop.f32.mrb[0].mxu0
        %v501 = vadd.f32 %v405, %v500
        %v502 = vpop.f32.mrb[0].mxu0
        %503 = vmatprep.mubr.bf16.mxu0 0
        %504 = vmatmul.mubr.bf16.gmra.mrb[0].mxu0 %v395
        %v505 = vpop.f32.mrb[0].mxu0
        %v506 = vadd.f32 %v405, %v505
        %v507 = vpop.f32.mrb[0].mxu0
        %v508 = vpop.f32.mrb[0].mxu0
        %v509 = vadd.f32 %v405, %v508
        %v510 = vpop.f32.mrb[0].mxu0
        %511 = vmatprep.mubr.bf16.mxu0 0
        %512 = vmatmul.mubr.bf16.gmra.mrb[0].mxu0 %v396
        %v513 = vpop.f32.mrb[0].mxu0
        %v514 = vadd.f32 %v405, %v513
        %v515 = vpop.f32.mrb[0].mxu0
        %v516 = vpop.f32.mrb[0].mxu0
        %v517 = vadd.f32 %v405, %v516
        %v518 = vpop.f32.mrb[0].mxu0
        %519 = vmatprep.mubr.bf16.mxu0 0
        %520 = vmatmul.mubr.bf16.gmra.mrb[0].mxu0 %v397
        %v521 = vpop.f32.mrb[0].mxu0
        %v522 = vadd.f32 %v405, %v521
        %v523 = vpop.f32.mrb[0].mxu0
        %v524 = vpop.f32.mrb[0].mxu0
        %v525 = vadd.f32 %v405, %v524
        %v526 = vpop.f32.mrb[0].mxu0
        %527 = vmatprep.mubr.bf16.mxu0 0
        %528 = vmatmul.mubr.bf16.gmra.mrb[0].mxu0 %v398
        %v529 = vpop.f32.mrb[0].mxu0
        %v530 = vadd.f32 %v405, %v529
        %v531 = vpop.f32.mrb[0].mxu0
        %v532 = vpop.f32.mrb[0].mxu0
        %v533 = vadd.f32 %v405, %v532
        %v534 = vpop.f32.mrb[0].mxu0
        %535 = vmatprep.mubr.bf16.mxu0 0
        %536 = vmatmul.mubr.bf16.gmra.mrb[0].mxu0 %v399
        %v537 = vpop.f32.mrb[0].mxu0
        %v538 = vadd.f32 %v405, %v537
        %v539 = vpop.f32.mrb[0].mxu0
        %v540 = vpop.f32.mrb[0].mxu0
        %v541 = vadd.f32 %v405, %v540
        %v542 = vpop.f32.mrb[0].mxu0
        %543 = vmatprep.mubr.bf16.mxu0 0
        %544 = vmatmul.mubr.bf16.gmra.mrb[0].mxu0 %v400
        %v545 = vpop.f32.mrb[0].mxu0
        %v546 = vadd.f32 %v405, %v545
        %v547 = vpop.f32.mrb[0].mxu0
        %v548 = vpop.f32.mrb[0].mxu0
        %v549 = vadd.f32 %v405, %v548
        %v550 = vpop.f32.mrb[0].mxu0
        %551 = vdwg.mxu0
        %v552 = vmax.f32 %v490, 0.0
        %v553 = vmax.f32 %v493, 0.0
        %v554 = vmax.f32 %v498, 0.0
        %v555 = vmax.f32 %v501, 0.0
        %v556 = vmax.f32 %v506, 0.0
        %v557 = vmax.f32 %v509, 0.0
        %v558 = vmax.f32 %v514, 0.0
        %v559 = vmax.f32 %v517, 0.0
        %v560 = vmax.f32 %v522, 0.0
        %v561 = vmax.f32 %v525, 0.0
        %v562 = vmax.f32 %v530, 0.0
        %v563 = vmax.f32 %v533, 0.0
        %v564 = vmax.f32 %v538, 0.0
        %v565 = vmax.f32 %v541, 0.0
        %v566 = vmax.f32 %v546, 0.0
        %v567 = vmax.f32 %v549, 0.0
        %v568 = vpack.c.bf16 %v553, %v552
        %v569 = vpack.c.bf16 %v555, %v554
        %v570 = vpack.c.bf16 %v557, %v556
        %v571 = vpack.c.bf16 %v559, %v558
        %v572 = vpack.c.bf16 %v561, %v560
        %v573 = vpack.c.bf16 %v563, %v562
        %v574 = vpack.c.bf16 %v565, %v564
        %v575 = vpack.c.bf16 %v567, %v566
        %576 = vst [vmem:[#allocation2 + $0x8] sm:$0xff] %v568
        %577 = vst [vmem:[#allocation2 + $0x10] sm:$0xff] %v569
        %578 = vst [vmem:[#allocation2 + $0x18] sm:$0xff] %v570
        %579 = vst [vmem:[#allocation2 + $0x20] sm:$0xff] %v571
        %580 = vst [vmem:[#allocation2 + $0x28] sm:$0xff] %v572
        %581 = vst [vmem:[#allocation2 + $0x30] sm:$0xff] %v573
        %582 = vst [vmem:[#allocation2 + $0x38] sm:$0xff] %v574
        %583 = vst [vmem:[#allocation2 + $0x40] sm:$0xff] %v575
        %p584 = scmp.gt.s32.totalorder %s357, 0
        // Predicated region
        $region65: #{tpu_custom_call.1} parent=47 // pred_check
          %p585 = pneg %p584
        $region66: #{tpu_custom_call.1} parent=47 // pred_check_branch
          %587 = sbr.rel (%p585) target = $region68
        $region67: #{tpu_custom_call.1} parent=47 // pred_region
          %s588 = ssub.s32 %s357, 1
          %s589 = smul.u32 %s588, 16
          %s590 = scalar_lea.vmem %s312, %s589 [#allocation3]
          %v591 = vld [vmem:[%s590] sm:$0xff]
          %v592 = vld [vmem:[%s590 + $0x8] sm:$0xff]
          %v593 = vpack.c.bf16 %v592, %v591
          %594 = vmatprep.subr.bf16.mxu0 0
          %595 = vmatpush1.bf16.msra.mxu0 %v439
          %596 = vmatprep.subr.bf16.mxu0 0
          %597 = vmatpush1.bf16.msra.mxu0 %v440
          %598 = vmatprep.subr.bf16.mxu0 0
          %599 = vmatpush1.bf16.msra.mxu0 %v441
          %600 = vmatprep.subr.bf16.mxu0 0
          %601 = vmatpush1.bf16.msra.mxu0 %v442
          %602 = vmatprep.subr.bf16.mxu0 0
          %603 = vmatpush1.bf16.msra.mxu0 %v443
          %604 = vmatprep.subr.bf16.mxu0 0
          %605 = vmatpush1.bf16.msra.mxu0 %v444
          %606 = vmatprep.subr.bf16.mxu0 0
          %607 = vmatpush1.bf16.msra.mxu0 %v445
          %608 = vmatprep.subr.bf16.mxu0 0
          %609 = vmatpush1.bf16.msra.mxu0 %v446
          %610 = vmatprep.subr.bf16.mxu0 0
          %611 = vmatpush1.bf16.msra.mxu0 0
          %612 = vmatprep.subr.bf16.mxu0 0
          %613 = vmatpush1.bf16.msra.mxu0 0
          %614 = vmatprep.subr.bf16.mxu0 0
          %615 = vmatpush1.bf16.msra.mxu0 0
          %616 = vmatprep.subr.bf16.mxu0 0
          %617 = vmatpush1.bf16.msra.mxu0 0
          %618 = vmatprep.subr.bf16.mxu0 0
          %619 = vmatpush1.bf16.msra.mxu0 0
          %620 = vmatprep.subr.bf16.mxu0 0
          %621 = vmatpush1.bf16.msra.mxu0 0
          %622 = vmatprep.subr.bf16.mxu0 0
          %623 = vmatpush1.bf16.msra.mxu0 0
          %624 = vmatprep.subr.bf16.mxu0 0
          %625 = vmatpush1.bf16.msra.mxu0 0
          %626 = vmatprep.mubr.bf16.mxu0 0
          %627 = vmatmul.mubr.bf16.gmra.mrb[0].mxu0 %v593
          %v628 = vpop.f32.mrb[0].mxu0
          %v629 = vadd.f32 %v405, %v628
          %v630 = vpop.f32.mrb[0].mxu0
          %v631 = vpop.f32.mrb[0].mxu0
          %v632 = vadd.f32 %v405, %v631
          %v633 = vpop.f32.mrb[0].mxu0
          %634 = vdwg.mxu0
          %v635 = vmax.f32 %v629, 0.0
          %v636 = vmax.f32 %v632, 0.0
          %v637 = vpack.c.bf16 %v636, %v635
          %638 = vst [vmem:[#allocation2] sm:$0xff] %v637
        $region68: #{tpu_custom_call.1} parent=47 // pred_fallthru
          _
        %p639 = scmp.eq.s32.totalorder %s357, 0
        // Predicated region
        $region69: #{tpu_custom_call.1} parent=47 // pred_check
          %p640 = pneg %p639
        $region70: #{tpu_custom_call.1} parent=47 // pred_check_branch
          %642 = sbr.rel (%p640) target = $region72
        $region71: #{tpu_custom_call.1} parent=47 // pred_region
          %643 = vst [vmem:[#allocation2] sm:$0xff] 0
        $region72: #{tpu_custom_call.1} parent=47 // pred_fallthru
          _
        %s644 = sadd.s32 %s357, 8
        %p645 = scmp.lt.s32.totalorder %s644, 16
        // Predicated region
        $region73: #{tpu_custom_call.1} parent=47 // pred_check
          %p646 = pneg %p645
        $region74: #{tpu_custom_call.1} parent=47 // pred_check_branch
          %648 = sbr.rel (%p646) target = $region76
        $region75: #{tpu_custom_call.1} parent=47 // pred_region
          %s649 = smul.u32 %s644, 16
          %s650 = scalar_lea.vmem %s312, %s649 [#allocation3]
          %v651 = vld [vmem:[%s650] sm:$0xff]
          %v652 = vld [vmem:[%s650 + $0x8] sm:$0xff]
          %v653 = vpack.c.bf16 %v652, %v651
          %654 = vmatprep.subr.bf16.mxu0 0
          %655 = vmatpush1.bf16.msra.mxu0 %v439
          %656 = vmatprep.subr.bf16.mxu0 0
          %657 = vmatpush1.bf16.msra.mxu0 %v440
          %658 = vmatprep.subr.bf16.mxu0 0
          %659 = vmatpush1.bf16.msra.mxu0 %v441
          %660 = vmatprep.subr.bf16.mxu0 0
          %661 = vmatpush1.bf16.msra.mxu0 %v442
          %662 = vmatprep.subr.bf16.mxu0 0
          %663 = vmatpush1.bf16.msra.mxu0 %v443
          %664 = vmatprep.subr.bf16.mxu0 0
          %665 = vmatpush1.bf16.msra.mxu0 %v444
          %666 = vmatprep.subr.bf16.mxu0 0
          %667 = vmatpush1.bf16.msra.mxu0 %v445
          %668 = vmatprep.subr.bf16.mxu0 0
          %669 = vmatpush1.bf16.msra.mxu0 %v446
          %670 = vmatprep.subr.bf16.mxu0 0
          %671 = vmatpush1.bf16.msra.mxu0 0
          %672 = vmatprep.subr.bf16.mxu0 0
          %673 = vmatpush1.bf16.msra.mxu0 0
          %674 = vmatprep.subr.bf16.mxu0 0
          %675 = vmatpush1.bf16.msra.mxu0 0
          %676 = vmatprep.subr.bf16.mxu0 0
          %677 = vmatpush1.bf16.msra.mxu0 0
          %678 = vmatprep.subr.bf16.mxu0 0
          %679 = vmatpush1.bf16.msra.mxu0 0
          %680 = vmatprep.subr.bf16.mxu0 0
          %681 = vmatpush1.bf16.msra.mxu0 0
          %682 = vmatprep.subr.bf16.mxu0 0
          %683 = vmatpush1.bf16.msra.mxu0 0
          %684 = vmatprep.subr.bf16.mxu0 0
          %685 = vmatpush1.bf16.msra.mxu0 0
          %686 = vmatprep.mubr.bf16.mxu0 0
          %687 = vmatmul.mubr.bf16.gmra.mrb[0].mxu0 %v653
          %v688 = vpop.f32.mrb[0].mxu0
          %v689 = vadd.f32 %v405, %v688
          %v690 = vpop.f32.mrb[0].mxu0
          %v691 = vpop.f32.mrb[0].mxu0
          %v692 = vadd.f32 %v405, %v691
          %v693 = vpop.f32.mrb[0].mxu0
          %694 = vdwg.mxu0
          %v695 = vmax.f32 %v689, 0.0
          %v696 = vmax.f32 %v692, 0.0
          %v697 = vpack.c.bf16 %v696, %v695
          %698 = vst [vmem:[#allocation2 + $0x48] sm:$0xff] %v697
        $region76: #{tpu_custom_call.1} parent=47 // pred_fallthru
          _
        %p699 = scmp.ge.s32.totalorder %s644, 16
        // Predicated region
        $region77: #{tpu_custom_call.1} parent=47 // pred_check
          %p700 = pneg %p699
        $region78: #{tpu_custom_call.1} parent=47 // pred_check_branch
          %702 = sbr.rel (%p700) target = $region80
        $region79: #{tpu_custom_call.1} parent=47 // pred_region
          %703 = vst [vmem:[#allocation2 + $0x48] sm:$0xff] 0
        $region80: #{tpu_custom_call.1} parent=47 // pred_fallthru
          _
        %v704 = vlaneseq
        %v705 = vshrl.u32 %v704, 7
        %v706 = vadd.s32 %v705, 8
        %vm707 = vcmp.ge.s32.totalorder %v705, 1
        %vm708 = vcmp.ge.s32.totalorder %v706, 1
        %vm709 = vcmp.lt.s32.totalorder %v705, 15
        %vm710 = vcmp.lt.s32.totalorder %v706, 15
        %v711 = vld [vmem:[#allocation2] sm:$0xff]
        %v712 = vld [vmem:[#allocation2 + $0x8] sm:$0xff]
        %v713 = vld [vmem:[#allocation2 + $0x10] sm:$0xff]
        %v714 = vld [vmem:[#allocation2 + $0x18] sm:$0xff]
        %v715 = vld [vmem:[#allocation2 + $0x20] sm:$0xff]
        %v716 = vld [vmem:[#allocation2 + $0x28] sm:$0xff]
        %v717 = vld [vmem:[#allocation2 + $0x30] sm:$0xff]
        %v718 = vld [vmem:[#allocation2 + $0x38] sm:$0xff]
        %v719 = vld [vmem:[#allocation8] sm:$0xf]
        %v720 = vld [vmem:[#allocation8 + $0x4] sm:$0xf]
        %v721 = vld [vmem:[#allocation8 + $0x8] sm:$0xf]
        %v722 = vld [vmem:[#allocation8 + $0xc] sm:$0xf]
        %v723 = vld [vmem:[#allocation8 + $0x10] sm:$0xf]
        %v724 = vld [vmem:[#allocation8 + $0x14] sm:$0xf]
        %v725 = vld [vmem:[#allocation8 + $0x18] sm:$0xf]
        %v726 = vld [vmem:[#allocation8 + $0x1c] sm:$0xf]
        %v727 = vld [vmem:[#allocation8 + $0x20] sm:$0xf]
        %v728 = vld [vmem:[#allocation8 + $0x24] sm:$0xf]
        %v729 = vld [vmem:[#allocation8 + $0x28] sm:$0xf]
        %v730 = vld [vmem:[#allocation8 + $0x2c] sm:$0xf]
        %v731 = vld [vmem:[#allocation8 + $0x30] sm:$0xf]
        %v732 = vld [vmem:[#allocation8 + $0x34] sm:$0xf]
        %v733 = vld [vmem:[#allocation8 + $0x38] sm:$0xf]
        %v734 = vld [vmem:[#allocation8 + $0x3c] sm:$0xf]
        %v751 = vunpack.c.l.b16 %v719
        %v752 = vunpack.c.l.b16 %v720
        %v753 = vunpack.c.l.b16 %v721
        %v754 = vunpack.c.l.b16 %v722
        %v755 = vunpack.c.l.b16 %v723
        %v756 = vunpack.c.l.b16 %v724
        %v757 = vunpack.c.l.b16 %v725
        %v758 = vunpack.c.l.b16 %v726
        %v759 = vunpack.c.l.b16 %v727
        %v760 = vunpack.c.l.b16 %v728
        %v761 = vunpack.c.l.b16 %v729
        %v762 = vunpack.c.l.b16 %v730
        %v763 = vunpack.c.l.b16 %v731
        %v764 = vunpack.c.l.b16 %v732
        %v765 = vunpack.c.l.b16 %v733
        %v766 = vunpack.c.l.b16 %v734
        %v767 = vpack.c.b16 %v752, %v751
        %v768 = vpack.c.b16 %v754, %v753
        %v769 = vpack.c.b16 %v756, %v755
        %v770 = vpack.c.b16 %v758, %v757
        %v771 = vpack.c.b16 %v760, %v759
        %v772 = vpack.c.b16 %v762, %v761
        %v773 = vpack.c.b16 %v764, %v763
        %v774 = vpack.c.b16 %v766, %v765
        %783 = vmatprep.subr.bf16.mxu0 0
        %784 = vmatpush1.bf16.msra.mxu0 %v767
        %785 = vmatprep.subr.bf16.mxu0 0
        %786 = vmatpush1.bf16.msra.mxu0 %v768
        %787 = vmatprep.subr.bf16.mxu0 0
        %788 = vmatpush1.bf16.msra.mxu0 %v769
        %789 = vmatprep.subr.bf16.mxu0 0
        %790 = vmatpush1.bf16.msra.mxu0 %v770
        %791 = vmatprep.subr.bf16.mxu0 0
        %792 = vmatpush1.bf16.msra.mxu0 %v771
        %793 = vmatprep.subr.bf16.mxu0 0
        %794 = vmatpush1.bf16.msra.mxu0 %v772
        %795 = vmatprep.subr.bf16.mxu0 0
        %796 = vmatpush1.bf16.msra.mxu0 %v773
        %797 = vmatprep.subr.bf16.mxu0 0
        %798 = vmatpush1.bf16.msra.mxu0 %v774
        %799 = vmatprep.subr.bf16.mxu0 0
        %800 = vmatpush1.bf16.msra.mxu0 0
        %801 = vmatprep.subr.bf16.mxu0 0
        %802 = vmatpush1.bf16.msra.mxu0 0
        %803 = vmatprep.subr.bf16.mxu0 0
        %804 = vmatpush1.bf16.msra.mxu0 0
        %805 = vmatprep.subr.bf16.mxu0 0
        %806 = vmatpush1.bf16.msra.mxu0 0
        %807 = vmatprep.subr.bf16.mxu0 0
        %808 = vmatpush1.bf16.msra.mxu0 0
        %809 = vmatprep.subr.bf16.mxu0 0
        %810 = vmatpush1.bf16.msra.mxu0 0
        %811 = vmatprep.subr.bf16.mxu0 0
        %812 = vmatpush1.bf16.msra.mxu0 0
        %813 = vmatprep.subr.bf16.mxu0 0
        %814 = vmatpush1.bf16.msra.mxu0 0
        %815 = vmatprep.mubr.bf16.mxu0 0
        %816 = vmatmul.mubr.bf16.gmra.mrb[0].mxu0 %v711
        %v817 = vpop.f32.mrb[0].mxu0
        %v818 = vadd.f32 0.0, %v817
        %v819 = vpop.f32.mrb[0].mxu0
        %v820 = vpop.f32.mrb[0].mxu0
        %v821 = vadd.f32 0.0, %v820
        %v822 = vpop.f32.mrb[0].mxu0
        %823 = vmatprep.mubr.bf16.mxu0 0
        %824 = vmatmul.mubr.bf16.gmra.mrb[0].mxu0 %v712
        %v825 = vpop.f32.mrb[0].mxu0
        %v826 = vadd.f32 0.0, %v825
        %v827 = vpop.f32.mrb[0].mxu0
        %v828 = vpop.f32.mrb[0].mxu0
        %v829 = vadd.f32 0.0, %v828
        %v830 = vpop.f32.mrb[0].mxu0
        %831 = vmatprep.mubr.bf16.mxu0 0
        %832 = vmatmul.mubr.bf16.gmra.mrb[0].mxu0 %v713
        %v833 = vpop.f32.mrb[0].mxu0
        %v834 = vadd.f32 0.0, %v833
        %v835 = vpop.f32.mrb[0].mxu0
        %v836 = vpop.f32.mrb[0].mxu0
        %v837 = vadd.f32 0.0, %v836
        %v838 = vpop.f32.mrb[0].mxu0
        %839 = vmatprep.mubr.bf16.mxu0 0
        %840 = vmatmul.mubr.bf16.gmra.mrb[0].mxu0 %v714
        %v841 = vpop.f32.mrb[0].mxu0
        %v842 = vadd.f32 0.0, %v841
        %v843 = vpop.f32.mrb[0].mxu0
        %v844 = vpop.f32.mrb[0].mxu0
        %v845 = vadd.f32 0.0, %v844
        %v846 = vpop.f32.mrb[0].mxu0
        %847 = vmatprep.mubr.bf16.mxu0 0
        %848 = vmatmul.mubr.bf16.gmra.mrb[0].mxu0 %v715
        %v849 = vpop.f32.mrb[0].mxu0
        %v850 = vadd.f32 0.0, %v849
        %v851 = vpop.f32.mrb[0].mxu0
        %v852 = vpop.f32.mrb[0].mxu0
        %v853 = vadd.f32 0.0, %v852
        %v854 = vpop.f32.mrb[0].mxu0
        %855 = vmatprep.mubr.bf16.mxu0 0
        %856 = vmatmul.mubr.bf16.gmra.mrb[0].mxu0 %v716
        %v857 = vpop.f32.mrb[0].mxu0
        %v858 = vadd.f32 0.0, %v857
        %v859 = vpop.f32.mrb[0].mxu0
        %v860 = vpop.f32.mrb[0].mxu0
        %v861 = vadd.f32 0.0, %v860
        %v862 = vpop.f32.mrb[0].mxu0
        %863 = vmatprep.mubr.bf16.mxu0 0
        %864 = vmatmul.mubr.bf16.gmra.mrb[0].mxu0 %v717
        %v865 = vpop.f32.mrb[0].mxu0
        %v866 = vadd.f32 0.0, %v865
        %v867 = vpop.f32.mrb[0].mxu0
        %v868 = vpop.f32.mrb[0].mxu0
        %v869 = vadd.f32 0.0, %v868
        %v870 = vpop.f32.mrb[0].mxu0
        %871 = vmatprep.mubr.bf16.mxu0 0
        %872 = vmatmul.mubr.bf16.gmra.mrb[0].mxu0 %v718
        %v873 = vpop.f32.mrb[0].mxu0
        %v874 = vadd.f32 0.0, %v873
        %v875 = vpop.f32.mrb[0].mxu0
        %v876 = vpop.f32.mrb[0].mxu0
        %v877 = vadd.f32 0.0, %v876
        %v878 = vpop.f32.mrb[0].mxu0
        %879 = vdwg.mxu0
        %v880 = vrot.slane %v818, 7
        %v881 = vrot.slane %v821, 7
        %v882 = vrot.slane %v826, 7
        %v883 = vrot.slane %v829, 7
        %v884 = vrot.slane %v834, 7
        %v885 = vrot.slane %v837, 7
        %v886 = vrot.slane %v842, 7
        %v887 = vrot.slane %v845, 7
        %v888 = vrot.slane %v850, 7
        %v889 = vrot.slane %v853, 7
        %v890 = vrot.slane %v858, 7
        %v891 = vrot.slane %v861, 7
        %v892 = vrot.slane %v866, 7
        %v893 = vrot.slane %v869, 7
        %v894 = vrot.slane %v874, 7
        %v895 = vrot.slane %v877, 7
        %vm896 = vcmp.lt.s32.totalorder %v705, 1
        %v897 = vsel %vm896, %v894, %v895
        %v898 = vsel %vm896, %v893, %v894
        %v899 = vsel %vm896, %v892, %v893
        %v900 = vsel %vm896, %v891, %v892
        %v901 = vsel %vm896, %v890, %v891
        %v902 = vsel %vm896, %v889, %v890
        %v903 = vsel %vm896, %v888, %v889
        %v904 = vsel %vm896, %v887, %v888
        %v905 = vsel %vm896, %v886, %v887
        %v906 = vsel %vm896, %v885, %v886
        %v907 = vsel %vm896, %v884, %v885
        %v908 = vsel %vm896, %v883, %v884
        %v909 = vsel %vm896, %v882, %v883
        %v910 = vsel %vm896, %v881, %v882
        %v911 = vsel %vm896, %v880, %v881
        %v912 = vsel %vm896, %v895, %v880
        %v913 = vsel %vm707, 1, 0
        %v914 = vsel %vm708, 1, 0
        %vm915 = vcmp.eq.s32.totalorder %v913, 1
        %vm916 = vcmp.eq.s32.totalorder %v914, 1
        %v917 = vsel %vm915, %v912, 0.0
        %v918 = vsel %vm916, %v911, 0.0
        %v919 = vsel %vm915, %v910, 0.0
        %v920 = vsel %vm916, %v909, 0.0
        %v921 = vsel %vm915, %v908, 0.0
        %v922 = vsel %vm916, %v907, 0.0
        %v923 = vsel %vm915, %v906, 0.0
        %v924 = vsel %vm916, %v905, 0.0
        %v925 = vsel %vm915, %v904, 0.0
        %v926 = vsel %vm916, %v903, 0.0
        %v927 = vsel %vm915, %v902, 0.0
        %v928 = vsel %vm916, %v901, 0.0
        %v929 = vsel %vm915, %v900, 0.0
        %v930 = vsel %vm916, %v899, 0.0
        %v931 = vsel %vm915, %v898, 0.0
        %v932 = vsel %vm916, %v897, 0.0
        %v933 = vld [vmem:[#allocation8 + $0x40] sm:$0xf]
        %v934 = vld [vmem:[#allocation8 + $0x44] sm:$0xf]
        %v935 = vld [vmem:[#allocation8 + $0x48] sm:$0xf]
        %v936 = vld [vmem:[#allocation8 + $0x4c] sm:$0xf]
        %v937 = vld [vmem:[#allocation8 + $0x50] sm:$0xf]
        %v938 = vld [vmem:[#allocation8 + $0x54] sm:$0xf]
        %v939 = vld [vmem:[#allocation8 + $0x58] sm:$0xf]
        %v940 = vld [vmem:[#allocation8 + $0x5c] sm:$0xf]
        %v941 = vld [vmem:[#allocation8 + $0x60] sm:$0xf]
        %v942 = vld [vmem:[#allocation8 + $0x64] sm:$0xf]
        %v943 = vld [vmem:[#allocation8 + $0x68] sm:$0xf]
        %v944 = vld [vmem:[#allocation8 + $0x6c] sm:$0xf]
        %v945 = vld [vmem:[#allocation8 + $0x70] sm:$0xf]
        %v946 = vld [vmem:[#allocation8 + $0x74] sm:$0xf]
        %v947 = vld [vmem:[#allocation8 + $0x78] sm:$0xf]
        %v948 = vld [vmem:[#allocation8 + $0x7c] sm:$0xf]
        %v965 = vunpack.c.l.b16 %v933
        %v966 = vunpack.c.l.b16 %v934
        %v967 = vunpack.c.l.b16 %v935
        %v968 = vunpack.c.l.b16 %v936
        %v969 = vunpack.c.l.b16 %v937
        %v970 = vunpack.c.l.b16 %v938
        %v971 = vunpack.c.l.b16 %v939
        %v972 = vunpack.c.l.b16 %v940
        %v973 = vunpack.c.l.b16 %v941
        %v974 = vunpack.c.l.b16 %v942
        %v975 = vunpack.c.l.b16 %v943
        %v976 = vunpack.c.l.b16 %v944
        %v977 = vunpack.c.l.b16 %v945
        %v978 = vunpack.c.l.b16 %v946
        %v979 = vunpack.c.l.b16 %v947
        %v980 = vunpack.c.l.b16 %v948
        %v981 = vpack.c.b16 %v966, %v965
        %v982 = vpack.c.b16 %v968, %v967
        %v983 = vpack.c.b16 %v970, %v969
        %v984 = vpack.c.b16 %v972, %v971
        %v985 = vpack.c.b16 %v974, %v973
        %v986 = vpack.c.b16 %v976, %v975
        %v987 = vpack.c.b16 %v978, %v977
        %v988 = vpack.c.b16 %v980, %v979
        %997 = vmatprep.subr.bf16.mxu0 0
        %998 = vmatpush1.bf16.msra.mxu0 %v981
        %999 = vmatprep.subr.bf16.mxu0 0
        %1000 = vmatpush1.bf16.msra.mxu0 %v982
        %1001 = vmatprep.subr.bf16.mxu0 0
        %1002 = vmatpush1.bf16.msra.mxu0 %v983
        %1003 = vmatprep.subr.bf16.mxu0 0
        %1004 = vmatpush1.bf16.msra.mxu0 %v984
        %1005 = vmatprep.subr.bf16.mxu0 0
        %1006 = vmatpush1.bf16.msra.mxu0 %v985
        %1007 = vmatprep.subr.bf16.mxu0 0
        %1008 = vmatpush1.bf16.msra.mxu0 %v986
        %1009 = vmatprep.subr.bf16.mxu0 0
        %1010 = vmatpush1.bf16.msra.mxu0 %v987
        %1011 = vmatprep.subr.bf16.mxu0 0
        %1012 = vmatpush1.bf16.msra.mxu0 %v988
        %1013 = vmatprep.subr.bf16.mxu0 0
        %1014 = vmatpush1.bf16.msra.mxu0 0
        %1015 = vmatprep.subr.bf16.mxu0 0
        %1016 = vmatpush1.bf16.msra.mxu0 0
        %1017 = vmatprep.subr.bf16.mxu0 0
        %1018 = vmatpush1.bf16.msra.mxu0 0
        %1019 = vmatprep.subr.bf16.mxu0 0
        %1020 = vmatpush1.bf16.msra.mxu0 0
        %1021 = vmatprep.subr.bf16.mxu0 0
        %1022 = vmatpush1.bf16.msra.mxu0 0
        %1023 = vmatprep.subr.bf16.mxu0 0
        %1024 = vmatpush1.bf16.msra.mxu0 0
        %1025 = vmatprep.subr.bf16.mxu0 0
        %1026 = vmatpush1.bf16.msra.mxu0 0
        %1027 = vmatprep.subr.bf16.mxu0 0
        %1028 = vmatpush1.bf16.msra.mxu0 0
        %1029 = vmatprep.mubr.bf16.mxu0 0
        %1030 = vmatmul.mubr.bf16.gmra.mrb[0].mxu0 %v711
        %v1031 = vpop.f32.mrb[0].mxu0
        %v1032 = vadd.f32 0.0, %v1031
        %v1033 = vpop.f32.mrb[0].mxu0
        %v1034 = vpop.f32.mrb[0].mxu0
        %v1035 = vadd.f32 0.0, %v1034
        %v1036 = vpop.f32.mrb[0].mxu0
        %1037 = vmatprep.mubr.bf16.mxu0 0
        %1038 = vmatmul.mubr.bf16.gmra.mrb[0].mxu0 %v712
        %v1039 = vpop.f32.mrb[0].mxu0
        %v1040 = vadd.f32 0.0, %v1039
        %v1041 = vpop.f32.mrb[0].mxu0
        %v1042 = vpop.f32.mrb[0].mxu0
        %v1043 = vadd.f32 0.0, %v1042
        %v1044 = vpop.f32.mrb[0].mxu0
        %1045 = vmatprep.mubr.bf16.mxu0 0
        %1046 = vmatmul.mubr.bf16.gmra.mrb[0].mxu0 %v713
        %v1047 = vpop.f32.mrb[0].mxu0
        %v1048 = vadd.f32 0.0, %v1047
        %v1049 = vpop.f32.mrb[0].mxu0
        %v1050 = vpop.f32.mrb[0].mxu0
        %v1051 = vadd.f32 0.0, %v1050
        %v1052 = vpop.f32.mrb[0].mxu0
        %1053 = vmatprep.mubr.bf16.mxu0 0
        %1054 = vmatmul.mubr.bf16.gmra.mrb[0].mxu0 %v714
        %v1055 = vpop.f32.mrb[0].mxu0
        %v1056 = vadd.f32 0.0, %v1055
        %v1057 = vpop.f32.mrb[0].mxu0
        %v1058 = vpop.f32.mrb[0].mxu0
        %v1059 = vadd.f32 0.0, %v1058
        %v1060 = vpop.f32.mrb[0].mxu0
        %1061 = vmatprep.mubr.bf16.mxu0 0
        %1062 = vmatmul.mubr.bf16.gmra.mrb[0].mxu0 %v715
        %v1063 = vpop.f32.mrb[0].mxu0
        %v1064 = vadd.f32 0.0, %v1063
        %v1065 = vpop.f32.mrb[0].mxu0
        %v1066 = vpop.f32.mrb[0].mxu0
        %v1067 = vadd.f32 0.0, %v1066
        %v1068 = vpop.f32.mrb[0].mxu0
        %1069 = vmatprep.mubr.bf16.mxu0 0
        %1070 = vmatmul.mubr.bf16.gmra.mrb[0].mxu0 %v716
        %v1071 = vpop.f32.mrb[0].mxu0
        %v1072 = vadd.f32 0.0, %v1071
        %v1073 = vpop.f32.mrb[0].mxu0
        %v1074 = vpop.f32.mrb[0].mxu0
        %v1075 = vadd.f32 0.0, %v1074
        %v1076 = vpop.f32.mrb[0].mxu0
        %1077 = vmatprep.mubr.bf16.mxu0 0
        %1078 = vmatmul.mubr.bf16.gmra.mrb[0].mxu0 %v717
        %v1079 = vpop.f32.mrb[0].mxu0
        %v1080 = vadd.f32 0.0, %v1079
        %v1081 = vpop.f32.mrb[0].mxu0
        %v1082 = vpop.f32.mrb[0].mxu0
        %v1083 = vadd.f32 0.0, %v1082
        %v1084 = vpop.f32.mrb[0].mxu0
        %1085 = vmatprep.mubr.bf16.mxu0 0
        %1086 = vmatmul.mubr.bf16.gmra.mrb[0].mxu0 %v718
        %v1087 = vpop.f32.mrb[0].mxu0
        %v1088 = vadd.f32 0.0, %v1087
        %v1089 = vpop.f32.mrb[0].mxu0
        %v1090 = vpop.f32.mrb[0].mxu0
        %v1091 = vadd.f32 0.0, %v1090
        %v1092 = vpop.f32.mrb[0].mxu0
        %1093 = vdwg.mxu0
        %v1094 = vadd.f32 %v917, %v1032
        %v1095 = vadd.f32 %v918, %v1035
        %v1096 = vadd.f32 %v919, %v1040
        %v1097 = vadd.f32 %v920, %v1043
        %v1098 = vadd.f32 %v921, %v1048
        %v1099 = vadd.f32 %v922, %v1051
        %v1100 = vadd.f32 %v923, %v1056
        %v1101 = vadd.f32 %v924, %v1059
        %v1102 = vadd.f32 %v925, %v1064
        %v1103 = vadd.f32 %v926, %v1067
        %v1104 = vadd.f32 %v927, %v1072
        %v1105 = vadd.f32 %v928, %v1075
        %v1106 = vadd.f32 %v929, %v1080
        %v1107 = vadd.f32 %v930, %v1083
        %v1108 = vadd.f32 %v931, %v1088
        %v1109 = vadd.f32 %v932, %v1091
        %v1110 = vld [vmem:[#allocation8 + $0x80] sm:$0xf]
        %v1111 = vld [vmem:[#allocation8 + $0x84] sm:$0xf]
        %v1112 = vld [vmem:[#allocation8 + $0x88] sm:$0xf]
        %v1113 = vld [vmem:[#allocation8 + $0x8c] sm:$0xf]
        %v1114 = vld [vmem:[#allocation8 + $0x90] sm:$0xf]
        %v1115 = vld [vmem:[#allocation8 + $0x94] sm:$0xf]
        %v1116 = vld [vmem:[#allocation8 + $0x98] sm:$0xf]
        %v1117 = vld [vmem:[#allocation8 + $0x9c] sm:$0xf]
        %v1118 = vld [vmem:[#allocation8 + $0xa0] sm:$0xf]
        %v1119 = vld [vmem:[#allocation8 + $0xa4] sm:$0xf]
        %v1120 = vld [vmem:[#allocation8 + $0xa8] sm:$0xf]
        %v1121 = vld [vmem:[#allocation8 + $0xac] sm:$0xf]
        %v1122 = vld [vmem:[#allocation8 + $0xb0] sm:$0xf]
        %v1123 = vld [vmem:[#allocation8 + $0xb4] sm:$0xf]
        %v1124 = vld [vmem:[#allocation8 + $0xb8] sm:$0xf]
        %v1125 = vld [vmem:[#allocation8 + $0xbc] sm:$0xf]
        %v1142 = vunpack.c.l.b16 %v1110
        %v1143 = vunpack.c.l.b16 %v1111
        %v1144 = vunpack.c.l.b16 %v1112
        %v1145 = vunpack.c.l.b16 %v1113
        %v1146 = vunpack.c.l.b16 %v1114
        %v1147 = vunpack.c.l.b16 %v1115
        %v1148 = vunpack.c.l.b16 %v1116
        %v1149 = vunpack.c.l.b16 %v1117
        %v1150 = vunpack.c.l.b16 %v1118
        %v1151 = vunpack.c.l.b16 %v1119
        %v1152 = vunpack.c.l.b16 %v1120
        %v1153 = vunpack.c.l.b16 %v1121
        %v1154 = vunpack.c.l.b16 %v1122
        %v1155 = vunpack.c.l.b16 %v1123
        %v1156 = vunpack.c.l.b16 %v1124
        %v1157 = vunpack.c.l.b16 %v1125
        %v1158 = vpack.c.b16 %v1143, %v1142
        %v1159 = vpack.c.b16 %v1145, %v1144
        %v1160 = vpack.c.b16 %v1147, %v1146
        %v1161 = vpack.c.b16 %v1149, %v1148
        %v1162 = vpack.c.b16 %v1151, %v1150
        %v1163 = vpack.c.b16 %v1153, %v1152
        %v1164 = vpack.c.b16 %v1155, %v1154
        %v1165 = vpack.c.b16 %v1157, %v1156
        %1174 = vmatprep.subr.bf16.mxu0 0
        %1175 = vmatpush1.bf16.msra.mxu0 %v1158
        %1176 = vmatprep.subr.bf16.mxu0 0
        %1177 = vmatpush1.bf16.msra.mxu0 %v1159
        %1178 = vmatprep.subr.bf16.mxu0 0
        %1179 = vmatpush1.bf16.msra.mxu0 %v1160
        %1180 = vmatprep.subr.bf16.mxu0 0
        %1181 = vmatpush1.bf16.msra.mxu0 %v1161
        %1182 = vmatprep.subr.bf16.mxu0 0
        %1183 = vmatpush1.bf16.msra.mxu0 %v1162
        %1184 = vmatprep.subr.bf16.mxu0 0
        %1185 = vmatpush1.bf16.msra.mxu0 %v1163
        %1186 = vmatprep.subr.bf16.mxu0 0
        %1187 = vmatpush1.bf16.msra.mxu0 %v1164
        %1188 = vmatprep.subr.bf16.mxu0 0
        %1189 = vmatpush1.bf16.msra.mxu0 %v1165
        %1190 = vmatprep.subr.bf16.mxu0 0
        %1191 = vmatpush1.bf16.msra.mxu0 0
        %1192 = vmatprep.subr.bf16.mxu0 0
        %1193 = vmatpush1.bf16.msra.mxu0 0
        %1194 = vmatprep.subr.bf16.mxu0 0
        %1195 = vmatpush1.bf16.msra.mxu0 0
        %1196 = vmatprep.subr.bf16.mxu0 0
        %1197 = vmatpush1.bf16.msra.mxu0 0
        %1198 = vmatprep.subr.bf16.mxu0 0
        %1199 = vmatpush1.bf16.msra.mxu0 0
        %1200 = vmatprep.subr.bf16.mxu0 0
        %1201 = vmatpush1.bf16.msra.mxu0 0
        %1202 = vmatprep.subr.bf16.mxu0 0
        %1203 = vmatpush1.bf16.msra.mxu0 0
        %1204 = vmatprep.subr.bf16.mxu0 0
        %1205 = vmatpush1.bf16.msra.mxu0 0
        %1206 = vmatprep.mubr.bf16.mxu0 0
        %1207 = vmatmul.mubr.bf16.gmra.mrb[0].mxu0 %v711
        %v1208 = vpop.f32.mrb[0].mxu0
        %v1209 = vadd.f32 0.0, %v1208
        %v1210 = vpop.f32.mrb[0].mxu0
        %v1211 = vpop.f32.mrb[0].mxu0
        %v1212 = vadd.f32 0.0, %v1211
        %v1213 = vpop.f32.mrb[0].mxu0
        %1214 = vmatprep.mubr.bf16.mxu0 0
        %1215 = vmatmul.mubr.bf16.gmra.mrb[0].mxu0 %v712
        %v1216 = vpop.f32.mrb[0].mxu0
        %v1217 = vadd.f32 0.0, %v1216
        %v1218 = vpop.f32.mrb[0].mxu0
        %v1219 = vpop.f32.mrb[0].mxu0
        %v1220 = vadd.f32 0.0, %v1219
        %v1221 = vpop.f32.mrb[0].mxu0
        %1222 = vmatprep.mubr.bf16.mxu0 0
        %1223 = vmatmul.mubr.bf16.gmra.mrb[0].mxu0 %v713
        %v1224 = vpop.f32.mrb[0].mxu0
        %v1225 = vadd.f32 0.0, %v1224
        %v1226 = vpop.f32.mrb[0].mxu0
        %v1227 = vpop.f32.mrb[0].mxu0
        %v1228 = vadd.f32 0.0, %v1227
        %v1229 = vpop.f32.mrb[0].mxu0
        %1230 = vmatprep.mubr.bf16.mxu0 0
        %1231 = vmatmul.mubr.bf16.gmra.mrb[0].mxu0 %v714
        %v1232 = vpop.f32.mrb[0].mxu0
        %v1233 = vadd.f32 0.0, %v1232
        %v1234 = vpop.f32.mrb[0].mxu0
        %v1235 = vpop.f32.mrb[0].mxu0
        %v1236 = vadd.f32 0.0, %v1235
        %v1237 = vpop.f32.mrb[0].mxu0
        %1238 = vmatprep.mubr.bf16.mxu0 0
        %1239 = vmatmul.mubr.bf16.gmra.mrb[0].mxu0 %v715
        %v1240 = vpop.f32.mrb[0].mxu0
        %v1241 = vadd.f32 0.0, %v1240
        %v1242 = vpop.f32.mrb[0].mxu0
        %v1243 = vpop.f32.mrb[0].mxu0
        %v1244 = vadd.f32 0.0, %v1243
        %v1245 = vpop.f32.mrb[0].mxu0
        %1246 = vmatprep.mubr.bf16.mxu0 0
        %1247 = vmatmul.mubr.bf16.gmra.mrb[0].mxu0 %v716
        %v1248 = vpop.f32.mrb[0].mxu0
        %v1249 = vadd.f32 0.0, %v1248
        %v1250 = vpop.f32.mrb[0].mxu0
        %v1251 = vpop.f32.mrb[0].mxu0
        %v1252 = vadd.f32 0.0, %v1251
        %v1253 = vpop.f32.mrb[0].mxu0
        %1254 = vmatprep.mubr.bf16.mxu0 0
        %1255 = vmatmul.mubr.bf16.gmra.mrb[0].mxu0 %v717
        %v1256 = vpop.f32.mrb[0].mxu0
        %v1257 = vadd.f32 0.0, %v1256
        %v1258 = vpop.f32.mrb[0].mxu0
        %v1259 = vpop.f32.mrb[0].mxu0
        %v1260 = vadd.f32 0.0, %v1259
        %v1261 = vpop.f32.mrb[0].mxu0
        %1262 = vmatprep.mubr.bf16.mxu0 0
        %1263 = vmatmul.mubr.bf16.gmra.mrb[0].mxu0 %v718
        %v1264 = vpop.f32.mrb[0].mxu0
        %v1265 = vadd.f32 0.0, %v1264
        %v1266 = vpop.f32.mrb[0].mxu0
        %v1267 = vpop.f32.mrb[0].mxu0
        %v1268 = vadd.f32 0.0, %v1267
        %v1269 = vpop.f32.mrb[0].mxu0
        %1270 = vdwg.mxu0
        %v1271 = vrot.slane %v1209, 1
        %v1272 = vrot.slane %v1212, 1
        %v1273 = vrot.slane %v1217, 1
        %v1274 = vrot.slane %v1220, 1
        %v1275 = vrot.slane %v1225, 1
        %v1276 = vrot.slane %v1228, 1
        %v1277 = vrot.slane %v1233, 1
        %v1278 = vrot.slane %v1236, 1
        %v1279 = vrot.slane %v1241, 1
        %v1280 = vrot.slane %v1244, 1
        %v1281 = vrot.slane %v1249, 1
        %v1282 = vrot.slane %v1252, 1
        %v1283 = vrot.slane %v1257, 1
        %v1284 = vrot.slane %v1260, 1
        %v1285 = vrot.slane %v1265, 1
        %v1286 = vrot.slane %v1268, 1
        %vm1287 = vcmp.lt.s32.totalorder %v705, 7
        %v1288 = vsel %vm1287, %v1285, %v1286
        %v1289 = vsel %vm1287, %v1284, %v1285
        %v1290 = vsel %vm1287, %v1283, %v1284
        %v1291 = vsel %vm1287, %v1282, %v1283
        %v1292 = vsel %vm1287, %v1281, %v1282
        %v1293 = vsel %vm1287, %v1280, %v1281
        %v1294 = vsel %vm1287, %v1279, %v1280
        %v1295 = vsel %vm1287, %v1278, %v1279
        %v1296 = vsel %vm1287, %v1277, %v1278
        %v1297 = vsel %vm1287, %v1276, %v1277
        %v1298 = vsel %vm1287, %v1275, %v1276
        %v1299 = vsel %vm1287, %v1274, %v1275
        %v1300 = vsel %vm1287, %v1273, %v1274
        %v1301 = vsel %vm1287, %v1272, %v1273
        %v1302 = vsel %vm1287, %v1271, %v1272
        %v1303 = vsel %vm1287, %v1286, %v1271
        %v1304 = vsel %vm709, 1, 0
        %v1305 = vsel %vm710, 1, 0
        %vm1306 = vcmp.eq.s32.totalorder %v1304, 1
        %vm1307 = vcmp.eq.s32.totalorder %v1305, 1
        %v1308 = vsel %vm1306, %v1302, 0.0
        %v1309 = vsel %vm1307, %v1301, 0.0
        %v1310 = vsel %vm1306, %v1300, 0.0
        %v1311 = vsel %vm1307, %v1299, 0.0
        %v1312 = vsel %vm1306, %v1298, 0.0
        %v1313 = vsel %vm1307, %v1297, 0.0
        %v1314 = vsel %vm1306, %v1296, 0.0
        %v1315 = vsel %vm1307, %v1295, 0.0
        %v1316 = vsel %vm1306, %v1294, 0.0
        %v1317 = vsel %vm1307, %v1293, 0.0
        %v1318 = vsel %vm1306, %v1292, 0.0
        %v1319 = vsel %vm1307, %v1291, 0.0
        %v1320 = vsel %vm1306, %v1290, 0.0
        %v1321 = vsel %vm1307, %v1289, 0.0
        %v1322 = vsel %vm1306, %v1288, 0.0
        %v1323 = vsel %vm1307, %v1303, 0.0
        %v1324 = vadd.f32 %v1094, %v1308
        %v1325 = vadd.f32 %v1095, %v1309
        %v1326 = vadd.f32 %v1096, %v1310
        %v1327 = vadd.f32 %v1097, %v1311
        %v1328 = vadd.f32 %v1098, %v1312
        %v1329 = vadd.f32 %v1099, %v1313
        %v1330 = vadd.f32 %v1100, %v1314
        %v1331 = vadd.f32 %v1101, %v1315
        %v1332 = vadd.f32 %v1102, %v1316
        %v1333 = vadd.f32 %v1103, %v1317
        %v1334 = vadd.f32 %v1104, %v1318
        %v1335 = vadd.f32 %v1105, %v1319
        %v1336 = vadd.f32 %v1106, %v1320
        %v1337 = vadd.f32 %v1107, %v1321
        %v1338 = vadd.f32 %v1108, %v1322
        %v1339 = vadd.f32 %v1109, %v1323
        %v1340 = vld [vmem:[#allocation2 + $0x8] sm:$0xff]
        %v1341 = vld [vmem:[#allocation2 + $0x10] sm:$0xff]
        %v1342 = vld [vmem:[#allocation2 + $0x18] sm:$0xff]
        %v1343 = vld [vmem:[#allocation2 + $0x20] sm:$0xff]
        %v1344 = vld [vmem:[#allocation2 + $0x28] sm:$0xff]
        %v1345 = vld [vmem:[#allocation2 + $0x30] sm:$0xff]
        %v1346 = vld [vmem:[#allocation2 + $0x38] sm:$0xff]
        %v1347 = vld [vmem:[#allocation2 + $0x40] sm:$0xff]
        %v1348 = vld [vmem:[#allocation8 + $0xc0] sm:$0xf]
        %v1349 = vld [vmem:[#allocation8 + $0xc4] sm:$0xf]
        %v1350 = vld [vmem:[#allocation8 + $0xc8] sm:$0xf]
        %v1351 = vld [vmem:[#allocation8 + $0xcc] sm:$0xf]
        %v1352 = vld [vmem:[#allocation8 + $0xd0] sm:$0xf]
        %v1353 = vld [vmem:[#allocation8 + $0xd4] sm:$0xf]
        %v1354 = vld [vmem:[#allocation8 + $0xd8] sm:$0xf]
        %v1355 = vld [vmem:[#allocation8 + $0xdc] sm:$0xf]
        %v1356 = vld [vmem:[#allocation8 + $0xe0] sm:$0xf]
        %v1357 = vld [vmem:[#allocation8 + $0xe4] sm:$0xf]
        %v1358 = vld [vmem:[#allocation8 + $0xe8] sm:$0xf]
        %v1359 = vld [vmem:[#allocation8 + $0xec] sm:$0xf]
        %v1360 = vld [vmem:[#allocation8 + $0xf0] sm:$0xf]
        %v1361 = vld [vmem:[#allocation8 + $0xf4] sm:$0xf]
        %v1362 = vld [vmem:[#allocation8 + $0xf8] sm:$0xf]
        %v1363 = vld [vmem:[#allocation8 + $0xfc] sm:$0xf]
        %v1380 = vunpack.c.l.b16 %v1348
        %v1381 = vunpack.c.l.b16 %v1349
        %v1382 = vunpack.c.l.b16 %v1350
        %v1383 = vunpack.c.l.b16 %v1351
        %v1384 = vunpack.c.l.b16 %v1352
        %v1385 = vunpack.c.l.b16 %v1353
        %v1386 = vunpack.c.l.b16 %v1354
        %v1387 = vunpack.c.l.b16 %v1355
        %v1388 = vunpack.c.l.b16 %v1356
        %v1389 = vunpack.c.l.b16 %v1357
        %v1390 = vunpack.c.l.b16 %v1358
        %v1391 = vunpack.c.l.b16 %v1359
        %v1392 = vunpack.c.l.b16 %v1360
        %v1393 = vunpack.c.l.b16 %v1361
        %v1394 = vunpack.c.l.b16 %v1362
        %v1395 = vunpack.c.l.b16 %v1363
        %v1396 = vpack.c.b16 %v1381, %v1380
        %v1397 = vpack.c.b16 %v1383, %v1382
        %v1398 = vpack.c.b16 %v1385, %v1384
        %v1399 = vpack.c.b16 %v1387, %v1386
        %v1400 = vpack.c.b16 %v1389, %v1388
        %v1401 = vpack.c.b16 %v1391, %v1390
        %v1402 = vpack.c.b16 %v1393, %v1392
        %v1403 = vpack.c.b16 %v1395, %v1394
        %1412 = vmatprep.subr.bf16.mxu0 0
        %1413 = vmatpush1.bf16.msra.mxu0 %v1396
        %1414 = vmatprep.subr.bf16.mxu0 0
        %1415 = vmatpush1.bf16.msra.mxu0 %v1397
        %1416 = vmatprep.subr.bf16.mxu0 0
        %1417 = vmatpush1.bf16.msra.mxu0 %v1398
        %1418 = vmatprep.subr.bf16.mxu0 0
        %1419 = vmatpush1.bf16.msra.mxu0 %v1399
        %1420 = vmatprep.subr.bf16.mxu0 0
        %1421 = vmatpush1.bf16.msra.mxu0 %v1400
        %1422 = vmatprep.subr.bf16.mxu0 0
        %1423 = vmatpush1.bf16.msra.mxu0 %v1401
        %1424 = vmatprep.subr.bf16.mxu0 0
        %1425 = vmatpush1.bf16.msra.mxu0 %v1402
        %1426 = vmatprep.subr.bf16.mxu0 0
        %1427 = vmatpush1.bf16.msra.mxu0 %v1403
        %1428 = vmatprep.subr.bf16.mxu0 0
        %1429 = vmatpush1.bf16.msra.mxu0 0
        %1430 = vmatprep.subr.bf16.mxu0 0
        %1431 = vmatpush1.bf16.msra.mxu0 0
        %1432 = vmatprep.subr.bf16.mxu0 0
        %1433 = vmatpush1.bf16.msra.mxu0 0
        %1434 = vmatprep.subr.bf16.mxu0 0
        %1435 = vmatpush1.bf16.msra.mxu0 0
        %1436 = vmatprep.subr.bf16.mxu0 0
        %1437 = vmatpush1.bf16.msra.mxu0 0
        %1438 = vmatprep.subr.bf16.mxu0 0
        %1439 = vmatpush1.bf16.msra.mxu0 0
        %1440 = vmatprep.subr.bf16.mxu0 0
        %1441 = vmatpush1.bf16.msra.mxu0 0
        %1442 = vmatprep.subr.bf16.mxu0 0
        %1443 = vmatpush1.bf16.msra.mxu0 0
        %1444 = vmatprep.mubr.bf16.mxu0 0
        %1445 = vmatmul.mubr.bf16.gmra.mrb[0].mxu0 %v1340
        %v1446 = vpop.f32.mrb[0].mxu0
        %v1447 = vadd.f32 0.0, %v1446
        %v1448 = vpop.f32.mrb[0].mxu0
        %v1449 = vpop.f32.mrb[0].mxu0
        %v1450 = vadd.f32 0.0, %v1449
        %v1451 = vpop.f32.mrb[0].mxu0
        %1452 = vmatprep.mubr.bf16.mxu0 0
        %1453 = vmatmul.mubr.bf16.gmra.mrb[0].mxu0 %v1341
        %v1454 = vpop.f32.mrb[0].mxu0
        %v1455 = vadd.f32 0.0, %v1454
        %v1456 = vpop.f32.mrb[0].mxu0
        %v1457 = vpop.f32.mrb[0].mxu0
        %v1458 = vadd.f32 0.0, %v1457
        %v1459 = vpop.f32.mrb[0].mxu0
        %1460 = vmatprep.mubr.bf16.mxu0 0
        %1461 = vmatmul.mubr.bf16.gmra.mrb[0].mxu0 %v1342
        %v1462 = vpop.f32.mrb[0].mxu0
        %v1463 = vadd.f32 0.0, %v1462
        %v1464 = vpop.f32.mrb[0].mxu0
        %v1465 = vpop.f32.mrb[0].mxu0
        %v1466 = vadd.f32 0.0, %v1465
        %v1467 = vpop.f32.mrb[0].mxu0
        %1468 = vmatprep.mubr.bf16.mxu0 0
        %1469 = vmatmul.mubr.bf16.gmra.mrb[0].mxu0 %v1343
        %v1470 = vpop.f32.mrb[0].mxu0
        %v1471 = vadd.f32 0.0, %v1470
        %v1472 = vpop.f32.mrb[0].mxu0
        %v1473 = vpop.f32.mrb[0].mxu0
        %v1474 = vadd.f32 0.0, %v1473
        %v1475 = vpop.f32.mrb[0].mxu0
        %1476 = vmatprep.mubr.bf16.mxu0 0
        %1477 = vmatmul.mubr.bf16.gmra.mrb[0].mxu0 %v1344
        %v1478 = vpop.f32.mrb[0].mxu0
        %v1479 = vadd.f32 0.0, %v1478
        %v1480 = vpop.f32.mrb[0].mxu0
        %v1481 = vpop.f32.mrb[0].mxu0
        %v1482 = vadd.f32 0.0, %v1481
        %v1483 = vpop.f32.mrb[0].mxu0
        %1484 = vmatprep.mubr.bf16.mxu0 0
        %1485 = vmatmul.mubr.bf16.gmra.mrb[0].mxu0 %v1345
        %v1486 = vpop.f32.mrb[0].mxu0
        %v1487 = vadd.f32 0.0, %v1486
        %v1488 = vpop.f32.mrb[0].mxu0
        %v1489 = vpop.f32.mrb[0].mxu0
        %v1490 = vadd.f32 0.0, %v1489
        %v1491 = vpop.f32.mrb[0].mxu0
        %1492 = vmatprep.mubr.bf16.mxu0 0
        %1493 = vmatmul.mubr.bf16.gmra.mrb[0].mxu0 %v1346
        %v1494 = vpop.f32.mrb[0].mxu0
        %v1495 = vadd.f32 0.0, %v1494
        %v1496 = vpop.f32.mrb[0].mxu0
        %v1497 = vpop.f32.mrb[0].mxu0
        %v1498 = vadd.f32 0.0, %v1497
        %v1499 = vpop.f32.mrb[0].mxu0
        %1500 = vmatprep.mubr.bf16.mxu0 0
        %1501 = vmatmul.mubr.bf16.gmra.mrb[0].mxu0 %v1347
        %v1502 = vpop.f32.mrb[0].mxu0
        %v1503 = vadd.f32 0.0, %v1502
        %v1504 = vpop.f32.mrb[0].mxu0
        %v1505 = vpop.f32.mrb[0].mxu0
        %v1506 = vadd.f32 0.0, %v1505
        %v1507 = vpop.f32.mrb[0].mxu0
        %1508 = vdwg.mxu0
        %v1509 = vrot.slane %v1447, 7
        %v1510 = vrot.slane %v1450, 7
        %v1511 = vrot.slane %v1455, 7
        %v1512 = vrot.slane %v1458, 7
        %v1513 = vrot.slane %v1463, 7
        %v1514 = vrot.slane %v1466, 7
        %v1515 = vrot.slane %v1471, 7
        %v1516 = vrot.slane %v1474, 7
        %v1517 = vrot.slane %v1479, 7
        %v1518 = vrot.slane %v1482, 7
        %v1519 = vrot.slane %v1487, 7
        %v1520 = vrot.slane %v1490, 7
        %v1521 = vrot.slane %v1495, 7
        %v1522 = vrot.slane %v1498, 7
        %v1523 = vrot.slane %v1503, 7
        %v1524 = vrot.slane %v1506, 7
        %v1525 = vsel %vm896, %v1523, %v1524
        %v1526 = vsel %vm896, %v1522, %v1523
        %v1527 = vsel %vm896, %v1521, %v1522
        %v1528 = vsel %vm896, %v1520, %v1521
        %v1529 = vsel %vm896, %v1519, %v1520
        %v1530 = vsel %vm896, %v1518, %v1519
        %v1531 = vsel %vm896, %v1517, %v1518
        %v1532 = vsel %vm896, %v1516, %v1517
        %v1533 = vsel %vm896, %v1515, %v1516
        %v1534 = vsel %vm896, %v1514, %v1515
        %v1535 = vsel %vm896, %v1513, %v1514
        %v1536 = vsel %vm896, %v1512, %v1513
        %v1537 = vsel %vm896, %v1511, %v1512
        %v1538 = vsel %vm896, %v1510, %v1511
        %v1539 = vsel %vm896, %v1509, %v1510
        %v1540 = vsel %vm896, %v1524, %v1509
        %v1541 = vsel %vm915, %v1540, 0.0
        %v1542 = vsel %vm916, %v1539, 0.0
        %v1543 = vsel %vm915, %v1538, 0.0
        %v1544 = vsel %vm916, %v1537, 0.0
        %v1545 = vsel %vm915, %v1536, 0.0
        %v1546 = vsel %vm916, %v1535, 0.0
        %v1547 = vsel %vm915, %v1534, 0.0
        %v1548 = vsel %vm916, %v1533, 0.0
        %v1549 = vsel %vm915, %v1532, 0.0
        %v1550 = vsel %vm916, %v1531, 0.0
        %v1551 = vsel %vm915, %v1530, 0.0
        %v1552 = vsel %vm916, %v1529, 0.0
        %v1553 = vsel %vm915, %v1528, 0.0
        %v1554 = vsel %vm916, %v1527, 0.0
        %v1555 = vsel %vm915, %v1526, 0.0
        %v1556 = vsel %vm916, %v1525, 0.0
        %v1557 = vadd.f32 %v1324, %v1541
        %v1558 = vadd.f32 %v1325, %v1542
        %v1559 = vadd.f32 %v1326, %v1543
        %v1560 = vadd.f32 %v1327, %v1544
        %v1561 = vadd.f32 %v1328, %v1545
        %v1562 = vadd.f32 %v1329, %v1546
        %v1563 = vadd.f32 %v1330, %v1547
        %v1564 = vadd.f32 %v1331, %v1548
        %v1565 = vadd.f32 %v1332, %v1549
        %v1566 = vadd.f32 %v1333, %v1550
        %v1567 = vadd.f32 %v1334, %v1551
        %v1568 = vadd.f32 %v1335, %v1552
        %v1569 = vadd.f32 %v1336, %v1553
        %v1570 = vadd.f32 %v1337, %v1554
        %v1571 = vadd.f32 %v1338, %v1555
        %v1572 = vadd.f32 %v1339, %v1556
        %v1573 = vld [vmem:[#allocation8 + $0x100] sm:$0xf]
        %v1574 = vld [vmem:[#allocation8 + $0x104] sm:$0xf]
        %v1575 = vld [vmem:[#allocation8 + $0x108] sm:$0xf]
        %v1576 = vld [vmem:[#allocation8 + $0x10c] sm:$0xf]
        %v1577 = vld [vmem:[#allocation8 + $0x110] sm:$0xf]
        %v1578 = vld [vmem:[#allocation8 + $0x114] sm:$0xf]
        %v1579 = vld [vmem:[#allocation8 + $0x118] sm:$0xf]
        %v1580 = vld [vmem:[#allocation8 + $0x11c] sm:$0xf]
        %v1581 = vld [vmem:[#allocation8 + $0x120] sm:$0xf]
        %v1582 = vld [vmem:[#allocation8 + $0x124] sm:$0xf]
        %v1583 = vld [vmem:[#allocation8 + $0x128] sm:$0xf]
        %v1584 = vld [vmem:[#allocation8 + $0x12c] sm:$0xf]
        %v1585 = vld [vmem:[#allocation8 + $0x130] sm:$0xf]
        %v1586 = vld [vmem:[#allocation8 + $0x134] sm:$0xf]
        %v1587 = vld [vmem:[#allocation8 + $0x138] sm:$0xf]
        %v1588 = vld [vmem:[#allocation8 + $0x13c] sm:$0xf]
        %v1605 = vunpack.c.l.b16 %v1573
        %v1606 = vunpack.c.l.b16 %v1574
        %v1607 = vunpack.c.l.b16 %v1575
        %v1608 = vunpack.c.l.b16 %v1576
        %v1609 = vunpack.c.l.b16 %v1577
        %v1610 = vunpack.c.l.b16 %v1578
        %v1611 = vunpack.c.l.b16 %v1579
        %v1612 = vunpack.c.l.b16 %v1580
        %v1613 = vunpack.c.l.b16 %v1581
        %v1614 = vunpack.c.l.b16 %v1582
        %v1615 = vunpack.c.l.b16 %v1583
        %v1616 = vunpack.c.l.b16 %v1584
        %v1617 = vunpack.c.l.b16 %v1585
        %v1618 = vunpack.c.l.b16 %v1586
        %v1619 = vunpack.c.l.b16 %v1587
        %v1620 = vunpack.c.l.b16 %v1588
        %v1621 = vpack.c.b16 %v1606, %v1605
        %v1622 = vpack.c.b16 %v1608, %v1607
        %v1623 = vpack.c.b16 %v1610, %v1609
        %v1624 = vpack.c.b16 %v1612, %v1611
        %v1625 = vpack.c.b16 %v1614, %v1613
        %v1626 = vpack.c.b16 %v1616, %v1615
        %v1627 = vpack.c.b16 %v1618, %v1617
        %v1628 = vpack.c.b16 %v1620, %v1619
        %1637 = vmatprep.subr.bf16.mxu0 0
        %1638 = vmatpush1.bf16.msra.mxu0 %v1621
        %1639 = vmatprep.subr.bf16.mxu0 0
        %1640 = vmatpush1.bf16.msra.mxu0 %v1622
        %1641 = vmatprep.subr.bf16.mxu0 0
        %1642 = vmatpush1.bf16.msra.mxu0 %v1623
        %1643 = vmatprep.subr.bf16.mxu0 0
        %1644 = vmatpush1.bf16.msra.mxu0 %v1624
        %1645 = vmatprep.subr.bf16.mxu0 0
        %1646 = vmatpush1.bf16.msra.mxu0 %v1625
        %1647 = vmatprep.subr.bf16.mxu0 0
        %1648 = vmatpush1.bf16.msra.mxu0 %v1626
        %1649 = vmatprep.subr.bf16.mxu0 0
        %1650 = vmatpush1.bf16.msra.mxu0 %v1627
        %1651 = vmatprep.subr.bf16.mxu0 0
        %1652 = vmatpush1.bf16.msra.mxu0 %v1628
        %1653 = vmatprep.subr.bf16.mxu0 0
        %1654 = vmatpush1.bf16.msra.mxu0 0
        %1655 = vmatprep.subr.bf16.mxu0 0
        %1656 = vmatpush1.bf16.msra.mxu0 0
        %1657 = vmatprep.subr.bf16.mxu0 0
        %1658 = vmatpush1.bf16.msra.mxu0 0
        %1659 = vmatprep.subr.bf16.mxu0 0
        %1660 = vmatpush1.bf16.msra.mxu0 0
        %1661 = vmatprep.subr.bf16.mxu0 0
        %1662 = vmatpush1.bf16.msra.mxu0 0
        %1663 = vmatprep.subr.bf16.mxu0 0
        %1664 = vmatpush1.bf16.msra.mxu0 0
        %1665 = vmatprep.subr.bf16.mxu0 0
        %1666 = vmatpush1.bf16.msra.mxu0 0
        %1667 = vmatprep.subr.bf16.mxu0 0
        %1668 = vmatpush1.bf16.msra.mxu0 0
        %1669 = vmatprep.mubr.bf16.mxu0 0
        %1670 = vmatmul.mubr.bf16.gmra.mrb[0].mxu0 %v1340
        %v1671 = vpop.f32.mrb[0].mxu0
        %v1672 = vadd.f32 0.0, %v1671
        %v1673 = vpop.f32.mrb[0].mxu0
        %v1674 = vpop.f32.mrb[0].mxu0
        %v1675 = vadd.f32 0.0, %v1674
        %v1676 = vpop.f32.mrb[0].mxu0
        %1677 = vmatprep.mubr.bf16.mxu0 0
        %1678 = vmatmul.mubr.bf16.gmra.mrb[0].mxu0 %v1341
        %v1679 = vpop.f32.mrb[0].mxu0
        %v1680 = vadd.f32 0.0, %v1679
        %v1681 = vpop.f32.mrb[0].mxu0
        %v1682 = vpop.f32.mrb[0].mxu0
        %v1683 = vadd.f32 0.0, %v1682
        %v1684 = vpop.f32.mrb[0].mxu0
        %1685 = vmatprep.mubr.bf16.mxu0 0
        %1686 = vmatmul.mubr.bf16.gmra.mrb[0].mxu0 %v1342
        %v1687 = vpop.f32.mrb[0].mxu0
        %v1688 = vadd.f32 0.0, %v1687
        %v1689 = vpop.f32.mrb[0].mxu0
        %v1690 = vpop.f32.mrb[0].mxu0
        %v1691 = vadd.f32 0.0, %v1690
        %v1692 = vpop.f32.mrb[0].mxu0
        %1693 = vmatprep.mubr.bf16.mxu0 0
        %1694 = vmatmul.mubr.bf16.gmra.mrb[0].mxu0 %v1343
        %v1695 = vpop.f32.mrb[0].mxu0
        %v1696 = vadd.f32 0.0, %v1695
        %v1697 = vpop.f32.mrb[0].mxu0
        %v1698 = vpop.f32.mrb[0].mxu0
        %v1699 = vadd.f32 0.0, %v1698
        %v1700 = vpop.f32.mrb[0].mxu0
        %1701 = vmatprep.mubr.bf16.mxu0 0
        %1702 = vmatmul.mubr.bf16.gmra.mrb[0].mxu0 %v1344
        %v1703 = vpop.f32.mrb[0].mxu0
        %v1704 = vadd.f32 0.0, %v1703
        %v1705 = vpop.f32.mrb[0].mxu0
        %v1706 = vpop.f32.mrb[0].mxu0
        %v1707 = vadd.f32 0.0, %v1706
        %v1708 = vpop.f32.mrb[0].mxu0
        %1709 = vmatprep.mubr.bf16.mxu0 0
        %1710 = vmatmul.mubr.bf16.gmra.mrb[0].mxu0 %v1345
        %v1711 = vpop.f32.mrb[0].mxu0
        %v1712 = vadd.f32 0.0, %v1711
        %v1713 = vpop.f32.mrb[0].mxu0
        %v1714 = vpop.f32.mrb[0].mxu0
        %v1715 = vadd.f32 0.0, %v1714
        %v1716 = vpop.f32.mrb[0].mxu0
        %1717 = vmatprep.mubr.bf16.mxu0 0
        %1718 = vmatmul.mubr.bf16.gmra.mrb[0].mxu0 %v1346
        %v1719 = vpop.f32.mrb[0].mxu0
        %v1720 = vadd.f32 0.0, %v1719
        %v1721 = vpop.f32.mrb[0].mxu0
        %v1722 = vpop.f32.mrb[0].mxu0
        %v1723 = vadd.f32 0.0, %v1722
        %v1724 = vpop.f32.mrb[0].mxu0
        %1725 = vmatprep.mubr.bf16.mxu0 0
        %1726 = vmatmul.mubr.bf16.gmra.mrb[0].mxu0 %v1347
        %v1727 = vpop.f32.mrb[0].mxu0
        %v1728 = vadd.f32 0.0, %v1727
        %v1729 = vpop.f32.mrb[0].mxu0
        %v1730 = vpop.f32.mrb[0].mxu0
        %v1731 = vadd.f32 0.0, %v1730
        %v1732 = vpop.f32.mrb[0].mxu0
        %1733 = vdwg.mxu0
        %v1734 = vadd.f32 %v1557, %v1672
        %v1735 = vadd.f32 %v1558, %v1675
        %v1736 = vadd.f32 %v1559, %v1680
        %v1737 = vadd.f32 %v1560, %v1683
        %v1738 = vadd.f32 %v1561, %v1688
        %v1739 = vadd.f32 %v1562, %v1691
        %v1740 = vadd.f32 %v1563, %v1696
        %v1741 = vadd.f32 %v1564, %v1699
        %v1742 = vadd.f32 %v1565, %v1704
        %v1743 = vadd.f32 %v1566, %v1707
        %v1744 = vadd.f32 %v1567, %v1712
        %v1745 = vadd.f32 %v1568, %v1715
        %v1746 = vadd.f32 %v1569, %v1720
        %v1747 = vadd.f32 %v1570, %v1723
        %v1748 = vadd.f32 %v1571, %v1728
        %v1749 = vadd.f32 %v1572, %v1731
        %v1750 = vld [vmem:[#allocation8 + $0x140] sm:$0xf]
        %v1751 = vld [vmem:[#allocation8 + $0x144] sm:$0xf]
        %v1752 = vld [vmem:[#allocation8 + $0x148] sm:$0xf]
        %v1753 = vld [vmem:[#allocation8 + $0x14c] sm:$0xf]
        %v1754 = vld [vmem:[#allocation8 + $0x150] sm:$0xf]
        %v1755 = vld [vmem:[#allocation8 + $0x154] sm:$0xf]
        %v1756 = vld [vmem:[#allocation8 + $0x158] sm:$0xf]
        %v1757 = vld [vmem:[#allocation8 + $0x15c] sm:$0xf]
        %v1758 = vld [vmem:[#allocation8 + $0x160] sm:$0xf]
        %v1759 = vld [vmem:[#allocation8 + $0x164] sm:$0xf]
        %v1760 = vld [vmem:[#allocation8 + $0x168] sm:$0xf]
        %v1761 = vld [vmem:[#allocation8 + $0x16c] sm:$0xf]
        %v1762 = vld [vmem:[#allocation8 + $0x170] sm:$0xf]
        %v1763 = vld [vmem:[#allocation8 + $0x174] sm:$0xf]
        %v1764 = vld [vmem:[#allocation8 + $0x178] sm:$0xf]
        %v1765 = vld [vmem:[#allocation8 + $0x17c] sm:$0xf]
        %v1782 = vunpack.c.l.b16 %v1750
        %v1783 = vunpack.c.l.b16 %v1751
        %v1784 = vunpack.c.l.b16 %v1752
        %v1785 = vunpack.c.l.b16 %v1753
        %v1786 = vunpack.c.l.b16 %v1754
        %v1787 = vunpack.c.l.b16 %v1755
        %v1788 = vunpack.c.l.b16 %v1756
        %v1789 = vunpack.c.l.b16 %v1757
        %v1790 = vunpack.c.l.b16 %v1758
        %v1791 = vunpack.c.l.b16 %v1759
        %v1792 = vunpack.c.l.b16 %v1760
        %v1793 = vunpack.c.l.b16 %v1761
        %v1794 = vunpack.c.l.b16 %v1762
        %v1795 = vunpack.c.l.b16 %v1763
        %v1796 = vunpack.c.l.b16 %v1764
        %v1797 = vunpack.c.l.b16 %v1765
        %v1798 = vpack.c.b16 %v1783, %v1782
        %v1799 = vpack.c.b16 %v1785, %v1784
        %v1800 = vpack.c.b16 %v1787, %v1786
        %v1801 = vpack.c.b16 %v1789, %v1788
        %v1802 = vpack.c.b16 %v1791, %v1790
        %v1803 = vpack.c.b16 %v1793, %v1792
        %v1804 = vpack.c.b16 %v1795, %v1794
        %v1805 = vpack.c.b16 %v1797, %v1796
        %1814 = vmatprep.subr.bf16.mxu0 0
        %1815 = vmatpush1.bf16.msra.mxu0 %v1798
        %1816 = vmatprep.subr.bf16.mxu0 0
        %1817 = vmatpush1.bf16.msra.mxu0 %v1799
        %1818 = vmatprep.subr.bf16.mxu0 0
        %1819 = vmatpush1.bf16.msra.mxu0 %v1800
        %1820 = vmatprep.subr.bf16.mxu0 0
        %1821 = vmatpush1.bf16.msra.mxu0 %v1801
        %1822 = vmatprep.subr.bf16.mxu0 0
        %1823 = vmatpush1.bf16.msra.mxu0 %v1802
        %1824 = vmatprep.subr.bf16.mxu0 0
        %1825 = vmatpush1.bf16.msra.mxu0 %v1803
        %1826 = vmatprep.subr.bf16.mxu0 0
        %1827 = vmatpush1.bf16.msra.mxu0 %v1804
        %1828 = vmatprep.subr.bf16.mxu0 0
        %1829 = vmatpush1.bf16.msra.mxu0 %v1805
        %1830 = vmatprep.subr.bf16.mxu0 0
        %1831 = vmatpush1.bf16.msra.mxu0 0
        %1832 = vmatprep.subr.bf16.mxu0 0
        %1833 = vmatpush1.bf16.msra.mxu0 0
        %1834 = vmatprep.subr.bf16.mxu0 0
        %1835 = vmatpush1.bf16.msra.mxu0 0
        %1836 = vmatprep.subr.bf16.mxu0 0
        %1837 = vmatpush1.bf16.msra.mxu0 0
        %1838 = vmatprep.subr.bf16.mxu0 0
        %1839 = vmatpush1.bf16.msra.mxu0 0
        %1840 = vmatprep.subr.bf16.mxu0 0
        %1841 = vmatpush1.bf16.msra.mxu0 0
        %1842 = vmatprep.subr.bf16.mxu0 0
        %1843 = vmatpush1.bf16.msra.mxu0 0
        %1844 = vmatprep.subr.bf16.mxu0 0
        %1845 = vmatpush1.bf16.msra.mxu0 0
        %1846 = vmatprep.mubr.bf16.mxu0 0
        %1847 = vmatmul.mubr.bf16.gmra.mrb[0].mxu0 %v1340
        %v1848 = vpop.f32.mrb[0].mxu0
        %v1849 = vadd.f32 0.0, %v1848
        %v1850 = vpop.f32.mrb[0].mxu0
        %v1851 = vpop.f32.mrb[0].mxu0
        %v1852 = vadd.f32 0.0, %v1851
        %v1853 = vpop.f32.mrb[0].mxu0
        %1854 = vmatprep.mubr.bf16.mxu0 0
        %1855 = vmatmul.mubr.bf16.gmra.mrb[0].mxu0 %v1341
        %v1856 = vpop.f32.mrb[0].mxu0
        %v1857 = vadd.f32 0.0, %v1856
        %v1858 = vpop.f32.mrb[0].mxu0
        %v1859 = vpop.f32.mrb[0].mxu0
        %v1860 = vadd.f32 0.0, %v1859
        %v1861 = vpop.f32.mrb[0].mxu0
        %1862 = vmatprep.mubr.bf16.mxu0 0
        %1863 = vmatmul.mubr.bf16.gmra.mrb[0].mxu0 %v1342
        %v1864 = vpop.f32.mrb[0].mxu0
        %v1865 = vadd.f32 0.0, %v1864
        %v1866 = vpop.f32.mrb[0].mxu0
        %v1867 = vpop.f32.mrb[0].mxu0
        %v1868 = vadd.f32 0.0, %v1867
        %v1869 = vpop.f32.mrb[0].mxu0
        %1870 = vmatprep.mubr.bf16.mxu0 0
        %1871 = vmatmul.mubr.bf16.gmra.mrb[0].mxu0 %v1343
        %v1872 = vpop.f32.mrb[0].mxu0
        %v1873 = vadd.f32 0.0, %v1872
        %v1874 = vpop.f32.mrb[0].mxu0
        %v1875 = vpop.f32.mrb[0].mxu0
        %v1876 = vadd.f32 0.0, %v1875
        %v1877 = vpop.f32.mrb[0].mxu0
        %1878 = vmatprep.mubr.bf16.mxu0 0
        %1879 = vmatmul.mubr.bf16.gmra.mrb[0].mxu0 %v1344
        %v1880 = vpop.f32.mrb[0].mxu0
        %v1881 = vadd.f32 0.0, %v1880
        %v1882 = vpop.f32.mrb[0].mxu0
        %v1883 = vpop.f32.mrb[0].mxu0
        %v1884 = vadd.f32 0.0, %v1883
        %v1885 = vpop.f32.mrb[0].mxu0
        %1886 = vmatprep.mubr.bf16.mxu0 0
        %1887 = vmatmul.mubr.bf16.gmra.mrb[0].mxu0 %v1345
        %v1888 = vpop.f32.mrb[0].mxu0
        %v1889 = vadd.f32 0.0, %v1888
        %v1890 = vpop.f32.mrb[0].mxu0
        %v1891 = vpop.f32.mrb[0].mxu0
        %v1892 = vadd.f32 0.0, %v1891
        %v1893 = vpop.f32.mrb[0].mxu0
        %1894 = vmatprep.mubr.bf16.mxu0 0
        %1895 = vmatmul.mubr.bf16.gmra.mrb[0].mxu0 %v1346
        %v1896 = vpop.f32.mrb[0].mxu0
        %v1897 = vadd.f32 0.0, %v1896
        %v1898 = vpop.f32.mrb[0].mxu0
        %v1899 = vpop.f32.mrb[0].mxu0
        %v1900 = vadd.f32 0.0, %v1899
        %v1901 = vpop.f32.mrb[0].mxu0
        %1902 = vmatprep.mubr.bf16.mxu0 0
        %1903 = vmatmul.mubr.bf16.gmra.mrb[0].mxu0 %v1347
        %v1904 = vpop.f32.mrb[0].mxu0
        %v1905 = vadd.f32 0.0, %v1904
        %v1906 = vpop.f32.mrb[0].mxu0
        %v1907 = vpop.f32.mrb[0].mxu0
        %v1908 = vadd.f32 0.0, %v1907
        %v1909 = vpop.f32.mrb[0].mxu0
        %1910 = vdwg.mxu0
        %v1911 = vrot.slane %v1849, 1
        %v1912 = vrot.slane %v1852, 1
        %v1913 = vrot.slane %v1857, 1
        %v1914 = vrot.slane %v1860, 1
        %v1915 = vrot.slane %v1865, 1
        %v1916 = vrot.slane %v1868, 1
        %v1917 = vrot.slane %v1873, 1
        %v1918 = vrot.slane %v1876, 1
        %v1919 = vrot.slane %v1881, 1
        %v1920 = vrot.slane %v1884, 1
        %v1921 = vrot.slane %v1889, 1
        %v1922 = vrot.slane %v1892, 1
        %v1923 = vrot.slane %v1897, 1
        %v1924 = vrot.slane %v1900, 1
        %v1925 = vrot.slane %v1905, 1
        %v1926 = vrot.slane %v1908, 1
        %v1927 = vsel %vm1287, %v1925, %v1926
        %v1928 = vsel %vm1287, %v1924, %v1925
        %v1929 = vsel %vm1287, %v1923, %v1924
        %v1930 = vsel %vm1287, %v1922, %v1923
        %v1931 = vsel %vm1287, %v1921, %v1922
        %v1932 = vsel %vm1287, %v1920, %v1921
        %v1933 = vsel %vm1287, %v1919, %v1920
        %v1934 = vsel %vm1287, %v1918, %v1919
        %v1935 = vsel %vm1287, %v1917, %v1918
        %v1936 = vsel %vm1287, %v1916, %v1917
        %v1937 = vsel %vm1287, %v1915, %v1916
        %v1938 = vsel %vm1287, %v1914, %v1915
        %v1939 = vsel %vm1287, %v1913, %v1914
        %v1940 = vsel %vm1287, %v1912, %v1913
        %v1941 = vsel %vm1287, %v1911, %v1912
        %v1942 = vsel %vm1287, %v1926, %v1911
        %v1943 = vsel %vm1306, %v1941, 0.0
        %v1944 = vsel %vm1307, %v1940, 0.0
        %v1945 = vsel %vm1306, %v1939, 0.0
        %v1946 = vsel %vm1307, %v1938, 0.0
        %v1947 = vsel %vm1306, %v1937, 0.0
        %v1948 = vsel %vm1307, %v1936, 0.0
        %v1949 = vsel %vm1306, %v1935, 0.0
        %v1950 = vsel %vm1307, %v1934, 0.0
        %v1951 = vsel %vm1306, %v1933, 0.0
        %v1952 = vsel %vm1307, %v1932, 0.0
        %v1953 = vsel %vm1306, %v1931, 0.0
        %v1954 = vsel %vm1307, %v1930, 0.0
        %v1955 = vsel %vm1306, %v1929, 0.0
        %v1956 = vsel %vm1307, %v1928, 0.0
        %v1957 = vsel %vm1306, %v1927, 0.0
        %v1958 = vsel %vm1307, %v1942, 0.0
        %v1959 = vadd.f32 %v1734, %v1943
        %v1960 = vadd.f32 %v1735, %v1944
        %v1961 = vadd.f32 %v1736, %v1945
        %v1962 = vadd.f32 %v1737, %v1946
        %v1963 = vadd.f32 %v1738, %v1947
        %v1964 = vadd.f32 %v1739, %v1948
        %v1965 = vadd.f32 %v1740, %v1949
        %v1966 = vadd.f32 %v1741, %v1950
        %v1967 = vadd.f32 %v1742, %v1951
        %v1968 = vadd.f32 %v1743, %v1952
        %v1969 = vadd.f32 %v1744, %v1953
        %v1970 = vadd.f32 %v1745, %v1954
        %v1971 = vadd.f32 %v1746, %v1955
        %v1972 = vadd.f32 %v1747, %v1956
        %v1973 = vadd.f32 %v1748, %v1957
        %v1974 = vadd.f32 %v1749, %v1958
        %v1975 = vld [vmem:[#allocation2 + $0x10] sm:$0xff]
        %v1976 = vld [vmem:[#allocation2 + $0x18] sm:$0xff]
        %v1977 = vld [vmem:[#allocation2 + $0x20] sm:$0xff]
        %v1978 = vld [vmem:[#allocation2 + $0x28] sm:$0xff]
        %v1979 = vld [vmem:[#allocation2 + $0x30] sm:$0xff]
        %v1980 = vld [vmem:[#allocation2 + $0x38] sm:$0xff]
        %v1981 = vld [vmem:[#allocation2 + $0x40] sm:$0xff]
        %v1982 = vld [vmem:[#allocation2 + $0x48] sm:$0xff]
        %v1983 = vld [vmem:[#allocation8 + $0x180] sm:$0xf]
        %v1984 = vld [vmem:[#allocation8 + $0x184] sm:$0xf]
        %v1985 = vld [vmem:[#allocation8 + $0x188] sm:$0xf]
        %v1986 = vld [vmem:[#allocation8 + $0x18c] sm:$0xf]
        %v1987 = vld [vmem:[#allocation8 + $0x190] sm:$0xf]
        %v1988 = vld [vmem:[#allocation8 + $0x194] sm:$0xf]
        %v1989 = vld [vmem:[#allocation8 + $0x198] sm:$0xf]
        %v1990 = vld [vmem:[#allocation8 + $0x19c] sm:$0xf]
        %v1991 = vld [vmem:[#allocation8 + $0x1a0] sm:$0xf]
        %v1992 = vld [vmem:[#allocation8 + $0x1a4] sm:$0xf]
        %v1993 = vld [vmem:[#allocation8 + $0x1a8] sm:$0xf]
        %v1994 = vld [vmem:[#allocation8 + $0x1ac] sm:$0xf]
        %v1995 = vld [vmem:[#allocation8 + $0x1b0] sm:$0xf]
        %v1996 = vld [vmem:[#allocation8 + $0x1b4] sm:$0xf]
        %v1997 = vld [vmem:[#allocation8 + $0x1b8] sm:$0xf]
        %v1998 = vld [vmem:[#allocation8 + $0x1bc] sm:$0xf]
        %v2015 = vunpack.c.l.b16 %v1983
        %v2016 = vunpack.c.l.b16 %v1984
        %v2017 = vunpack.c.l.b16 %v1985
        %v2018 = vunpack.c.l.b16 %v1986
        %v2019 = vunpack.c.l.b16 %v1987
        %v2020 = vunpack.c.l.b16 %v1988
        %v2021 = vunpack.c.l.b16 %v1989
        %v2022 = vunpack.c.l.b16 %v1990
        %v2023 = vunpack.c.l.b16 %v1991
        %v2024 = vunpack.c.l.b16 %v1992
        %v2025 = vunpack.c.l.b16 %v1993
        %v2026 = vunpack.c.l.b16 %v1994
        %v2027 = vunpack.c.l.b16 %v1995
        %v2028 = vunpack.c.l.b16 %v1996
        %v2029 = vunpack.c.l.b16 %v1997
        %v2030 = vunpack.c.l.b16 %v1998
        %v2031 = vpack.c.b16 %v2016, %v2015
        %v2032 = vpack.c.b16 %v2018, %v2017
        %v2033 = vpack.c.b16 %v2020, %v2019
        %v2034 = vpack.c.b16 %v2022, %v2021
        %v2035 = vpack.c.b16 %v2024, %v2023
        %v2036 = vpack.c.b16 %v2026, %v2025
        %v2037 = vpack.c.b16 %v2028, %v2027
        %v2038 = vpack.c.b16 %v2030, %v2029
        %2047 = vmatprep.subr.bf16.mxu0 0
        %2048 = vmatpush1.bf16.msra.mxu0 %v2031
        %2049 = vmatprep.subr.bf16.mxu0 0
        %2050 = vmatpush1.bf16.msra.mxu0 %v2032
        %2051 = vmatprep.subr.bf16.mxu0 0
        %2052 = vmatpush1.bf16.msra.mxu0 %v2033
        %2053 = vmatprep.subr.bf16.mxu0 0
        %2054 = vmatpush1.bf16.msra.mxu0 %v2034
        %2055 = vmatprep.subr.bf16.mxu0 0
        %2056 = vmatpush1.bf16.msra.mxu0 %v2035
        %2057 = vmatprep.subr.bf16.mxu0 0
        %2058 = vmatpush1.bf16.msra.mxu0 %v2036
        %2059 = vmatprep.subr.bf16.mxu0 0
        %2060 = vmatpush1.bf16.msra.mxu0 %v2037
        %2061 = vmatprep.subr.bf16.mxu0 0
        %2062 = vmatpush1.bf16.msra.mxu0 %v2038
        %2063 = vmatprep.subr.bf16.mxu0 0
        %2064 = vmatpush1.bf16.msra.mxu0 0
        %2065 = vmatprep.subr.bf16.mxu0 0
        %2066 = vmatpush1.bf16.msra.mxu0 0
        %2067 = vmatprep.subr.bf16.mxu0 0
        %2068 = vmatpush1.bf16.msra.mxu0 0
        %2069 = vmatprep.subr.bf16.mxu0 0
        %2070 = vmatpush1.bf16.msra.mxu0 0
        %2071 = vmatprep.subr.bf16.mxu0 0
        %2072 = vmatpush1.bf16.msra.mxu0 0
        %2073 = vmatprep.subr.bf16.mxu0 0
        %2074 = vmatpush1.bf16.msra.mxu0 0
        %2075 = vmatprep.subr.bf16.mxu0 0
        %2076 = vmatpush1.bf16.msra.mxu0 0
        %2077 = vmatprep.subr.bf16.mxu0 0
        %2078 = vmatpush1.bf16.msra.mxu0 0
        %2079 = vmatprep.mubr.bf16.mxu0 0
        %2080 = vmatmul.mubr.bf16.gmra.mrb[0].mxu0 %v1975
        %v2081 = vpop.f32.mrb[0].mxu0
        %v2082 = vadd.f32 0.0, %v2081
        %v2083 = vpop.f32.mrb[0].mxu0
        %v2084 = vpop.f32.mrb[0].mxu0
        %v2085 = vadd.f32 0.0, %v2084
        %v2086 = vpop.f32.mrb[0].mxu0
        %2087 = vmatprep.mubr.bf16.mxu0 0
        %2088 = vmatmul.mubr.bf16.gmra.mrb[0].mxu0 %v1976
        %v2089 = vpop.f32.mrb[0].mxu0
        %v2090 = vadd.f32 0.0, %v2089
        %v2091 = vpop.f32.mrb[0].mxu0
        %v2092 = vpop.f32.mrb[0].mxu0
        %v2093 = vadd.f32 0.0, %v2092
        %v2094 = vpop.f32.mrb[0].mxu0
        %2095 = vmatprep.mubr.bf16.mxu0 0
        %2096 = vmatmul.mubr.bf16.gmra.mrb[0].mxu0 %v1977
        %v2097 = vpop.f32.mrb[0].mxu0
        %v2098 = vadd.f32 0.0, %v2097
        %v2099 = vpop.f32.mrb[0].mxu0
        %v2100 = vpop.f32.mrb[0].mxu0
        %v2101 = vadd.f32 0.0, %v2100
        %v2102 = vpop.f32.mrb[0].mxu0
        %2103 = vmatprep.mubr.bf16.mxu0 0
        %2104 = vmatmul.mubr.bf16.gmra.mrb[0].mxu0 %v1978
        %v2105 = vpop.f32.mrb[0].mxu0
        %v2106 = vadd.f32 0.0, %v2105
        %v2107 = vpop.f32.mrb[0].mxu0
        %v2108 = vpop.f32.mrb[0].mxu0
        %v2109 = vadd.f32 0.0, %v2108
        %v2110 = vpop.f32.mrb[0].mxu0
        %2111 = vmatprep.mubr.bf16.mxu0 0
        %2112 = vmatmul.mubr.bf16.gmra.mrb[0].mxu0 %v1979
        %v2113 = vpop.f32.mrb[0].mxu0
        %v2114 = vadd.f32 0.0, %v2113
        %v2115 = vpop.f32.mrb[0].mxu0
        %v2116 = vpop.f32.mrb[0].mxu0
        %v2117 = vadd.f32 0.0, %v2116
        %v2118 = vpop.f32.mrb[0].mxu0
        %2119 = vmatprep.mubr.bf16.mxu0 0
        %2120 = vmatmul.mubr.bf16.gmra.mrb[0].mxu0 %v1980
        %v2121 = vpop.f32.mrb[0].mxu0
        %v2122 = vadd.f32 0.0, %v2121
        %v2123 = vpop.f32.mrb[0].mxu0
        %v2124 = vpop.f32.mrb[0].mxu0
        %v2125 = vadd.f32 0.0, %v2124
        %v2126 = vpop.f32.mrb[0].mxu0
        %2127 = vmatprep.mubr.bf16.mxu0 0
        %2128 = vmatmul.mubr.bf16.gmra.mrb[0].mxu0 %v1981
        %v2129 = vpop.f32.mrb[0].mxu0
        %v2130 = vadd.f32 0.0, %v2129
        %v2131 = vpop.f32.mrb[0].mxu0
        %v2132 = vpop.f32.mrb[0].mxu0
        %v2133 = vadd.f32 0.0, %v2132
        %v2134 = vpop.f32.mrb[0].mxu0
        %2135 = vmatprep.mubr.bf16.mxu0 0
        %2136 = vmatmul.mubr.bf16.gmra.mrb[0].mxu0 %v1982
        %v2137 = vpop.f32.mrb[0].mxu0
        %v2138 = vadd.f32 0.0, %v2137
        %v2139 = vpop.f32.mrb[0].mxu0
        %v2140 = vpop.f32.mrb[0].mxu0
        %v2141 = vadd.f32 0.0, %v2140
        %v2142 = vpop.f32.mrb[0].mxu0
        %2143 = vdwg.mxu0
        %v2144 = vrot.slane %v2082, 7
        %v2145 = vrot.slane %v2085, 7
        %v2146 = vrot.slane %v2090, 7
        %v2147 = vrot.slane %v2093, 7
        %v2148 = vrot.slane %v2098, 7
        %v2149 = vrot.slane %v2101, 7
        %v2150 = vrot.slane %v2106, 7
        %v2151 = vrot.slane %v2109, 7
        %v2152 = vrot.slane %v2114, 7
        %v2153 = vrot.slane %v2117, 7
        %v2154 = vrot.slane %v2122, 7
        %v2155 = vrot.slane %v2125, 7
        %v2156 = vrot.slane %v2130, 7
        %v2157 = vrot.slane %v2133, 7
        %v2158 = vrot.slane %v2138, 7
        %v2159 = vrot.slane %v2141, 7
        %v2160 = vsel %vm896, %v2158, %v2159
        %v2161 = vsel %vm896, %v2157, %v2158
        %v2162 = vsel %vm896, %v2156, %v2157
        %v2163 = vsel %vm896, %v2155, %v2156
        %v2164 = vsel %vm896, %v2154, %v2155
        %v2165 = vsel %vm896, %v2153, %v2154
        %v2166 = vsel %vm896, %v2152, %v2153
        %v2167 = vsel %vm896, %v2151, %v2152
        %v2168 = vsel %vm896, %v2150, %v2151
        %v2169 = vsel %vm896, %v2149, %v2150
        %v2170 = vsel %vm896, %v2148, %v2149
        %v2171 = vsel %vm896, %v2147, %v2148
        %v2172 = vsel %vm896, %v2146, %v2147
        %v2173 = vsel %vm896, %v2145, %v2146
        %v2174 = vsel %vm896, %v2144, %v2145
        %v2175 = vsel %vm896, %v2159, %v2144
        %v2176 = vsel %vm915, %v2175, 0.0
        %v2177 = vsel %vm916, %v2174, 0.0
        %v2178 = vsel %vm915, %v2173, 0.0
        %v2179 = vsel %vm916, %v2172, 0.0
        %v2180 = vsel %vm915, %v2171, 0.0
        %v2181 = vsel %vm916, %v2170, 0.0
        %v2182 = vsel %vm915, %v2169, 0.0
        %v2183 = vsel %vm916, %v2168, 0.0
        %v2184 = vsel %vm915, %v2167, 0.0
        %v2185 = vsel %vm916, %v2166, 0.0
        %v2186 = vsel %vm915, %v2165, 0.0
        %v2187 = vsel %vm916, %v2164, 0.0
        %v2188 = vsel %vm915, %v2163, 0.0
        %v2189 = vsel %vm916, %v2162, 0.0
        %v2190 = vsel %vm915, %v2161, 0.0
        %v2191 = vsel %vm916, %v2160, 0.0
        %v2192 = vadd.f32 %v1959, %v2176
        %v2193 = vadd.f32 %v1960, %v2177
        %v2194 = vadd.f32 %v1961, %v2178
        %v2195 = vadd.f32 %v1962, %v2179
        %v2196 = vadd.f32 %v1963, %v2180
        %v2197 = vadd.f32 %v1964, %v2181
        %v2198 = vadd.f32 %v1965, %v2182
        %v2199 = vadd.f32 %v1966, %v2183
        %v2200 = vadd.f32 %v1967, %v2184
        %v2201 = vadd.f32 %v1968, %v2185
        %v2202 = vadd.f32 %v1969, %v2186
        %v2203 = vadd.f32 %v1970, %v2187
        %v2204 = vadd.f32 %v1971, %v2188
        %v2205 = vadd.f32 %v1972, %v2189
        %v2206 = vadd.f32 %v1973, %v2190
        %v2207 = vadd.f32 %v1974, %v2191
        %v2208 = vld [vmem:[#allocation8 + $0x1c0] sm:$0xf]
        %v2209 = vld [vmem:[#allocation8 + $0x1c4] sm:$0xf]
        %v2210 = vld [vmem:[#allocation8 + $0x1c8] sm:$0xf]
        %v2211 = vld [vmem:[#allocation8 + $0x1cc] sm:$0xf]
        %v2212 = vld [vmem:[#allocation8 + $0x1d0] sm:$0xf]
        %v2213 = vld [vmem:[#allocation8 + $0x1d4] sm:$0xf]
        %v2214 = vld [vmem:[#allocation8 + $0x1d8] sm:$0xf]
        %v2215 = vld [vmem:[#allocation8 + $0x1dc] sm:$0xf]
        %v2216 = vld [vmem:[#allocation8 + $0x1e0] sm:$0xf]
        %v2217 = vld [vmem:[#allocation8 + $0x1e4] sm:$0xf]
        %v2218 = vld [vmem:[#allocation8 + $0x1e8] sm:$0xf]
        %v2219 = vld [vmem:[#allocation8 + $0x1ec] sm:$0xf]
        %v2220 = vld [vmem:[#allocation8 + $0x1f0] sm:$0xf]
        %v2221 = vld [vmem:[#allocation8 + $0x1f4] sm:$0xf]
        %v2222 = vld [vmem:[#allocation8 + $0x1f8] sm:$0xf]
        %v2223 = vld [vmem:[#allocation8 + $0x1fc] sm:$0xf]
        %v2240 = vunpack.c.l.b16 %v2208
        %v2241 = vunpack.c.l.b16 %v2209
        %v2242 = vunpack.c.l.b16 %v2210
        %v2243 = vunpack.c.l.b16 %v2211
        %v2244 = vunpack.c.l.b16 %v2212
        %v2245 = vunpack.c.l.b16 %v2213
        %v2246 = vunpack.c.l.b16 %v2214
        %v2247 = vunpack.c.l.b16 %v2215
        %v2248 = vunpack.c.l.b16 %v2216
        %v2249 = vunpack.c.l.b16 %v2217
        %v2250 = vunpack.c.l.b16 %v2218
        %v2251 = vunpack.c.l.b16 %v2219
        %v2252 = vunpack.c.l.b16 %v2220
        %v2253 = vunpack.c.l.b16 %v2221
        %v2254 = vunpack.c.l.b16 %v2222
        %v2255 = vunpack.c.l.b16 %v2223
        %v2256 = vpack.c.b16 %v2241, %v2240
        %v2257 = vpack.c.b16 %v2243, %v2242
        %v2258 = vpack.c.b16 %v2245, %v2244
        %v2259 = vpack.c.b16 %v2247, %v2246
        %v2260 = vpack.c.b16 %v2249, %v2248
        %v2261 = vpack.c.b16 %v2251, %v2250
        %v2262 = vpack.c.b16 %v2253, %v2252
        %v2263 = vpack.c.b16 %v2255, %v2254
        %2272 = vmatprep.subr.bf16.mxu0 0
        %2273 = vmatpush1.bf16.msra.mxu0 %v2256
        %2274 = vmatprep.subr.bf16.mxu0 0
        %2275 = vmatpush1.bf16.msra.mxu0 %v2257
        %2276 = vmatprep.subr.bf16.mxu0 0
        %2277 = vmatpush1.bf16.msra.mxu0 %v2258
        %2278 = vmatprep.subr.bf16.mxu0 0
        %2279 = vmatpush1.bf16.msra.mxu0 %v2259
        %2280 = vmatprep.subr.bf16.mxu0 0
        %2281 = vmatpush1.bf16.msra.mxu0 %v2260
        %2282 = vmatprep.subr.bf16.mxu0 0
        %2283 = vmatpush1.bf16.msra.mxu0 %v2261
        %2284 = vmatprep.subr.bf16.mxu0 0
        %2285 = vmatpush1.bf16.msra.mxu0 %v2262
        %2286 = vmatprep.subr.bf16.mxu0 0
        %2287 = vmatpush1.bf16.msra.mxu0 %v2263
        %2288 = vmatprep.subr.bf16.mxu0 0
        %2289 = vmatpush1.bf16.msra.mxu0 0
        %2290 = vmatprep.subr.bf16.mxu0 0
        %2291 = vmatpush1.bf16.msra.mxu0 0
        %2292 = vmatprep.subr.bf16.mxu0 0
        %2293 = vmatpush1.bf16.msra.mxu0 0
        %2294 = vmatprep.subr.bf16.mxu0 0
        %2295 = vmatpush1.bf16.msra.mxu0 0
        %2296 = vmatprep.subr.bf16.mxu0 0
        %2297 = vmatpush1.bf16.msra.mxu0 0
        %2298 = vmatprep.subr.bf16.mxu0 0
        %2299 = vmatpush1.bf16.msra.mxu0 0
        %2300 = vmatprep.subr.bf16.mxu0 0
        %2301 = vmatpush1.bf16.msra.mxu0 0
        %2302 = vmatprep.subr.bf16.mxu0 0
        %2303 = vmatpush1.bf16.msra.mxu0 0
        %2304 = vmatprep.mubr.bf16.mxu0 0
        %2305 = vmatmul.mubr.bf16.gmra.mrb[0].mxu0 %v1975
        %v2306 = vpop.f32.mrb[0].mxu0
        %v2307 = vadd.f32 0.0, %v2306
        %v2308 = vpop.f32.mrb[0].mxu0
        %v2309 = vpop.f32.mrb[0].mxu0
        %v2310 = vadd.f32 0.0, %v2309
        %v2311 = vpop.f32.mrb[0].mxu0
        %2312 = vmatprep.mubr.bf16.mxu0 0
        %2313 = vmatmul.mubr.bf16.gmra.mrb[0].mxu0 %v1976
        %v2314 = vpop.f32.mrb[0].mxu0
        %v2315 = vadd.f32 0.0, %v2314
        %v2316 = vpop.f32.mrb[0].mxu0
        %v2317 = vpop.f32.mrb[0].mxu0
        %v2318 = vadd.f32 0.0, %v2317
        %v2319 = vpop.f32.mrb[0].mxu0
        %2320 = vmatprep.mubr.bf16.mxu0 0
        %2321 = vmatmul.mubr.bf16.gmra.mrb[0].mxu0 %v1977
        %v2322 = vpop.f32.mrb[0].mxu0
        %v2323 = vadd.f32 0.0, %v2322
        %v2324 = vpop.f32.mrb[0].mxu0
        %v2325 = vpop.f32.mrb[0].mxu0
        %v2326 = vadd.f32 0.0, %v2325
        %v2327 = vpop.f32.mrb[0].mxu0
        %2328 = vmatprep.mubr.bf16.mxu0 0
        %2329 = vmatmul.mubr.bf16.gmra.mrb[0].mxu0 %v1978
        %v2330 = vpop.f32.mrb[0].mxu0
        %v2331 = vadd.f32 0.0, %v2330
        %v2332 = vpop.f32.mrb[0].mxu0
        %v2333 = vpop.f32.mrb[0].mxu0
        %v2334 = vadd.f32 0.0, %v2333
        %v2335 = vpop.f32.mrb[0].mxu0
        %2336 = vmatprep.mubr.bf16.mxu0 0
        %2337 = vmatmul.mubr.bf16.gmra.mrb[0].mxu0 %v1979
        %v2338 = vpop.f32.mrb[0].mxu0
        %v2339 = vadd.f32 0.0, %v2338
        %v2340 = vpop.f32.mrb[0].mxu0
        %v2341 = vpop.f32.mrb[0].mxu0
        %v2342 = vadd.f32 0.0, %v2341
        %v2343 = vpop.f32.mrb[0].mxu0
        %2344 = vmatprep.mubr.bf16.mxu0 0
        %2345 = vmatmul.mubr.bf16.gmra.mrb[0].mxu0 %v1980
        %v2346 = vpop.f32.mrb[0].mxu0
        %v2347 = vadd.f32 0.0, %v2346
        %v2348 = vpop.f32.mrb[0].mxu0
        %v2349 = vpop.f32.mrb[0].mxu0
        %v2350 = vadd.f32 0.0, %v2349
        %v2351 = vpop.f32.mrb[0].mxu0
        %2352 = vmatprep.mubr.bf16.mxu0 0
        %2353 = vmatmul.mubr.bf16.gmra.mrb[0].mxu0 %v1981
        %v2354 = vpop.f32.mrb[0].mxu0
        %v2355 = vadd.f32 0.0, %v2354
        %v2356 = vpop.f32.mrb[0].mxu0
        %v2357 = vpop.f32.mrb[0].mxu0
        %v2358 = vadd.f32 0.0, %v2357
        %v2359 = vpop.f32.mrb[0].mxu0
        %2360 = vmatprep.mubr.bf16.mxu0 0
        %2361 = vmatmul.mubr.bf16.gmra.mrb[0].mxu0 %v1982
        %v2362 = vpop.f32.mrb[0].mxu0
        %v2363 = vadd.f32 0.0, %v2362
        %v2364 = vpop.f32.mrb[0].mxu0
        %v2365 = vpop.f32.mrb[0].mxu0
        %v2366 = vadd.f32 0.0, %v2365
        %v2367 = vpop.f32.mrb[0].mxu0
        %2368 = vdwg.mxu0
        %v2369 = vadd.f32 %v2192, %v2307
        %v2370 = vadd.f32 %v2193, %v2310
        %v2371 = vadd.f32 %v2194, %v2315
        %v2372 = vadd.f32 %v2195, %v2318
        %v2373 = vadd.f32 %v2196, %v2323
        %v2374 = vadd.f32 %v2197, %v2326
        %v2375 = vadd.f32 %v2198, %v2331
        %v2376 = vadd.f32 %v2199, %v2334
        %v2377 = vadd.f32 %v2200, %v2339
        %v2378 = vadd.f32 %v2201, %v2342
        %v2379 = vadd.f32 %v2202, %v2347
        %v2380 = vadd.f32 %v2203, %v2350
        %v2381 = vadd.f32 %v2204, %v2355
        %v2382 = vadd.f32 %v2205, %v2358
        %v2383 = vadd.f32 %v2206, %v2363
        %v2384 = vadd.f32 %v2207, %v2366
        %v2385 = vld [vmem:[#allocation8 + $0x200] sm:$0xf]
        %v2386 = vld [vmem:[#allocation8 + $0x204] sm:$0xf]
        %v2387 = vld [vmem:[#allocation8 + $0x208] sm:$0xf]
        %v2388 = vld [vmem:[#allocation8 + $0x20c] sm:$0xf]
        %v2389 = vld [vmem:[#allocation8 + $0x210] sm:$0xf]
        %v2390 = vld [vmem:[#allocation8 + $0x214] sm:$0xf]
        %v2391 = vld [vmem:[#allocation8 + $0x218] sm:$0xf]
        %v2392 = vld [vmem:[#allocation8 + $0x21c] sm:$0xf]
        %v2393 = vld [vmem:[#allocation8 + $0x220] sm:$0xf]
        %v2394 = vld [vmem:[#allocation8 + $0x224] sm:$0xf]
        %v2395 = vld [vmem:[#allocation8 + $0x228] sm:$0xf]
        %v2396 = vld [vmem:[#allocation8 + $0x22c] sm:$0xf]
        %v2397 = vld [vmem:[#allocation8 + $0x230] sm:$0xf]
        %v2398 = vld [vmem:[#allocation8 + $0x234] sm:$0xf]
        %v2399 = vld [vmem:[#allocation8 + $0x238] sm:$0xf]
        %v2400 = vld [vmem:[#allocation8 + $0x23c] sm:$0xf]
        %v2417 = vunpack.c.l.b16 %v2385
        %v2418 = vunpack.c.l.b16 %v2386
        %v2419 = vunpack.c.l.b16 %v2387
        %v2420 = vunpack.c.l.b16 %v2388
        %v2421 = vunpack.c.l.b16 %v2389
        %v2422 = vunpack.c.l.b16 %v2390
        %v2423 = vunpack.c.l.b16 %v2391
        %v2424 = vunpack.c.l.b16 %v2392
        %v2425 = vunpack.c.l.b16 %v2393
        %v2426 = vunpack.c.l.b16 %v2394
        %v2427 = vunpack.c.l.b16 %v2395
        %v2428 = vunpack.c.l.b16 %v2396
        %v2429 = vunpack.c.l.b16 %v2397
        %v2430 = vunpack.c.l.b16 %v2398
        %v2431 = vunpack.c.l.b16 %v2399
        %v2432 = vunpack.c.l.b16 %v2400
        %v2433 = vpack.c.b16 %v2418, %v2417
        %v2434 = vpack.c.b16 %v2420, %v2419
        %v2435 = vpack.c.b16 %v2422, %v2421
        %v2436 = vpack.c.b16 %v2424, %v2423
        %v2437 = vpack.c.b16 %v2426, %v2425
        %v2438 = vpack.c.b16 %v2428, %v2427
        %v2439 = vpack.c.b16 %v2430, %v2429
        %v2440 = vpack.c.b16 %v2432, %v2431
        %2449 = vmatprep.subr.bf16.mxu0 0
        %2450 = vmatpush1.bf16.msra.mxu0 %v2433
        %2451 = vmatprep.subr.bf16.mxu0 0
        %2452 = vmatpush1.bf16.msra.mxu0 %v2434
        %2453 = vmatprep.subr.bf16.mxu0 0
        %2454 = vmatpush1.bf16.msra.mxu0 %v2435
        %2455 = vmatprep.subr.bf16.mxu0 0
        %2456 = vmatpush1.bf16.msra.mxu0 %v2436
        %2457 = vmatprep.subr.bf16.mxu0 0
        %2458 = vmatpush1.bf16.msra.mxu0 %v2437
        %2459 = vmatprep.subr.bf16.mxu0 0
        %2460 = vmatpush1.bf16.msra.mxu0 %v2438
        %2461 = vmatprep.subr.bf16.mxu0 0
        %2462 = vmatpush1.bf16.msra.mxu0 %v2439
        %2463 = vmatprep.subr.bf16.mxu0 0
        %2464 = vmatpush1.bf16.msra.mxu0 %v2440
        %2465 = vmatprep.subr.bf16.mxu0 0
        %2466 = vmatpush1.bf16.msra.mxu0 0
        %2467 = vmatprep.subr.bf16.mxu0 0
        %2468 = vmatpush1.bf16.msra.mxu0 0
        %2469 = vmatprep.subr.bf16.mxu0 0
        %2470 = vmatpush1.bf16.msra.mxu0 0
        %2471 = vmatprep.subr.bf16.mxu0 0
        %2472 = vmatpush1.bf16.msra.mxu0 0
        %2473 = vmatprep.subr.bf16.mxu0 0
        %2474 = vmatpush1.bf16.msra.mxu0 0
        %2475 = vmatprep.subr.bf16.mxu0 0
        %2476 = vmatpush1.bf16.msra.mxu0 0
        %2477 = vmatprep.subr.bf16.mxu0 0
        %2478 = vmatpush1.bf16.msra.mxu0 0
        %2479 = vmatprep.subr.bf16.mxu0 0
        %2480 = vmatpush1.bf16.msra.mxu0 0
        %2481 = vmatprep.mubr.bf16.mxu0 0
        %2482 = vmatmul.mubr.bf16.gmra.mrb[0].mxu0 %v1975
        %v2483 = vpop.f32.mrb[0].mxu0
        %v2484 = vadd.f32 0.0, %v2483
        %v2485 = vpop.f32.mrb[0].mxu0
        %v2486 = vpop.f32.mrb[0].mxu0
        %v2487 = vadd.f32 0.0, %v2486
        %v2488 = vpop.f32.mrb[0].mxu0
        %2489 = vmatprep.mubr.bf16.mxu0 0
        %2490 = vmatmul.mubr.bf16.gmra.mrb[0].mxu0 %v1976
        %v2491 = vpop.f32.mrb[0].mxu0
        %v2492 = vadd.f32 0.0, %v2491
        %v2493 = vpop.f32.mrb[0].mxu0
        %v2494 = vpop.f32.mrb[0].mxu0
        %v2495 = vadd.f32 0.0, %v2494
        %v2496 = vpop.f32.mrb[0].mxu0
        %2497 = vmatprep.mubr.bf16.mxu0 0
        %2498 = vmatmul.mubr.bf16.gmra.mrb[0].mxu0 %v1977
        %v2499 = vpop.f32.mrb[0].mxu0
        %v2500 = vadd.f32 0.0, %v2499
        %v2501 = vpop.f32.mrb[0].mxu0
        %v2502 = vpop.f32.mrb[0].mxu0
        %v2503 = vadd.f32 0.0, %v2502
        %v2504 = vpop.f32.mrb[0].mxu0
        %2505 = vmatprep.mubr.bf16.mxu0 0
        %2506 = vmatmul.mubr.bf16.gmra.mrb[0].mxu0 %v1978
        %v2507 = vpop.f32.mrb[0].mxu0
        %v2508 = vadd.f32 0.0, %v2507
        %v2509 = vpop.f32.mrb[0].mxu0
        %v2510 = vpop.f32.mrb[0].mxu0
        %v2511 = vadd.f32 0.0, %v2510
        %v2512 = vpop.f32.mrb[0].mxu0
        %2513 = vmatprep.mubr.bf16.mxu0 0
        %2514 = vmatmul.mubr.bf16.gmra.mrb[0].mxu0 %v1979
        %v2515 = vpop.f32.mrb[0].mxu0
        %v2516 = vadd.f32 0.0, %v2515
        %v2517 = vpop.f32.mrb[0].mxu0
        %v2518 = vpop.f32.mrb[0].mxu0
        %v2519 = vadd.f32 0.0, %v2518
        %v2520 = vpop.f32.mrb[0].mxu0
        %2521 = vmatprep.mubr.bf16.mxu0 0
        %2522 = vmatmul.mubr.bf16.gmra.mrb[0].mxu0 %v1980
        %v2523 = vpop.f32.mrb[0].mxu0
        %v2524 = vadd.f32 0.0, %v2523
        %v2525 = vpop.f32.mrb[0].mxu0
        %v2526 = vpop.f32.mrb[0].mxu0
        %v2527 = vadd.f32 0.0, %v2526
        %v2528 = vpop.f32.mrb[0].mxu0
        %2529 = vmatprep.mubr.bf16.mxu0 0
        %2530 = vmatmul.mubr.bf16.gmra.mrb[0].mxu0 %v1981
        %v2531 = vpop.f32.mrb[0].mxu0
        %v2532 = vadd.f32 0.0, %v2531
        %v2533 = vpop.f32.mrb[0].mxu0
        %v2534 = vpop.f32.mrb[0].mxu0
        %v2535 = vadd.f32 0.0, %v2534
        %v2536 = vpop.f32.mrb[0].mxu0
        %2537 = vmatprep.mubr.bf16.mxu0 0
        %2538 = vmatmul.mubr.bf16.gmra.mrb[0].mxu0 %v1982
        %v2539 = vpop.f32.mrb[0].mxu0
        %v2540 = vadd.f32 0.0, %v2539
        %v2541 = vpop.f32.mrb[0].mxu0
        %v2542 = vpop.f32.mrb[0].mxu0
        %v2543 = vadd.f32 0.0, %v2542
        %v2544 = vpop.f32.mrb[0].mxu0
        %2545 = vdwg.mxu0
        %v2546 = vrot.slane %v2484, 1
        %v2547 = vrot.slane %v2487, 1
        %v2548 = vrot.slane %v2492, 1
        %v2549 = vrot.slane %v2495, 1
        %v2550 = vrot.slane %v2500, 1
        %v2551 = vrot.slane %v2503, 1
        %v2552 = vrot.slane %v2508, 1
        %v2553 = vrot.slane %v2511, 1
        %v2554 = vrot.slane %v2516, 1
        %v2555 = vrot.slane %v2519, 1
        %v2556 = vrot.slane %v2524, 1
        %v2557 = vrot.slane %v2527, 1
        %v2558 = vrot.slane %v2532, 1
        %v2559 = vrot.slane %v2535, 1
        %v2560 = vrot.slane %v2540, 1
        %v2561 = vrot.slane %v2543, 1
        %v2562 = vsel %vm1287, %v2560, %v2561
        %v2563 = vsel %vm1287, %v2559, %v2560
        %v2564 = vsel %vm1287, %v2558, %v2559
        %v2565 = vsel %vm1287, %v2557, %v2558
        %v2566 = vsel %vm1287, %v2556, %v2557
        %v2567 = vsel %vm1287, %v2555, %v2556
        %v2568 = vsel %vm1287, %v2554, %v2555
        %v2569 = vsel %vm1287, %v2553, %v2554
        %v2570 = vsel %vm1287, %v2552, %v2553
        %v2571 = vsel %vm1287, %v2551, %v2552
        %v2572 = vsel %vm1287, %v2550, %v2551
        %v2573 = vsel %vm1287, %v2549, %v2550
        %v2574 = vsel %vm1287, %v2548, %v2549
        %v2575 = vsel %vm1287, %v2547, %v2548
        %v2576 = vsel %vm1287, %v2546, %v2547
        %v2577 = vsel %vm1287, %v2561, %v2546
        %v2578 = vsel %vm1306, %v2576, 0.0
        %v2579 = vsel %vm1307, %v2575, 0.0
        %v2580 = vsel %vm1306, %v2574, 0.0
        %v2581 = vsel %vm1307, %v2573, 0.0
        %v2582 = vsel %vm1306, %v2572, 0.0
        %v2583 = vsel %vm1307, %v2571, 0.0
        %v2584 = vsel %vm1306, %v2570, 0.0
        %v2585 = vsel %vm1307, %v2569, 0.0
        %v2586 = vsel %vm1306, %v2568, 0.0
        %v2587 = vsel %vm1307, %v2567, 0.0
        %v2588 = vsel %vm1306, %v2566, 0.0
        %v2589 = vsel %vm1307, %v2565, 0.0
        %v2590 = vsel %vm1306, %v2564, 0.0
        %v2591 = vsel %vm1307, %v2563, 0.0
        %v2592 = vsel %vm1306, %v2562, 0.0
        %v2593 = vsel %vm1307, %v2577, 0.0
        %v2594 = vadd.f32 %v2369, %v2578
        %v2595 = vadd.f32 %v2370, %v2579
        %v2596 = vadd.f32 %v2371, %v2580
        %v2597 = vadd.f32 %v2372, %v2581
        %v2598 = vadd.f32 %v2373, %v2582
        %v2599 = vadd.f32 %v2374, %v2583
        %v2600 = vadd.f32 %v2375, %v2584
        %v2601 = vadd.f32 %v2376, %v2585
        %v2602 = vadd.f32 %v2377, %v2586
        %v2603 = vadd.f32 %v2378, %v2587
        %v2604 = vadd.f32 %v2379, %v2588
        %v2605 = vadd.f32 %v2380, %v2589
        %v2606 = vadd.f32 %v2381, %v2590
        %v2607 = vadd.f32 %v2382, %v2591
        %v2608 = vadd.f32 %v2383, %v2592
        %v2609 = vadd.f32 %v2384, %v2593
        %v2610 = vld [vmem:[%s4] sm:$0x1]
        %v2612 = vlaneseq
        %v2613 = vshrl.u32 %v2612, 7
        %v2614 = vsub.s32 0, %v2613
        %v2615 = vrot.slane %v2610, %v2614
        %v2617 = vadd.f32 %v2594, %v2615
        %v2618 = vadd.f32 %v2595, %v2615
        %v2619 = vadd.f32 %v2596, %v2615
        %v2620 = vadd.f32 %v2597, %v2615
        %v2621 = vadd.f32 %v2598, %v2615
        %v2622 = vadd.f32 %v2599, %v2615
        %v2623 = vadd.f32 %v2600, %v2615
        %v2624 = vadd.f32 %v2601, %v2615
        %v2625 = vadd.f32 %v2602, %v2615
        %v2626 = vadd.f32 %v2603, %v2615
        %v2627 = vadd.f32 %v2604, %v2615
        %v2628 = vadd.f32 %v2605, %v2615
        %v2629 = vadd.f32 %v2606, %v2615
        %v2630 = vadd.f32 %v2607, %v2615
        %v2631 = vadd.f32 %v2608, %v2615
        %v2632 = vadd.f32 %v2609, %v2615
        %v2633 = vmax.f32 %v2617, 0.0
        %v2634 = vmax.f32 %v2618, 0.0
        %v2635 = vmax.f32 %v2619, 0.0
        %v2636 = vmax.f32 %v2620, 0.0
        %v2637 = vmax.f32 %v2621, 0.0
        %v2638 = vmax.f32 %v2622, 0.0
        %v2639 = vmax.f32 %v2623, 0.0
        %v2640 = vmax.f32 %v2624, 0.0
        %v2641 = vmax.f32 %v2625, 0.0
        %v2642 = vmax.f32 %v2626, 0.0
        %v2643 = vmax.f32 %v2627, 0.0
        %v2644 = vmax.f32 %v2628, 0.0
        %v2645 = vmax.f32 %v2629, 0.0
        %v2646 = vmax.f32 %v2630, 0.0
        %v2647 = vmax.f32 %v2631, 0.0
        %v2648 = vmax.f32 %v2632, 0.0
        %v2649 = vpack.c.bf16 %v2634, %v2633
        %v2650 = vpack.c.bf16 %v2636, %v2635
        %v2651 = vpack.c.bf16 %v2638, %v2637
        %v2652 = vpack.c.bf16 %v2640, %v2639
        %v2653 = vpack.c.bf16 %v2642, %v2641
        %v2654 = vpack.c.bf16 %v2644, %v2643
        %v2655 = vpack.c.bf16 %v2646, %v2645
        %v2656 = vpack.c.bf16 %v2648, %v2647
        %v2657 = vld [vmem:[#allocation9] sm:$0xf]
        %v2658 = vld [vmem:[#allocation9 + $0x4] sm:$0xf]
        %v2659 = vld [vmem:[#allocation9 + $0x8] sm:$0xf]
        %v2660 = vld [vmem:[#allocation9 + $0xc] sm:$0xf]
        %v2661 = vld [vmem:[#allocation9 + $0x10] sm:$0xf]
        %v2662 = vld [vmem:[#allocation9 + $0x14] sm:$0xf]
        %v2663 = vld [vmem:[#allocation9 + $0x18] sm:$0xf]
        %v2664 = vld [vmem:[#allocation9 + $0x1c] sm:$0xf]
        %v2665 = vld [vmem:[#allocation9 + $0x20] sm:$0xf]
        %v2666 = vld [vmem:[#allocation9 + $0x24] sm:$0xf]
        %v2667 = vld [vmem:[#allocation9 + $0x28] sm:$0xf]
        %v2668 = vld [vmem:[#allocation9 + $0x2c] sm:$0xf]
        %v2669 = vld [vmem:[#allocation9 + $0x30] sm:$0xf]
        %v2670 = vld [vmem:[#allocation9 + $0x34] sm:$0xf]
        %v2671 = vld [vmem:[#allocation9 + $0x38] sm:$0xf]
        %v2672 = vld [vmem:[#allocation9 + $0x3c] sm:$0xf]
        %v2673 = vld [vmem:[%s6] sm:$0x1]
        %v2675 = vlaneseq
        %v2676 = vshrl.u32 %v2675, 7
        %v2677 = vsub.s32 0, %v2676
        %v2678 = vrot.slane %v2673, %v2677
        %v2696 = vunpack.c.l.b16 %v2657
        %v2697 = vunpack.c.l.b16 %v2658
        %v2698 = vunpack.c.l.b16 %v2659
        %v2699 = vunpack.c.l.b16 %v2660
        %v2700 = vunpack.c.l.b16 %v2661
        %v2701 = vunpack.c.l.b16 %v2662
        %v2702 = vunpack.c.l.b16 %v2663
        %v2703 = vunpack.c.l.b16 %v2664
        %v2704 = vunpack.c.l.b16 %v2665
        %v2705 = vunpack.c.l.b16 %v2666
        %v2706 = vunpack.c.l.b16 %v2667
        %v2707 = vunpack.c.l.b16 %v2668
        %v2708 = vunpack.c.l.b16 %v2669
        %v2709 = vunpack.c.l.b16 %v2670
        %v2710 = vunpack.c.l.b16 %v2671
        %v2711 = vunpack.c.l.b16 %v2672
        %v2712 = vpack.c.b16 %v2697, %v2696
        %v2713 = vpack.c.b16 %v2699, %v2698
        %v2714 = vpack.c.b16 %v2701, %v2700
        %v2715 = vpack.c.b16 %v2703, %v2702
        %v2716 = vpack.c.b16 %v2705, %v2704
        %v2717 = vpack.c.b16 %v2707, %v2706
        %v2718 = vpack.c.b16 %v2709, %v2708
        %v2719 = vpack.c.b16 %v2711, %v2710
        %2728 = vmatprep.subr.bf16.mxu0 0
        %2729 = vmatpush1.bf16.msra.mxu0 %v2712
        %2730 = vmatprep.subr.bf16.mxu0 0
        %2731 = vmatpush1.bf16.msra.mxu0 %v2713
        %2732 = vmatprep.subr.bf16.mxu0 0
        %2733 = vmatpush1.bf16.msra.mxu0 %v2714
        %2734 = vmatprep.subr.bf16.mxu0 0
        %2735 = vmatpush1.bf16.msra.mxu0 %v2715
        %2736 = vmatprep.subr.bf16.mxu0 0
        %2737 = vmatpush1.bf16.msra.mxu0 %v2716
        %2738 = vmatprep.subr.bf16.mxu0 0
        %2739 = vmatpush1.bf16.msra.mxu0 %v2717
        %2740 = vmatprep.subr.bf16.mxu0 0
        %2741 = vmatpush1.bf16.msra.mxu0 %v2718
        %2742 = vmatprep.subr.bf16.mxu0 0
        %2743 = vmatpush1.bf16.msra.mxu0 %v2719
        %2744 = vmatprep.subr.bf16.mxu0 0
        %2745 = vmatpush1.bf16.msra.mxu0 0
        %2746 = vmatprep.subr.bf16.mxu0 0
        %2747 = vmatpush1.bf16.msra.mxu0 0
        %2748 = vmatprep.subr.bf16.mxu0 0
        %2749 = vmatpush1.bf16.msra.mxu0 0
        %2750 = vmatprep.subr.bf16.mxu0 0
        %2751 = vmatpush1.bf16.msra.mxu0 0
        %2752 = vmatprep.subr.bf16.mxu0 0
        %2753 = vmatpush1.bf16.msra.mxu0 0
        %2754 = vmatprep.subr.bf16.mxu0 0
        %2755 = vmatpush1.bf16.msra.mxu0 0
        %2756 = vmatprep.subr.bf16.mxu0 0
        %2757 = vmatpush1.bf16.msra.mxu0 0
        %2758 = vmatprep.subr.bf16.mxu0 0
        %2759 = vmatpush1.bf16.msra.mxu0 0
        %2760 = vmatprep.mubr.bf16.mxu0 0
        %2761 = vmatmul.mubr.bf16.gmra.mrb[0].mxu0 %v2649
        %v2762 = vpop.f32.mrb[0].mxu0
        %v2763 = vadd.f32 %v2678, %v2762
        %v2764 = vpop.f32.mrb[0].mxu0
        %v2765 = vpop.f32.mrb[0].mxu0
        %v2766 = vadd.f32 %v2678, %v2765
        %v2767 = vpop.f32.mrb[0].mxu0
        %2768 = vmatprep.mubr.bf16.mxu0 0
        %2769 = vmatmul.mubr.bf16.gmra.mrb[0].mxu0 %v2650
        %v2770 = vpop.f32.mrb[0].mxu0
        %v2771 = vadd.f32 %v2678, %v2770
        %v2772 = vpop.f32.mrb[0].mxu0
        %v2773 = vpop.f32.mrb[0].mxu0
        %v2774 = vadd.f32 %v2678, %v2773
        %v2775 = vpop.f32.mrb[0].mxu0
        %2776 = vmatprep.mubr.bf16.mxu0 0
        %2777 = vmatmul.mubr.bf16.gmra.mrb[0].mxu0 %v2651
        %v2778 = vpop.f32.mrb[0].mxu0
        %v2779 = vadd.f32 %v2678, %v2778
        %v2780 = vpop.f32.mrb[0].mxu0
        %v2781 = vpop.f32.mrb[0].mxu0
        %v2782 = vadd.f32 %v2678, %v2781
        %v2783 = vpop.f32.mrb[0].mxu0
        %2784 = vmatprep.mubr.bf16.mxu0 0
        %2785 = vmatmul.mubr.bf16.gmra.mrb[0].mxu0 %v2652
        %v2786 = vpop.f32.mrb[0].mxu0
        %v2787 = vadd.f32 %v2678, %v2786
        %v2788 = vpop.f32.mrb[0].mxu0
        %v2789 = vpop.f32.mrb[0].mxu0
        %v2790 = vadd.f32 %v2678, %v2789
        %v2791 = vpop.f32.mrb[0].mxu0
        %2792 = vmatprep.mubr.bf16.mxu0 0
        %2793 = vmatmul.mubr.bf16.gmra.mrb[0].mxu0 %v2653
        %v2794 = vpop.f32.mrb[0].mxu0
        %v2795 = vadd.f32 %v2678, %v2794
        %v2796 = vpop.f32.mrb[0].mxu0
        %v2797 = vpop.f32.mrb[0].mxu0
        %v2798 = vadd.f32 %v2678, %v2797
        %v2799 = vpop.f32.mrb[0].mxu0
        %2800 = vmatprep.mubr.bf16.mxu0 0
        %2801 = vmatmul.mubr.bf16.gmra.mrb[0].mxu0 %v2654
        %v2802 = vpop.f32.mrb[0].mxu0
        %v2803 = vadd.f32 %v2678, %v2802
        %v2804 = vpop.f32.mrb[0].mxu0
        %v2805 = vpop.f32.mrb[0].mxu0
        %v2806 = vadd.f32 %v2678, %v2805
        %v2807 = vpop.f32.mrb[0].mxu0
        %2808 = vmatprep.mubr.bf16.mxu0 0
        %2809 = vmatmul.mubr.bf16.gmra.mrb[0].mxu0 %v2655
        %v2810 = vpop.f32.mrb[0].mxu0
        %v2811 = vadd.f32 %v2678, %v2810
        %v2812 = vpop.f32.mrb[0].mxu0
        %v2813 = vpop.f32.mrb[0].mxu0
        %v2814 = vadd.f32 %v2678, %v2813
        %v2815 = vpop.f32.mrb[0].mxu0
        %2816 = vmatprep.mubr.bf16.mxu0 0
        %2817 = vmatmul.mubr.bf16.gmra.mrb[0].mxu0 %v2656
        %v2818 = vpop.f32.mrb[0].mxu0
        %v2819 = vadd.f32 %v2678, %v2818
        %v2820 = vpop.f32.mrb[0].mxu0
        %v2821 = vpop.f32.mrb[0].mxu0
        %v2822 = vadd.f32 %v2678, %v2821
        %v2823 = vpop.f32.mrb[0].mxu0
        %2824 = vdwg.mxu0
        %v2825 = vld [vmem:[%s376] sm:$0xff]
        %v2826 = vld [vmem:[%s376 + $0x8] sm:$0xff]
        %v2827 = vld [vmem:[%s376 + $0x10] sm:$0xff]
        %v2828 = vld [vmem:[%s376 + $0x18] sm:$0xff]
        %v2829 = vld [vmem:[%s376 + $0x20] sm:$0xff]
        %v2830 = vld [vmem:[%s376 + $0x28] sm:$0xff]
        %v2831 = vld [vmem:[%s376 + $0x30] sm:$0xff]
        %v2832 = vld [vmem:[%s376 + $0x38] sm:$0xff]
        %v2833 = vld [vmem:[%s376 + $0x40] sm:$0xff]
        %v2834 = vld [vmem:[%s376 + $0x48] sm:$0xff]
        %v2835 = vld [vmem:[%s376 + $0x50] sm:$0xff]
        %v2836 = vld [vmem:[%s376 + $0x58] sm:$0xff]
        %v2837 = vld [vmem:[%s376 + $0x60] sm:$0xff]
        %v2838 = vld [vmem:[%s376 + $0x68] sm:$0xff]
        %v2839 = vld [vmem:[%s376 + $0x70] sm:$0xff]
        %v2840 = vld [vmem:[%s376 + $0x78] sm:$0xff]
        %v2841 = vadd.f32 %v2763, %v2825
        %v2842 = vadd.f32 %v2766, %v2826
        %v2843 = vadd.f32 %v2771, %v2827
        %v2844 = vadd.f32 %v2774, %v2828
        %v2845 = vadd.f32 %v2779, %v2829
        %v2846 = vadd.f32 %v2782, %v2830
        %v2847 = vadd.f32 %v2787, %v2831
        %v2848 = vadd.f32 %v2790, %v2832
        %v2849 = vadd.f32 %v2795, %v2833
        %v2850 = vadd.f32 %v2798, %v2834
        %v2851 = vadd.f32 %v2803, %v2835
        %v2852 = vadd.f32 %v2806, %v2836
        %v2853 = vadd.f32 %v2811, %v2837
        %v2854 = vadd.f32 %v2814, %v2838
        %v2855 = vadd.f32 %v2819, %v2839
        %v2856 = vadd.f32 %v2822, %v2840
        %v2857 = vmax.f32 %v2841, 0.0
        %v2858 = vmax.f32 %v2842, 0.0
        %v2859 = vmax.f32 %v2843, 0.0
        %v2860 = vmax.f32 %v2844, 0.0
        %v2861 = vmax.f32 %v2845, 0.0
        %v2862 = vmax.f32 %v2846, 0.0
        %v2863 = vmax.f32 %v2847, 0.0
        %v2864 = vmax.f32 %v2848, 0.0
        %v2865 = vmax.f32 %v2849, 0.0
        %v2866 = vmax.f32 %v2850, 0.0
        %v2867 = vmax.f32 %v2851, 0.0
        %v2868 = vmax.f32 %v2852, 0.0
        %v2869 = vmax.f32 %v2853, 0.0
        %v2870 = vmax.f32 %v2854, 0.0
        %v2871 = vmax.f32 %v2855, 0.0
        %v2872 = vmax.f32 %v2856, 0.0
        %2873 = vst [vmem:[%s354] sm:$0xff] %v2857
        %2874 = vst [vmem:[%s354 + $0x8] sm:$0xff] %v2858
        %2875 = vst [vmem:[%s354 + $0x10] sm:$0xff] %v2859
        %2876 = vst [vmem:[%s354 + $0x18] sm:$0xff] %v2860
        %2877 = vst [vmem:[%s354 + $0x20] sm:$0xff] %v2861
        %2878 = vst [vmem:[%s354 + $0x28] sm:$0xff] %v2862
        %2879 = vst [vmem:[%s354 + $0x30] sm:$0xff] %v2863
        %2880 = vst [vmem:[%s354 + $0x38] sm:$0xff] %v2864
        %2881 = vst [vmem:[%s354 + $0x40] sm:$0xff] %v2865
        %2882 = vst [vmem:[%s354 + $0x48] sm:$0xff] %v2866
        %2883 = vst [vmem:[%s354 + $0x50] sm:$0xff] %v2867
        %2884 = vst [vmem:[%s354 + $0x58] sm:$0xff] %v2868
        %2885 = vst [vmem:[%s354 + $0x60] sm:$0xff] %v2869
        %2886 = vst [vmem:[%s354 + $0x68] sm:$0xff] %v2870
        %2887 = vst [vmem:[%s354 + $0x70] sm:$0xff] %v2871
        %2888 = vst [vmem:[%s354 + $0x78] sm:$0xff] %v2872
        %s2889 = sand.u32 %s200, 1
        %s2890 = scalar_lea.sflag [#allocation5], %s2889
        %s2891 = sand.u32 %s200, 1
        %s2892 = smul.addr %s2891, 128
        %s2893 = scalar_lea.vmem [#allocation11], %s2892
        // Predicated region
        $region81: #{tpu_custom_call.1} parent=47 // pred_check
          %p2894 = pneg %p210
        $region82: #{tpu_custom_call.1} parent=47 // pred_check_branch
          %2896 = sbr.rel (%p2894) target = $region84
        $region83: #{tpu_custom_call.1} parent=47 // pred_region
          %s2897 = smul.u32 8, %s31
          %s2899 = ssub.s32 2048, 2048
          %2900 = vsyncadd %s2890, %s2899
          %s2901 = smul.addr %s2897, 2
          %s2902 = smul.addr %s30, 32
          %s2903 = sadd.s32 %s2901, %s2902
          %s2904 = smul.addr %s2903, 128
          %s2905 = scalar_lea.hbm %s7, %s2904
          %s2906 = sshll.u32 %s2893, 4
          %s2907 = int_to_ptr.vmem [resolvable:$true] %s2906
          %2912 = dma.vmem_to_hbm [thread:$0]  %s2907, 2048, %s2905, %s2890, 128, 128, 8
        $region84: #{tpu_custom_call.1} parent=47 // pred_fallthru
          _
      $region48: #{tpu_custom_call.1} parent=5 // pred_fallthru
        _
      %p2913 = scmp.le.s32.totalorder 2, %s21
      // Predicated region
      $region85: #{tpu_custom_call.1} parent=5 // pred_check
        %p2914 = pneg %p2913
      $region86: #{tpu_custom_call.1} parent=5 // pred_check_branch
        %2916 = sbr.rel (%p2914) target = $region88
      $region87: #{tpu_custom_call.1} parent=5 // pred_region
        %s2917 = ssub.s32 %s21, 2
        // Predicated region
        $region89: #{tpu_custom_call.1} parent=87 // pred_check
          %p2918 = pneg %p216
        $region90: #{tpu_custom_call.1} parent=87 // pred_check_branch
          %2920 = sbr.rel (%p2918) target = $region92
        $region91: #{tpu_custom_call.1} parent=87 // pred_region
          %s2921 = sand.u32 %s201, 1
          %s2922 = scalar_lea.sflag [#allocation5], %s2921
          %s2923 = sand.u32 %s201, 1
          %s2924 = smul.addr %s2923, 128
          %s2925 = scalar_lea.vmem [#allocation11], %s2924
          %2926 = dma.done %s2922, 2048
        $region92: #{tpu_custom_call.1} parent=87 // pred_fallthru
          _
      $region88: #{tpu_custom_call.1} parent=5 // pred_fallthru
        _
    $region6: #{tpu_custom_call.1} parent=1 // loop_footer
      %s25 = sadd.s32 1, %s21
    $region7: #{tpu_custom_call.1} parent=1 // loop_footer_branch
      %20 = sbr.rel target = $region3
    $region8: #{tpu_custom_call.1} parent=1 // loop_exit
      _
    %2927 = vsyncpa [#allocation4], 1
    %s2928 = scalar_lea.sflag [#allocation4], 1
    %2929 = vsyncpa %s2928, 1
    %2930 = vsyncpa [#allocation7], 1
    %2931 = vsyncpa [#allocation10], 1
    %2932 = vsyncpa [#allocation5], 1
    %s2933 = scalar_lea.sflag [#allocation5], 1
    %2934 = vsyncpa %s2933, 1

</llo_original>
